<compile_context>
chip_gen: v7x
topology: tpu7x:2x2x1
jax: 0.10.0
libtpu: 0.0.40
codegen_flags: <defaults>
</compile_context>

<pallas_src>
import math

import numpy as np

import jax
import jax.numpy as jnp
from jax.experimental import pallas as pl
from jax.experimental.pallas import tpu as pltpu


# ------------------------- kernel configuration ----------------------------

CONV_NB = 4                     # samples lane-batched through the conv stage
N_GROUPS = 2                    # conv groups per grid step
BLOCK_B = CONV_NB * N_GROUPS    # samples per grid step (raise for large B)
_LANE_W = 32 * CONV_NB          # lane width of one conv group (=128)

_ORDER = ("w1cat", "sw1", "sh1", "w2cat", "sw2", "sh2",
          "w1f", "w2f", "w3f", "biases")


# ----------------------------- fused kernel --------------------------------

def _lenet_fused_kernel(x_ref,
                        w1c_ref, sw1_ref, sh1_ref,
                        w2c_ref, sw2_ref, sh2_ref,
                        w1f_ref, w2f_ref, w3f_ref, b_ref,
                        o_ref, feat_ref):
    f32, bf16 = jnp.float32, jnp.bfloat16
    NB, W = CONV_NB, _LANE_W

    # packed biases (static, 8-row-aligned sublane slices of one slab)
    cb1 = b_ref[0:168]           # conv1 bias repeated per output row
    cb2 = b_ref[168:328]         # conv2 bias
    fb1 = b_ref[328:448]         # fc1
    fb2 = b_ref[448:532]         # fc2
    fb3 = b_ref[536:546]         # fc3

    def shift_stack(a):
        # Stack [a shifted left by kw, kw=0..4] along the K (sublane) axis.
        # The shift is a static lane slice of the lane-doubled array; the few
        # "wrapped" columns only feed padding outputs that the 0/1 pooling
        # selection matmuls discard.
        width = a.shape[1]
        aa = jnp.concatenate([a, a], axis=1)           # aligned lane concat
        pieces = [a] + [aa[:, kw:kw + width] for kw in range(1, 5)]
        return jnp.concatenate(pieces, axis=0)         # aligned sublane concat

    for g in range(N_GROUPS):
        # ---- group of NB samples, side by side in 32-lane blocks -----------
        xg = x_ref[0, :, g * W:(g + 1) * W]            # (32, 128) bf16

        # ---- conv1 (1->6, 5x5 valid): ONE fused Toeplitz matmul ------------
        x_stk = shift_stack(xg)                        # (160, 128) bf16
        c1 = jnp.dot(w1c_ref[...], x_stk,
                     preferred_element_type=f32) + cb1     # (168, 128) f32

        # ---- maxpool 2x2/2: pair-max (VPU) + 0/1 selection matmuls ---------
        m1 = jnp.maximum(c1[:, :-1], c1[:, 1:])
        a1 = jnp.dot(m1, sw1_ref[...], preferred_element_type=f32)  # (168,128)
        v1 = jnp.maximum(a1[:-1, :], a1[1:, :])
        p1 = jnp.dot(sh1_ref[...], v1, preferred_element_type=f32)  # (96, 128)

        # ---- conv2 (6->16, 5x5 valid): ONE fused Toeplitz matmul -----------
        p1_stk = shift_stack(p1.astype(bf16))          # (480, 128) bf16
        c2 = jnp.dot(w2c_ref[...], p1_stk,
                     preferred_element_type=f32) + cb2     # (160, 128) f32

        # ---- maxpool 2x2/2 (kw-major output columns: w*NB + s) -------------
        m2 = jnp.maximum(c2[:, :-1], c2[:, 1:])
        a2 = jnp.dot(m2, sw2_ref[...], preferred_element_type=f32)  # (160, 20)
        v2 = jnp.maximum(a2[:-1, :], a2[1:, :])
        p2 = jnp.dot(sh2_ref[...], v2, preferred_element_type=f32)  # (80, 20)

        # ---- stage flattened features for the batched FC stack -------------
        # feat[w*80 + c*5 + h, g*NB + s] = pool2[c, h, w]  (PyTorch flatten)
        for w in range(5):
            feat_ref[w * 80:(w + 1) * 80, g * NB:(g + 1) * NB] = \
                p2[:, w * NB:(w + 1) * NB]

    # ---- fc1 / fc2 / fc3, lane-batched over all BLOCK_B samples ------------
    feats = feat_ref[...].astype(bf16)                               # (400, B_blk)
    h1 = jnp.dot(w1f_ref[...], feats, preferred_element_type=f32) + fb1
    h2 = jnp.dot(w2f_ref[...], h1.astype(bf16),
                 preferred_element_type=f32) + fb2
    logits = jnp.dot(w3f_ref[...], h2.astype(bf16),
                     preferred_element_type=f32) + fb3
    o_ref[0] = logits                                                # (10, B_blk)


# ----------------------------- host-side packing ----------------------------

def prepare_lenet_params(params):
    """One-time repack of PyTorch-layout params into the kernel layout."""
    w1 = np.asarray(params["conv1_w"], np.float32)   # (6, 1, 5, 5)
    b1 = np.asarray(params["conv1_b"], np.float32)
    w2 = np.asarray(params["conv2_w"], np.float32)   # (16, 6, 5, 5)
    b2 = np.asarray(params["conv2_b"], np.float32)
    f1w = np.asarray(params["fc1_w"], np.float32)    # (120, 400)
    f1b = np.asarray(params["fc1_b"], np.float32)
    f2w = np.asarray(params["fc2_w"], np.float32)    # (84, 120)
    f2b = np.asarray(params["fc2_b"], np.float32)
    f3w = np.asarray(params["fc3_w"], np.float32)    # (10, 84)
    f3b = np.asarray(params["fc3_b"], np.float32)

    NB = CONV_NB

    # conv1 fused Toeplitz weight: K = 5 stacked shifted copies of the 32 rows.
    w1cat = np.zeros((6 * 28, 5 * 32), np.float32)
    for kw in range(5):
        for co in range(6):
            for oh in range(28):
                for kh in range(5):
                    w1cat[co * 28 + oh, kw * 32 + oh + kh] = w1[co, 0, kh, kw]

    # conv2 fused Toeplitz weight: K = 5 stacked copies of the 96 pool1 rows
    # (84 real rows = 6 channels x 14, padded to 96 for aligned stacking).
    w2cat = np.zeros((16 * 10, 5 * 96), np.float32)
    for kw in range(5):
        for co in range(16):
            for oh in range(10):
                for ci in range(6):
                    for kh in range(5):
                        w2cat[co * 10 + oh, kw * 96 + ci * 14 + oh + kh] = \
                            w2[co, ci, kh, kw]

    # 0/1 pooling selection matrices (exact stride-2 downsampling on the MXU).
    # Samples live in 32-lane blocks; pool1 keeps 32-lane blocks so conv2's
    # lane shifts stay inside one 128-lane group.
    sw1 = np.zeros((32 * NB - 1, 32 * NB), np.float32)
    for s in range(NB):
        for i in range(14):
            sw1[s * 32 + 2 * i, s * 32 + i] = 1.0
    sh1 = np.zeros((96, 167), np.float32)
    for c in range(6):
        for i in range(14):
            sh1[c * 14 + i, c * 28 + 2 * i] = 1.0
    # pool2's horizontal selection emits kw-major columns (w*NB + s) so the
    # flattened features land in contiguous row blocks of the FC scratch.
    sw2 = np.zeros((32 * NB - 1, 5 * NB), np.float32)
    for s in range(NB):
        for w in range(5):
            sw2[s * 32 + 2 * w, w * NB + s] = 1.0
    sh2 = np.zeros((80, 159), np.float32)
    for c in range(16):
        for h in range(5):
            sh2[c * 5 + h, c * 10 + 2 * h] = 1.0

    # fc1 columns regrouped to (w, c, h) order to match the staged features.
    w1f = f1w.reshape(120, 16, 5, 5).transpose(0, 3, 1, 2).reshape(120, 400)

    # All biases packed into one slab (sections start on 8-row boundaries).
    biases = np.zeros((552, 1), np.float32)
    biases[0:168, 0] = np.repeat(b1, 28)
    biases[168:328, 0] = np.repeat(b2, 10)
    biases[328:448, 0] = f1b
    biases[448:532, 0] = f2b
    biases[536:546, 0] = f3b

    return {
        "w1cat": jnp.asarray(w1cat, jnp.bfloat16),
        "sw1": jnp.asarray(sw1),
        "sh1": jnp.asarray(sh1),
        "w2cat": jnp.asarray(w2cat, jnp.bfloat16),
        "sw2": jnp.asarray(sw2),
        "sh2": jnp.asarray(sh2),
        "w1f": jnp.asarray(w1f, jnp.bfloat16),
        "w2f": jnp.asarray(f2w, jnp.bfloat16),
        "w3f": jnp.asarray(f3w, jnp.bfloat16),
        "biases": jnp.asarray(biases),
    }


# ----------------------------- forward --------------------------------------

@jax.jit
def lenet_forward(prep, x):
    """x: (B, 1, 32, 32) NCHW -> (B, 10) logits."""
    B = x.shape[0]
    assert x.shape[1:] == (1, 32, 32), x.shape
    nblk = pl.cdiv(B, BLOCK_B)
    b_pad = nblk * BLOCK_B

    xs = x.reshape(B, 32, 32).astype(jnp.bfloat16)
    if b_pad != B:
        xs = jnp.pad(xs, ((0, b_pad - B), (0, 0), (0, 0)))
    # Layout plumbing only: samples of one grid block side by side along lanes.
    xs = xs.reshape(nblk, BLOCK_B, 32, 32).transpose(0, 2, 1, 3)
    xs = xs.reshape(nblk, 32, BLOCK_B * 32)

    weights = [prep[k] for k in _ORDER]
    in_specs = [pl.BlockSpec((1, 32, BLOCK_B * 32), lambda b: (b, 0, 0))]
    in_specs += [pl.BlockSpec(w.shape, lambda b, _z=(0,) * w.ndim: _z)
                 for w in weights]

    out = pl.pallas_call(
        _lenet_fused_kernel,
        out_shape=jax.ShapeDtypeStruct((nblk, 10, BLOCK_B), jnp.float32),
        grid=(nblk,),
        in_specs=in_specs,
        out_specs=pl.BlockSpec((1, 10, BLOCK_B), lambda b: (b, 0, 0)),
        scratch_shapes=[pltpu.VMEM((400, BLOCK_B), jnp.float32)],
        compiler_params=pltpu.CompilerParams(
            dimension_semantics=("parallel",)),
    )(xs, *weights)

    # (nblk, 10, BLOCK_B) lane-dense blocks -> (B, 10)
    return out.transpose(0, 2, 1).reshape(b_pad, 10)[:B]


# ----------------------------- init & reference -----------------------------

def init_lenet_params(key):
    """Deterministic init (PyTorch-style uniform +-1/sqrt(fan_in))."""
    def u(k, shape, fan_in):
        bound = 1.0 / math.sqrt(fan_in)
        return jax.random.uniform(k, shape, jnp.float32, -bound, bound)

    ks = jax.random.split(key, 10)
    return {
        "conv1_w": u(ks[0], (6, 1, 5, 5), 1 * 5 * 5),
        "conv1_b": u(ks[1], (6,), 1 * 5 * 5),
        "conv2_w": u(ks[2], (16, 6, 5, 5), 6 * 5 * 5),
        "conv2_b": u(ks[3], (16,), 6 * 5 * 5),
        "fc1_w": u(ks[4], (120, 400), 400),
        "fc1_b": u(ks[5], (120,), 400),
        "fc2_w": u(ks[6], (84, 120), 120),
        "fc2_b": u(ks[7], (84,), 120),
        "fc3_w": u(ks[8], (10, 84), 84),
        "fc3_b": u(ks[9], (10,), 84),
    }


def _reference_forward(params, x):
    """Pure-JAX f32 reference (im2col convs + strided-slice pooling)."""
    def conv(x, w, b):
        B, Cin, H, W = x.shape
        Cout, _, KH, KW = w.shape
        OH, OW = H - KH + 1, W - KW + 1
        patches = jnp.stack(
            [x[:, :, kh:kh + OH, kw:kw + OW]
             for kh in range(KH) for kw in range(KW)], axis=2)
        patches = jnp.transpose(patches, (0, 3, 4, 1, 2)).reshape(
            B * OH * OW, Cin * KH * KW)
        out = patches @ w.reshape(Cout, -1).T + b
        return jnp.transpose(out.reshape(B, OH, OW, Cout), (0, 3, 1, 2))

    def pool(x):
        return jnp.maximum(
            jnp.maximum(x[:, :, 0::2, 0::2], x[:, :, 0::2, 1::2]),
            jnp.maximum(x[:, :, 1::2, 0::2], x[:, :, 1::2, 1::2]))

    x = pool(conv(x, params["conv1_w"], params["conv1_b"]))
    x = pool(conv(x, params["conv2_w"], params["conv2_b"]))
    x = x.reshape(x.shape[0], -1)
    x = x @ params["fc1_w"].T + params["fc1_b"]
    x = x @ params["fc2_w"].T + params["fc2_b"]
    x = x @ params["fc3_w"].T + params["fc3_b"]
    return x


if __name__ == "__main__":
    key = jax.random.PRNGKey(0)
    k_x, k_p = jax.random.split(key)
    # LeNet's 16*5*5 flatten implies a 1-channel 32x32 input.
    B = 16                                   # 2 grid steps of BLOCK_B=8 samples
    x = jax.random.normal(k_x, (B, 1, 32, 32), dtype=jnp.float32)
    params = init_lenet_params(k_p)
    prep = prepare_lenet_params(params)

    out = jax.block_until_ready(lenet_forward(prep, x))

    assert out.shape == (B, 10), out.shape
    assert bool(jnp.all(jnp.isfinite(out)))

    ref = _reference_forward(params, x)
    max_diff = float(jnp.max(jnp.abs(out - ref)))
    assert max_diff < 5e-2, f"mismatch vs reference: {max_diff}"

    print("KERNEL_OK")
</pallas_src>

<mosaic_0001>
module attributes {stable_mosaic.version = 11 : i64} {
  func.func @_lenet_fused_kernel(%arg0: i32, %arg1: memref<1x32x256xbf16, #tpu.memory_space<vmem>>, %arg2: memref<168x160xbf16, #tpu.memory_space<vmem>>, %arg3: memref<127x128xf32, #tpu.memory_space<vmem>>, %arg4: memref<96x167xf32, #tpu.memory_space<vmem>>, %arg5: memref<160x480xbf16, #tpu.memory_space<vmem>>, %arg6: memref<127x20xf32, #tpu.memory_space<vmem>>, %arg7: memref<80x159xf32, #tpu.memory_space<vmem>>, %arg8: memref<120x400xbf16, #tpu.memory_space<vmem>>, %arg9: memref<84x120xbf16, #tpu.memory_space<vmem>>, %arg10: memref<10x84xbf16, #tpu.memory_space<vmem>>, %arg11: memref<552x1xf32, #tpu.memory_space<vmem>>, %arg12: memref<1x10x8xf32, #tpu.memory_space<vmem>>, %arg13: memref<400x8xf32, #tpu.memory_space<vmem>>) attributes {dimension_semantics = [#tpu.dimension_semantics<parallel>], iteration_bounds = array<i64: 2>, scalar_prefetch = 0 : i64, scratch_operands = 1 : i64, tpu.core_type = #tpu.core_type<tc>, window_params = [{transform_indices = @transform_0, window_bounds = array<i64: 1, 32, 256>}, {pipeline_mode = #tpu.pipeline_mode<synchronous>, transform_indices = @transform_1, window_bounds = array<i64: 168, 160>}, {pipeline_mode = #tpu.pipeline_mode<synchronous>, transform_indices = @transform_2, window_bounds = array<i64: 127, 128>}, {pipeline_mode = #tpu.pipeline_mode<synchronous>, transform_indices = @transform_3, window_bounds = array<i64: 96, 167>}, {pipeline_mode = #tpu.pipeline_mode<synchronous>, transform_indices = @transform_4, window_bounds = array<i64: 160, 480>}, {pipeline_mode = #tpu.pipeline_mode<synchronous>, transform_indices = @transform_5, window_bounds = array<i64: 127, 20>}, {pipeline_mode = #tpu.pipeline_mode<synchronous>, transform_indices = @transform_6, window_bounds = array<i64: 80, 159>}, {pipeline_mode = #tpu.pipeline_mode<synchronous>, transform_indices = @transform_7, window_bounds = array<i64: 120, 400>}, {pipeline_mode = #tpu.pipeline_mode<synchronous>, transform_indices = @transform_8, window_bounds = array<i64: 84, 120>}, {pipeline_mode = #tpu.pipeline_mode<synchronous>, transform_indices = @transform_9, window_bounds = array<i64: 10, 84>}, {pipeline_mode = #tpu.pipeline_mode<synchronous>, transform_indices = @transform_10, window_bounds = array<i64: 552, 1>}, {transform_indices = @transform_11, window_bounds = array<i64: 1, 10, 8>}]} {
    %c0 = arith.constant 0 : index
    %c0_0 = arith.constant 0 : index
    %0 = vector.load %arg11[%c0, %c0_0] : memref<552x1xf32, #tpu.memory_space<vmem>>, vector<168x1xf32>
    %c168 = arith.constant 168 : index
    %c0_1 = arith.constant 0 : index
    %1 = vector.load %arg11[%c168, %c0_1] : memref<552x1xf32, #tpu.memory_space<vmem>>, vector<160x1xf32>
    %c328 = arith.constant 328 : index
    %c0_2 = arith.constant 0 : index
    %2 = vector.load %arg11[%c328, %c0_2] : memref<552x1xf32, #tpu.memory_space<vmem>>, vector<120x1xf32>
    %c448 = arith.constant 448 : index
    %c0_3 = arith.constant 0 : index
    %3 = vector.load %arg11[%c448, %c0_3] : memref<552x1xf32, #tpu.memory_space<vmem>>, vector<84x1xf32>
    %c536 = arith.constant 536 : index
    %c0_4 = arith.constant 0 : index
    %4 = vector.load %arg11[%c536, %c0_4] : memref<552x1xf32, #tpu.memory_space<vmem>>, vector<10x1xf32>
    %c0_5 = arith.constant 0 : index
    %c0_6 = arith.constant 0 : index
    %c0_7 = arith.constant 0 : index
    %5 = vector.load %arg1[%c0_5, %c0_6, %c0_7] : memref<1x32x256xbf16, #tpu.memory_space<vmem>>, vector<1x32x128xbf16>
    %6 = vector.shape_cast %5 : vector<1x32x128xbf16> to vector<32x128xbf16>
    %7 = tpu.concatenate %6, %6 in 1 : vector<32x128xbf16>, vector<32x128xbf16> -> vector<32x256xbf16>
    %8 = vector.extract_strided_slice %7 {offsets = [0, 1], sizes = [32, 128], strides = [1, 1]} : vector<32x256xbf16> to vector<32x128xbf16>
    %9 = vector.extract_strided_slice %7 {offsets = [0, 2], sizes = [32, 128], strides = [1, 1]} : vector<32x256xbf16> to vector<32x128xbf16>
    %10 = vector.extract_strided_slice %7 {offsets = [0, 3], sizes = [32, 128], strides = [1, 1]} : vector<32x256xbf16> to vector<32x128xbf16>
    %11 = vector.extract_strided_slice %7 {offsets = [0, 4], sizes = [32, 128], strides = [1, 1]} : vector<32x256xbf16> to vector<32x128xbf16>
    %12 = tpu.concatenate %6, %8, %9, %10, %11 in 0 : vector<32x128xbf16>, vector<32x128xbf16>, vector<32x128xbf16>, vector<32x128xbf16>, vector<32x128xbf16> -> vector<160x128xbf16>
    %c0_8 = arith.constant 0 : index
    %c0_9 = arith.constant 0 : index
    %13 = vector.load %arg2[%c0_8, %c0_9] : memref<168x160xbf16, #tpu.memory_space<vmem>>, vector<168x160xbf16>
    %cst = arith.constant dense<0.000000e+00> : vector<168x128xf32>
    %14 = tpu.matmul %13, %12, %cst {dimension_numbers = #tpu.dot_dimension_numbers<[1], [0], [0], [1], [0, 0, 1, 1], [], []>} : vector<168x160xbf16>, vector<160x128xbf16>, vector<168x128xf32> -> vector<168x128xf32>
    %15 = vector.broadcast %0 : vector<168x1xf32> to vector<168x128xf32>
    %16 = arith.addf %14, %15 : vector<168x128xf32>
    %17 = vector.extract_strided_slice %16 {offsets = [0, 0], sizes = [168, 127], strides = [1, 1]} : vector<168x128xf32> to vector<168x127xf32>
    %18 = vector.extract_strided_slice %16 {offsets = [0, 1], sizes = [168, 127], strides = [1, 1]} : vector<168x128xf32> to vector<168x127xf32>
    %19 = arith.maximumf %17, %18 : vector<168x127xf32>
    %c0_10 = arith.constant 0 : index
    %c0_11 = arith.constant 0 : index
    %20 = vector.load %arg3[%c0_10, %c0_11] : memref<127x128xf32, #tpu.memory_space<vmem>>, vector<127x128xf32>
    %cst_12 = arith.constant dense<0.000000e+00> : vector<168x128xf32>
    %21 = tpu.matmul %19, %20, %cst_12 {dimension_numbers = #tpu.dot_dimension_numbers<[1], [0], [0], [1], [0, 0, 1, 1], [], []>} : vector<168x127xf32>, vector<127x128xf32>, vector<168x128xf32> -> vector<168x128xf32>
    %22 = vector.extract_strided_slice %21 {offsets = [0, 0], sizes = [167, 128], strides = [1, 1]} : vector<168x128xf32> to vector<167x128xf32>
    %23 = vector.extract_strided_slice %21 {offsets = [1, 0], sizes = [167, 128], strides = [1, 1]} : vector<168x128xf32> to vector<167x128xf32>
    %24 = arith.maximumf %22, %23 : vector<167x128xf32>
    %c0_13 = arith.constant 0 : index
    %c0_14 = arith.constant 0 : index
    %25 = vector.load %arg4[%c0_13, %c0_14] : memref<96x167xf32, #tpu.memory_space<vmem>>, vector<96x167xf32>
    %cst_15 = arith.constant dense<0.000000e+00> : vector<96x128xf32>
    %26 = tpu.matmul %25, %24, %cst_15 {dimension_numbers = #tpu.dot_dimension_numbers<[1], [0], [0], [1], [0, 0, 1, 1], [], []>} : vector<96x167xf32>, vector<167x128xf32>, vector<96x128xf32> -> vector<96x128xf32>
    %27 = arith.truncf %26 : vector<96x128xf32> to vector<96x128xbf16>
    %28 = tpu.concatenate %27, %27 in 1 : vector<96x128xbf16>, vector<96x128xbf16> -> vector<96x256xbf16>
    %29 = vector.extract_strided_slice %28 {offsets = [0, 1], sizes = [96, 128], strides = [1, 1]} : vector<96x256xbf16> to vector<96x128xbf16>
    %30 = vector.extract_strided_slice %28 {offsets = [0, 2], sizes = [96, 128], strides = [1, 1]} : vector<96x256xbf16> to vector<96x128xbf16>
    %31 = vector.extract_strided_slice %28 {offsets = [0, 3], sizes = [96, 128], strides = [1, 1]} : vector<96x256xbf16> to vector<96x128xbf16>
    %32 = vector.extract_strided_slice %28 {offsets = [0, 4], sizes = [96, 128], strides = [1, 1]} : vector<96x256xbf16> to vector<96x128xbf16>
    %33 = tpu.concatenate %27, %29, %30, %31, %32 in 0 : vector<96x128xbf16>, vector<96x128xbf16>, vector<96x128xbf16>, vector<96x128xbf16>, vector<96x128xbf16> -> vector<480x128xbf16>
    %c0_16 = arith.constant 0 : index
    %c0_17 = arith.constant 0 : index
    %34 = vector.load %arg5[%c0_16, %c0_17] : memref<160x480xbf16, #tpu.memory_space<vmem>>, vector<160x480xbf16>
    %cst_18 = arith.constant dense<0.000000e+00> : vector<160x128xf32>
    %35 = tpu.matmul %34, %33, %cst_18 {dimension_numbers = #tpu.dot_dimension_numbers<[1], [0], [0], [1], [0, 0, 1, 1], [], []>} : vector<160x480xbf16>, vector<480x128xbf16>, vector<160x128xf32> -> vector<160x128xf32>
    %36 = vector.broadcast %1 : vector<160x1xf32> to vector<160x128xf32>
    %37 = arith.addf %35, %36 : vector<160x128xf32>
    %38 = vector.extract_strided_slice %37 {offsets = [0, 0], sizes = [160, 127], strides = [1, 1]} : vector<160x128xf32> to vector<160x127xf32>
    %39 = vector.extract_strided_slice %37 {offsets = [0, 1], sizes = [160, 127], strides = [1, 1]} : vector<160x128xf32> to vector<160x127xf32>
    %40 = arith.maximumf %38, %39 : vector<160x127xf32>
    %c0_19 = arith.constant 0 : index
    %c0_20 = arith.constant 0 : index
    %41 = vector.load %arg6[%c0_19, %c0_20] : memref<127x20xf32, #tpu.memory_space<vmem>>, vector<127x20xf32>
    %cst_21 = arith.constant dense<0.000000e+00> : vector<160x20xf32>
    %42 = tpu.matmul %40, %41, %cst_21 {dimension_numbers = #tpu.dot_dimension_numbers<[1], [0], [0], [1], [0, 0, 1, 1], [], []>} : vector<160x127xf32>, vector<127x20xf32>, vector<160x20xf32> -> vector<160x20xf32>
    %43 = vector.extract_strided_slice %42 {offsets = [0, 0], sizes = [159, 20], strides = [1, 1]} : vector<160x20xf32> to vector<159x20xf32>
    %44 = vector.extract_strided_slice %42 {offsets = [1, 0], sizes = [159, 20], strides = [1, 1]} : vector<160x20xf32> to vector<159x20xf32>
    %45 = arith.maximumf %43, %44 : vector<159x20xf32>
    %c0_22 = arith.constant 0 : index
    %c0_23 = arith.constant 0 : index
    %46 = vector.load %arg7[%c0_22, %c0_23] : memref<80x159xf32, #tpu.memory_space<vmem>>, vector<80x159xf32>
    %cst_24 = arith.constant dense<0.000000e+00> : vector<80x20xf32>
    %47 = tpu.matmul %46, %45, %cst_24 {dimension_numbers = #tpu.dot_dimension_numbers<[1], [0], [0], [1], [0, 0, 1, 1], [], []>} : vector<80x159xf32>, vector<159x20xf32>, vector<80x20xf32> -> vector<80x20xf32>
    %48 = vector.extract_strided_slice %47 {offsets = [0, 0], sizes = [80, 4], strides = [1, 1]} : vector<80x20xf32> to vector<80x4xf32>
    %c0_25 = arith.constant 0 : index
    %c0_26 = arith.constant 0 : index
    %49 = vector.load %arg13[%c0_25, %c0_26] : memref<400x8xf32, #tpu.memory_space<vmem>>, vector<80x4xf32>
    tpu.vector_store %arg13[%c0_25, %c0_26], %48 {strides = array<i32>} : memref<400x8xf32, #tpu.memory_space<vmem>>, vector<80x4xf32>,
    %50 = vector.extract_strided_slice %47 {offsets = [0, 4], sizes = [80, 4], strides = [1, 1]} : vector<80x20xf32> to vector<80x4xf32>
    %c80 = arith.constant 80 : index
    %c0_27 = arith.constant 0 : index
    %51 = vector.load %arg13[%c80, %c0_27] : memref<400x8xf32, #tpu.memory_space<vmem>>, vector<80x4xf32>
    tpu.vector_store %arg13[%c80, %c0_27], %50 {strides = array<i32>} : memref<400x8xf32, #tpu.memory_space<vmem>>, vector<80x4xf32>,
    %52 = vector.extract_strided_slice %47 {offsets = [0, 8], sizes = [80, 4], strides = [1, 1]} : vector<80x20xf32> to vector<80x4xf32>
    %c160 = arith.constant 160 : index
    %c0_28 = arith.constant 0 : index
    %53 = vector.load %arg13[%c160, %c0_28] : memref<400x8xf32, #tpu.memory_space<vmem>>, vector<80x4xf32>
    tpu.vector_store %arg13[%c160, %c0_28], %52 {strides = array<i32>} : memref<400x8xf32, #tpu.memory_space<vmem>>, vector<80x4xf32>,
    %54 = vector.extract_strided_slice %47 {offsets = [0, 12], sizes = [80, 4], strides = [1, 1]} : vector<80x20xf32> to vector<80x4xf32>
    %c240 = arith.constant 240 : index
    %c0_29 = arith.constant 0 : index
    %55 = vector.load %arg13[%c240, %c0_29] : memref<400x8xf32, #tpu.memory_space<vmem>>, vector<80x4xf32>
    tpu.vector_store %arg13[%c240, %c0_29], %54 {strides = array<i32>} : memref<400x8xf32, #tpu.memory_space<vmem>>, vector<80x4xf32>,
    %56 = vector.extract_strided_slice %47 {offsets = [0, 16], sizes = [80, 4], strides = [1, 1]} : vector<80x20xf32> to vector<80x4xf32>
    %c320 = arith.constant 320 : index
    %c0_30 = arith.constant 0 : index
    %57 = vector.load %arg13[%c320, %c0_30] : memref<400x8xf32, #tpu.memory_space<vmem>>, vector<80x4xf32>
    tpu.vector_store %arg13[%c320, %c0_30], %56 {strides = array<i32>} : memref<400x8xf32, #tpu.memory_space<vmem>>, vector<80x4xf32>,
    %c0_31 = arith.constant 0 : index
    %c0_32 = arith.constant 0 : index
    %c128 = arith.constant 128 : index
    %58 = vector.load %arg1[%c0_31, %c0_32, %c128] : memref<1x32x256xbf16, #tpu.memory_space<vmem>>, vector<1x32x128xbf16>
    %59 = vector.shape_cast %58 : vector<1x32x128xbf16> to vector<32x128xbf16>
    %60 = tpu.concatenate %59, %59 in 1 : vector<32x128xbf16>, vector<32x128xbf16> -> vector<32x256xbf16>
    %61 = vector.extract_strided_slice %60 {offsets = [0, 1], sizes = [32, 128], strides = [1, 1]} : vector<32x256xbf16> to vector<32x128xbf16>
    %62 = vector.extract_strided_slice %60 {offsets = [0, 2], sizes = [32, 128], strides = [1, 1]} : vector<32x256xbf16> to vector<32x128xbf16>
    %63 = vector.extract_strided_slice %60 {offsets = [0, 3], sizes = [32, 128], strides = [1, 1]} : vector<32x256xbf16> to vector<32x128xbf16>
    %64 = vector.extract_strided_slice %60 {offsets = [0, 4], sizes = [32, 128], strides = [1, 1]} : vector<32x256xbf16> to vector<32x128xbf16>
    %65 = tpu.concatenate %59, %61, %62, %63, %64 in 0 : vector<32x128xbf16>, vector<32x128xbf16>, vector<32x128xbf16>, vector<32x128xbf16>, vector<32x128xbf16> -> vector<160x128xbf16>
    %c0_33 = arith.constant 0 : index
    %c0_34 = arith.constant 0 : index
    %66 = vector.load %arg2[%c0_33, %c0_34] : memref<168x160xbf16, #tpu.memory_space<vmem>>, vector<168x160xbf16>
    %cst_35 = arith.constant dense<0.000000e+00> : vector<168x128xf32>
    %67 = tpu.matmul %66, %65, %cst_35 {dimension_numbers = #tpu.dot_dimension_numbers<[1], [0], [0], [1], [0, 0, 1, 1], [], []>} : vector<168x160xbf16>, vector<160x128xbf16>, vector<168x128xf32> -> vector<168x128xf32>
    %68 = vector.broadcast %0 : vector<168x1xf32> to vector<168x128xf32>
    %69 = arith.addf %67, %68 : vector<168x128xf32>
    %70 = vector.extract_strided_slice %69 {offsets = [0, 0], sizes = [168, 127], strides = [1, 1]} : vector<168x128xf32> to vector<168x127xf32>
    %71 = vector.extract_strided_slice %69 {offsets = [0, 1], sizes = [168, 127], strides = [1, 1]} : vector<168x128xf32> to vector<168x127xf32>
    %72 = arith.maximumf %70, %71 : vector<168x127xf32>
    %c0_36 = arith.constant 0 : index
    %c0_37 = arith.constant 0 : index
    %73 = vector.load %arg3[%c0_36, %c0_37] : memref<127x128xf32, #tpu.memory_space<vmem>>, vector<127x128xf32>
    %cst_38 = arith.constant dense<0.000000e+00> : vector<168x128xf32>
    %74 = tpu.matmul %72, %73, %cst_38 {dimension_numbers = #tpu.dot_dimension_numbers<[1], [0], [0], [1], [0, 0, 1, 1], [], []>} : vector<168x127xf32>, vector<127x128xf32>, vector<168x128xf32> -> vector<168x128xf32>
    %75 = vector.extract_strided_slice %74 {offsets = [0, 0], sizes = [167, 128], strides = [1, 1]} : vector<168x128xf32> to vector<167x128xf32>
    %76 = vector.extract_strided_slice %74 {offsets = [1, 0], sizes = [167, 128], strides = [1, 1]} : vector<168x128xf32> to vector<167x128xf32>
    %77 = arith.maximumf %75, %76 : vector<167x128xf32>
    %c0_39 = arith.constant 0 : index
    %c0_40 = arith.constant 0 : index
    %78 = vector.load %arg4[%c0_39, %c0_40] : memref<96x167xf32, #tpu.memory_space<vmem>>, vector<96x167xf32>
    %cst_41 = arith.constant dense<0.000000e+00> : vector<96x128xf32>
    %79 = tpu.matmul %78, %77, %cst_41 {dimension_numbers = #tpu.dot_dimension_numbers<[1], [0], [0], [1], [0, 0, 1, 1], [], []>} : vector<96x167xf32>, vector<167x128xf32>, vector<96x128xf32> -> vector<96x128xf32>
    %80 = arith.truncf %79 : vector<96x128xf32> to vector<96x128xbf16>
    %81 = tpu.concatenate %80, %80 in 1 : vector<96x128xbf16>, vector<96x128xbf16> -> vector<96x256xbf16>
    %82 = vector.extract_strided_slice %81 {offsets = [0, 1], sizes = [96, 128], strides = [1, 1]} : vector<96x256xbf16> to vector<96x128xbf16>
    %83 = vector.extract_strided_slice %81 {offsets = [0, 2], sizes = [96, 128], strides = [1, 1]} : vector<96x256xbf16> to vector<96x128xbf16>
    %84 = vector.extract_strided_slice %81 {offsets = [0, 3], sizes = [96, 128], strides = [1, 1]} : vector<96x256xbf16> to vector<96x128xbf16>
    %85 = vector.extract_strided_slice %81 {offsets = [0, 4], sizes = [96, 128], strides = [1, 1]} : vector<96x256xbf16> to vector<96x128xbf16>
    %86 = tpu.concatenate %80, %82, %83, %84, %85 in 0 : vector<96x128xbf16>, vector<96x128xbf16>, vector<96x128xbf16>, vector<96x128xbf16>, vector<96x128xbf16> -> vector<480x128xbf16>
    %c0_42 = arith.constant 0 : index
    %c0_43 = arith.constant 0 : index
    %87 = vector.load %arg5[%c0_42, %c0_43] : memref<160x480xbf16, #tpu.memory_space<vmem>>, vector<160x480xbf16>
    %cst_44 = arith.constant dense<0.000000e+00> : vector<160x128xf32>
    %88 = tpu.matmul %87, %86, %cst_44 {dimension_numbers = #tpu.dot_dimension_numbers<[1], [0], [0], [1], [0, 0, 1, 1], [], []>} : vector<160x480xbf16>, vector<480x128xbf16>, vector<160x128xf32> -> vector<160x128xf32>
    %89 = vector.broadcast %1 : vector<160x1xf32> to vector<160x128xf32>
    %90 = arith.addf %88, %89 : vector<160x128xf32>
    %91 = vector.extract_strided_slice %90 {offsets = [0, 0], sizes = [160, 127], strides = [1, 1]} : vector<160x128xf32> to vector<160x127xf32>
    %92 = vector.extract_strided_slice %90 {offsets = [0, 1], sizes = [160, 127], strides = [1, 1]} : vector<160x128xf32> to vector<160x127xf32>
    %93 = arith.maximumf %91, %92 : vector<160x127xf32>
    %c0_45 = arith.constant 0 : index
    %c0_46 = arith.constant 0 : index
    %94 = vector.load %arg6[%c0_45, %c0_46] : memref<127x20xf32, #tpu.memory_space<vmem>>, vector<127x20xf32>
    %cst_47 = arith.constant dense<0.000000e+00> : vector<160x20xf32>
    %95 = tpu.matmul %93, %94, %cst_47 {dimension_numbers = #tpu.dot_dimension_numbers<[1], [0], [0], [1], [0, 0, 1, 1], [], []>} : vector<160x127xf32>, vector<127x20xf32>, vector<160x20xf32> -> vector<160x20xf32>
    %96 = vector.extract_strided_slice %95 {offsets = [0, 0], sizes = [159, 20], strides = [1, 1]} : vector<160x20xf32> to vector<159x20xf32>
    %97 = vector.extract_strided_slice %95 {offsets = [1, 0], sizes = [159, 20], strides = [1, 1]} : vector<160x20xf32> to vector<159x20xf32>
    %98 = arith.maximumf %96, %97 : vector<159x20xf32>
    %c0_48 = arith.constant 0 : index
    %c0_49 = arith.constant 0 : index
    %99 = vector.load %arg7[%c0_48, %c0_49] : memref<80x159xf32, #tpu.memory_space<vmem>>, vector<80x159xf32>
    %cst_50 = arith.constant dense<0.000000e+00> : vector<80x20xf32>
    %100 = tpu.matmul %99, %98, %cst_50 {dimension_numbers = #tpu.dot_dimension_numbers<[1], [0], [0], [1], [0, 0, 1, 1], [], []>} : vector<80x159xf32>, vector<159x20xf32>, vector<80x20xf32> -> vector<80x20xf32>
    %101 = vector.extract_strided_slice %100 {offsets = [0, 0], sizes = [80, 4], strides = [1, 1]} : vector<80x20xf32> to vector<80x4xf32>
    %c0_51 = arith.constant 0 : index
    %c4 = arith.constant 4 : index
    %102 = vector.load %arg13[%c0_51, %c4] : memref<400x8xf32, #tpu.memory_space<vmem>>, vector<80x4xf32>
    tpu.vector_store %arg13[%c0_51, %c4], %101 {strides = array<i32>} : memref<400x8xf32, #tpu.memory_space<vmem>>, vector<80x4xf32>,
    %103 = vector.extract_strided_slice %100 {offsets = [0, 4], sizes = [80, 4], strides = [1, 1]} : vector<80x20xf32> to vector<80x4xf32>
    %c80_52 = arith.constant 80 : index
    %c4_53 = arith.constant 4 : index
    %104 = vector.load %arg13[%c80_52, %c4_53] : memref<400x8xf32, #tpu.memory_space<vmem>>, vector<80x4xf32>
    tpu.vector_store %arg13[%c80_52, %c4_53], %103 {strides = array<i32>} : memref<400x8xf32, #tpu.memory_space<vmem>>, vector<80x4xf32>,
    %105 = vector.extract_strided_slice %100 {offsets = [0, 8], sizes = [80, 4], strides = [1, 1]} : vector<80x20xf32> to vector<80x4xf32>
    %c160_54 = arith.constant 160 : index
    %c4_55 = arith.constant 4 : index
    %106 = vector.load %arg13[%c160_54, %c4_55] : memref<400x8xf32, #tpu.memory_space<vmem>>, vector<80x4xf32>
    tpu.vector_store %arg13[%c160_54, %c4_55], %105 {strides = array<i32>} : memref<400x8xf32, #tpu.memory_space<vmem>>, vector<80x4xf32>,
    %107 = vector.extract_strided_slice %100 {offsets = [0, 12], sizes = [80, 4], strides = [1, 1]} : vector<80x20xf32> to vector<80x4xf32>
    %c240_56 = arith.constant 240 : index
    %c4_57 = arith.constant 4 : index
    %108 = vector.load %arg13[%c240_56, %c4_57] : memref<400x8xf32, #tpu.memory_space<vmem>>, vector<80x4xf32>
    tpu.vector_store %arg13[%c240_56, %c4_57], %107 {strides = array<i32>} : memref<400x8xf32, #tpu.memory_space<vmem>>, vector<80x4xf32>,
    %109 = vector.extract_strided_slice %100 {offsets = [0, 16], sizes = [80, 4], strides = [1, 1]} : vector<80x20xf32> to vector<80x4xf32>
    %c320_58 = arith.constant 320 : index
    %c4_59 = arith.constant 4 : index
    %110 = vector.load %arg13[%c320_58, %c4_59] : memref<400x8xf32, #tpu.memory_space<vmem>>, vector<80x4xf32>
    tpu.vector_store %arg13[%c320_58, %c4_59], %109 {strides = array<i32>} : memref<400x8xf32, #tpu.memory_space<vmem>>, vector<80x4xf32>,
    %c0_60 = arith.constant 0 : index
    %c0_61 = arith.constant 0 : index
    %111 = vector.load %arg13[%c0_60, %c0_61] : memref<400x8xf32, #tpu.memory_space<vmem>>, vector<400x8xf32>
    %112 = arith.truncf %111 : vector<400x8xf32> to vector<400x8xbf16>
    %c0_62 = arith.constant 0 : index
    %c0_63 = arith.constant 0 : index
    %113 = vector.load %arg8[%c0_62, %c0_63] : memref<120x400xbf16, #tpu.memory_space<vmem>>, vector<120x400xbf16>
    %cst_64 = arith.constant dense<0.000000e+00> : vector<120x8xf32>
    %114 = tpu.matmul %113, %112, %cst_64 {dimension_numbers = #tpu.dot_dimension_numbers<[1], [0], [0], [1], [0, 0, 1, 1], [], []>} : vector<120x400xbf16>, vector<400x8xbf16>, vector<120x8xf32> -> vector<120x8xf32>
    %115 = vector.broadcast %2 : vector<120x1xf32> to vector<120x8xf32>
    %116 = arith.addf %114, %115 : vector<120x8xf32>
    %c0_65 = arith.constant 0 : index
    %c0_66 = arith.constant 0 : index
    %117 = vector.load %arg9[%c0_65, %c0_66] : memref<84x120xbf16, #tpu.memory_space<vmem>>, vector<84x120xbf16>
    %118 = arith.truncf %116 : vector<120x8xf32> to vector<120x8xbf16>
    %cst_67 = arith.constant dense<0.000000e+00> : vector<84x8xf32>
    %119 = tpu.matmul %117, %118, %cst_67 {dimension_numbers = #tpu.dot_dimension_numbers<[1], [0], [0], [1], [0, 0, 1, 1], [], []>} : vector<84x120xbf16>, vector<120x8xbf16>, vector<84x8xf32> -> vector<84x8xf32>
    %120 = vector.broadcast %3 : vector<84x1xf32> to vector<84x8xf32>
    %121 = arith.addf %119, %120 : vector<84x8xf32>
    %c0_68 = arith.constant 0 : index
    %c0_69 = arith.constant 0 : index
    %122 = vector.load %arg10[%c0_68, %c0_69] : memref<10x84xbf16, #tpu.memory_space<vmem>>, vector<10x84xbf16>
    %123 = arith.truncf %121 : vector<84x8xf32> to vector<84x8xbf16>
    %cst_70 = arith.constant dense<0.000000e+00> : vector<10x8xf32>
    %124 = tpu.matmul %122, %123, %cst_70 {dimension_numbers = #tpu.dot_dimension_numbers<[1], [0], [0], [1], [0, 0, 1, 1], [], []>} : vector<10x84xbf16>, vector<84x8xbf16>, vector<10x8xf32> -> vector<10x8xf32>
    %125 = vector.broadcast %4 : vector<10x1xf32> to vector<10x8xf32>
    %126 = arith.addf %124, %125 : vector<10x8xf32>
    %c0_71 = arith.constant 0 : index
    %c0_72 = arith.constant 0 : index
    %c0_73 = arith.constant 0 : index
    %127 = vector.load %arg12[%c0_71, %c0_72, %c0_73] : memref<1x10x8xf32, #tpu.memory_space<vmem>>, vector<1x10x8xf32>
    %128 = vector.shape_cast %127 : vector<1x10x8xf32> to vector<10x8xf32>
    %129 = vector.shape_cast %126 : vector<10x8xf32> to vector<1x10x8xf32>
    tpu.vector_store %arg12[%c0_71, %c0_72, %c0_73], %129 {strides = array<i32>} : memref<1x10x8xf32, #tpu.memory_space<vmem>>, vector<1x10x8xf32>,
    return
  }
  func.func @transform_0(%arg0: i32) -> (i32, i32, i32) {
    %c0_i32 = arith.constant 0 : i32
    %c0_i32_0 = arith.constant 0 : i32
    %c0_i32_1 = arith.constant 0 : i32
    return %arg0, %c0_i32, %c0_i32_0 : i32, i32, i32
  }
  func.func @transform_1(%arg0: i32) -> (i32, i32) {
    %c0_i32 = arith.constant 0 : i32
    %c0_i32_0 = arith.constant 0 : i32
    %c0_i32_1 = arith.constant 0 : i32
    return %c0_i32, %c0_i32_0 : i32, i32
  }
  func.func @transform_2(%arg0: i32) -> (i32, i32) {
    %c0_i32 = arith.constant 0 : i32
    %c0_i32_0 = arith.constant 0 : i32
    %c0_i32_1 = arith.constant 0 : i32
    return %c0_i32, %c0_i32_0 : i32, i32
  }
  func.func @transform_3(%arg0: i32) -> (i32, i32) {
    %c0_i32 = arith.constant 0 : i32
    %c0_i32_0 = arith.constant 0 : i32
    %c0_i32_1 = arith.constant 0 : i32
    return %c0_i32, %c0_i32_0 : i32, i32
  }
  func.func @transform_4(%arg0: i32) -> (i32, i32) {
    %c0_i32 = arith.constant 0 : i32
    %c0_i32_0 = arith.constant 0 : i32
    %c0_i32_1 = arith.constant 0 : i32
    return %c0_i32, %c0_i32_0 : i32, i32
  }
  func.func @transform_5(%arg0: i32) -> (i32, i32) {
    %c0_i32 = arith.constant 0 : i32
    %c0_i32_0 = arith.constant 0 : i32
    %c0_i32_1 = arith.constant 0 : i32
    return %c0_i32, %c0_i32_0 : i32, i32
  }
  func.func @transform_6(%arg0: i32) -> (i32, i32) {
    %c0_i32 = arith.constant 0 : i32
    %c0_i32_0 = arith.constant 0 : i32
    %c0_i32_1 = arith.constant 0 : i32
    return %c0_i32, %c0_i32_0 : i32, i32
  }
  func.func @transform_7(%arg0: i32) -> (i32, i32) {
    %c0_i32 = arith.constant 0 : i32
    %c0_i32_0 = arith.constant 0 : i32
    %c0_i32_1 = arith.constant 0 : i32
    return %c0_i32, %c0_i32_0 : i32, i32
  }
  func.func @transform_8(%arg0: i32) -> (i32, i32) {
    %c0_i32 = arith.constant 0 : i32
    %c0_i32_0 = arith.constant 0 : i32
    %c0_i32_1 = arith.constant 0 : i32
    return %c0_i32, %c0_i32_0 : i32, i32
  }
  func.func @transform_9(%arg0: i32) -> (i32, i32) {
    %c0_i32 = arith.constant 0 : i32
    %c0_i32_0 = arith.constant 0 : i32
    %c0_i32_1 = arith.constant 0 : i32
    return %c0_i32, %c0_i32_0 : i32, i32
  }
  func.func @transform_10(%arg0: i32) -> (i32, i32) {
    %c0_i32 = arith.constant 0 : i32
    %c0_i32_0 = arith.constant 0 : i32
    %c0_i32_1 = arith.constant 0 : i32
    return %c0_i32, %c0_i32_0 : i32, i32
  }
  func.func @transform_11(%arg0: i32) -> (i32, i32, i32) {
    %c0_i32 = arith.constant 0 : i32
    %c0_i32_0 = arith.constant 0 : i32
    %c0_i32_1 = arith.constant 0 : i32
    return %arg0, %c0_i32, %c0_i32_0 : i32, i32, i32
  }
}

</mosaic_0001>

<llo_original>
// kernel: lenet_forward.1
$region0: #{lenet_forward.1}
  #allocation0 [shape = 'u32[]', space=smem, size = 0x4, offset = 0x4, fixed_abs, tag = 'smem constant byte address 0x4 - core index']
  #allocation1 [shape = 'u32[144,128]{1,0:T(1,128)}', space=vmem, size = 0x12000, scoped, tag = 'internal scratch']
  #allocation2 [shape = 'f32[400,8]{1,0:T(8,128)}', space=vmem, size = 0x32000, scoped, tag = 'scratch operand']
  %s0 = inlined_call_operand.vmem [shape: bf16[2,32,256], index: 0, kind: input, shape index: {}]
  %s1 = inlined_call_operand.vmem [shape: bf16[168,160], index: 1, kind: input, shape index: {}]
  %s2 = inlined_call_operand.vmem [shape: f32[127,128], index: 2, kind: input, shape index: {}]
  %s3 = inlined_call_operand.vmem [shape: f32[96,167], index: 3, kind: input, shape index: {}]
  %s4 = inlined_call_operand.vmem [shape: bf16[160,480], index: 4, kind: input, shape index: {}]
  %s5 = inlined_call_operand.vmem [shape: f32[127,20], index: 5, kind: input, shape index: {}]
  %s6 = inlined_call_operand.vmem [shape: f32[80,159], index: 6, kind: input, shape index: {}]
  %s7 = inlined_call_operand.vmem [shape: bf16[120,400], index: 7, kind: input, shape index: {}]
  %s8 = inlined_call_operand.vmem [shape: bf16[84,120], index: 8, kind: input, shape index: {}]
  %s9 = inlined_call_operand.vmem [shape: bf16[10,84], index: 9, kind: input, shape index: {}]
  %s10 = inlined_call_operand.vmem [shape: f32[552,1], index: 10, kind: input, shape index: {}]
  %s11 = inlined_call_operand.vmem [shape: f32[2,10,8], index: 11, kind: output, shape index: {}]
  %s12 = sld [smem:[#allocation0]]
  $region77: #{lenet_forward.1} parent=0
    _
  %s14 = ssub.s32 1, %s12
  %s15 = scalar_select 0, %s14, %s12
  loop: start=0, step=1, limit=4
  $region2: #{lenet_forward.1} parent=0 // loop_pre_header
    _
  $region3: #{lenet_forward.1} parent=0 // loop_header
    %s17 = sphi 0, %s21
    %p18 = scmp.ge.s32.totalorder %s17, 4
    %s27 = sphi 0, %s29
    %s30 = sphi 0, %s27
    %s31 = sphi 0, %s30
    %s47 = sphi 0, %s31
    %s51 = sphi 0, %s51
    %s53 = sphi 0, %s51
    %s54 = sphi 0, %s53
    %s68 = sphi 0, %s54
    %s72 = sphi 0, %s72
    %s74 = sphi 0, %s72
    %s75 = sphi 0, %s74
    %s89 = sphi 0, %s75
    %s93 = sphi 0, %s93
    %s95 = sphi 0, %s93
    %s96 = sphi 0, %s95
    %s110 = sphi 0, %s96
    %s114 = sphi 0, %s114
    %s116 = sphi 0, %s114
    %s117 = sphi 0, %s116
    %s131 = sphi 0, %s117
    %s135 = sphi 0, %s135
    %s137 = sphi 0, %s135
    %s138 = sphi 0, %s137
    %s152 = sphi 0, %s138
    %s156 = sphi 0, %s156
    %s158 = sphi 0, %s156
    %s159 = sphi 0, %s158
    %s173 = sphi 0, %s159
    %s177 = sphi 0, %s177
    %s179 = sphi 0, %s177
    %s180 = sphi 0, %s179
    %s194 = sphi 0, %s180
    %s198 = sphi 0, %s198
    %s200 = sphi 0, %s198
    %s201 = sphi 0, %s200
    %s215 = sphi 0, %s201
    %s219 = sphi 0, %s219
    %s221 = sphi 0, %s219
    %s222 = sphi 0, %s221
    %s236 = sphi 0, %s222
    %s240 = sphi 0, %s240
    %s242 = sphi 0, %s240
    %s243 = sphi 0, %s242
    %s257 = sphi 0, %s243
    %s263 = sphi 0, %s265
    %s266 = sphi 0, %s263
    %s267 = sphi 0, %s266
    %s283 = sphi 0, %s267
  $region4: #{lenet_forward.1} parent=0 // loop_header_branch
    %20 = sbr.rel (%p18) target = $region8
  $region5: #{lenet_forward.1} parent=0 // loop_body
    %s22 = ssub.s32 %s17, 1
    %s23 = ssub.s32 %s17, 2
    %s24 = sadd.s32 %s17, 1
    %s25 = ssub.s32 %s17, %s24
    %p26 = scmp.eq.s32.totalorder %s25, 0
    %s28 = sadd.s32 %s27, 1
    %s29 = scalar_select %p26, %s27, %s28
    %p32 = pneg %p26
    %p33 = scmp.eq.s32.totalorder %s17, 1
    %p34 = por %p32, %p33
    %p35 = scmp.ne.s32.totalorder %s27, %s30
    %p36 = scmp.eq.s32.totalorder %s17, 0
    %p37 = por %p35, %p36
    %p38 = scmp.ne.s32.totalorder %s27, %s30
    %p39 = scmp.eq.s32.totalorder %s22, 1
    %p40 = por %p38, %p39
    %p41 = scmp.ne.s32.totalorder %s30, %s31
    %p42 = scmp.eq.s32.totalorder %s22, 0
    %p43 = por %p41, %p42
    %p44 = scmp.ne.s32.totalorder %s30, %s31
    %p45 = scmp.eq.s32.totalorder %s23, 1
    %p46 = por %p44, %p45
    %p48 = scmp.ne.s32.totalorder %s31, %s47
    %p49 = scmp.eq.s32.totalorder %s23, 0
    %p50 = por %p48, %p49
    %s52 = sadd.s32 %s51, 1
    %p55 = scmp.eq.s32.totalorder %s17, 1
    %p56 = scmp.ne.s32.totalorder %s51, %s53
    %p57 = scmp.eq.s32.totalorder %s17, 0
    %p58 = por %p56, %p57
    %p59 = scmp.ne.s32.totalorder %s51, %s53
    %p60 = scmp.eq.s32.totalorder %s22, 1
    %p61 = por %p59, %p60
    %p62 = scmp.ne.s32.totalorder %s53, %s54
    %p63 = scmp.eq.s32.totalorder %s22, 0
    %p64 = por %p62, %p63
    %p65 = scmp.ne.s32.totalorder %s53, %s54
    %p66 = scmp.eq.s32.totalorder %s23, 1
    %p67 = por %p65, %p66
    %p69 = scmp.ne.s32.totalorder %s54, %s68
    %p70 = scmp.eq.s32.totalorder %s23, 0
    %p71 = por %p69, %p70
    %s73 = sadd.s32 %s72, 1
    %p76 = scmp.eq.s32.totalorder %s17, 1
    %p77 = scmp.ne.s32.totalorder %s72, %s74
    %p78 = scmp.eq.s32.totalorder %s17, 0
    %p79 = por %p77, %p78
    %p80 = scmp.ne.s32.totalorder %s72, %s74
    %p81 = scmp.eq.s32.totalorder %s22, 1
    %p82 = por %p80, %p81
    %p83 = scmp.ne.s32.totalorder %s74, %s75
    %p84 = scmp.eq.s32.totalorder %s22, 0
    %p85 = por %p83, %p84
    %p86 = scmp.ne.s32.totalorder %s74, %s75
    %p87 = scmp.eq.s32.totalorder %s23, 1
    %p88 = por %p86, %p87
    %p90 = scmp.ne.s32.totalorder %s75, %s89
    %p91 = scmp.eq.s32.totalorder %s23, 0
    %p92 = por %p90, %p91
    %s94 = sadd.s32 %s93, 1
    %p97 = scmp.eq.s32.totalorder %s17, 1
    %p98 = scmp.ne.s32.totalorder %s93, %s95
    %p99 = scmp.eq.s32.totalorder %s17, 0
    %p100 = por %p98, %p99
    %p101 = scmp.ne.s32.totalorder %s93, %s95
    %p102 = scmp.eq.s32.totalorder %s22, 1
    %p103 = por %p101, %p102
    %p104 = scmp.ne.s32.totalorder %s95, %s96
    %p105 = scmp.eq.s32.totalorder %s22, 0
    %p106 = por %p104, %p105
    %p107 = scmp.ne.s32.totalorder %s95, %s96
    %p108 = scmp.eq.s32.totalorder %s23, 1
    %p109 = por %p107, %p108
    %p111 = scmp.ne.s32.totalorder %s96, %s110
    %p112 = scmp.eq.s32.totalorder %s23, 0
    %p113 = por %p111, %p112
    %s115 = sadd.s32 %s114, 1
    %p118 = scmp.eq.s32.totalorder %s17, 1
    %p119 = scmp.ne.s32.totalorder %s114, %s116
    %p120 = scmp.eq.s32.totalorder %s17, 0
    %p121 = por %p119, %p120
    %p122 = scmp.ne.s32.totalorder %s114, %s116
    %p123 = scmp.eq.s32.totalorder %s22, 1
    %p124 = por %p122, %p123
    %p125 = scmp.ne.s32.totalorder %s116, %s117
    %p126 = scmp.eq.s32.totalorder %s22, 0
    %p127 = por %p125, %p126
    %p128 = scmp.ne.s32.totalorder %s116, %s117
    %p129 = scmp.eq.s32.totalorder %s23, 1
    %p130 = por %p128, %p129
    %p132 = scmp.ne.s32.totalorder %s117, %s131
    %p133 = scmp.eq.s32.totalorder %s23, 0
    %p134 = por %p132, %p133
    %s136 = sadd.s32 %s135, 1
    %p139 = scmp.eq.s32.totalorder %s17, 1
    %p140 = scmp.ne.s32.totalorder %s135, %s137
    %p141 = scmp.eq.s32.totalorder %s17, 0
    %p142 = por %p140, %p141
    %p143 = scmp.ne.s32.totalorder %s135, %s137
    %p144 = scmp.eq.s32.totalorder %s22, 1
    %p145 = por %p143, %p144
    %p146 = scmp.ne.s32.totalorder %s137, %s138
    %p147 = scmp.eq.s32.totalorder %s22, 0
    %p148 = por %p146, %p147
    %p149 = scmp.ne.s32.totalorder %s137, %s138
    %p150 = scmp.eq.s32.totalorder %s23, 1
    %p151 = por %p149, %p150
    %p153 = scmp.ne.s32.totalorder %s138, %s152
    %p154 = scmp.eq.s32.totalorder %s23, 0
    %p155 = por %p153, %p154
    %s157 = sadd.s32 %s156, 1
    %p160 = scmp.eq.s32.totalorder %s17, 1
    %p161 = scmp.ne.s32.totalorder %s156, %s158
    %p162 = scmp.eq.s32.totalorder %s17, 0
    %p163 = por %p161, %p162
    %p164 = scmp.ne.s32.totalorder %s156, %s158
    %p165 = scmp.eq.s32.totalorder %s22, 1
    %p166 = por %p164, %p165
    %p167 = scmp.ne.s32.totalorder %s158, %s159
    %p168 = scmp.eq.s32.totalorder %s22, 0
    %p169 = por %p167, %p168
    %p170 = scmp.ne.s32.totalorder %s158, %s159
    %p171 = scmp.eq.s32.totalorder %s23, 1
    %p172 = por %p170, %p171
    %p174 = scmp.ne.s32.totalorder %s159, %s173
    %p175 = scmp.eq.s32.totalorder %s23, 0
    %p176 = por %p174, %p175
    %s178 = sadd.s32 %s177, 1
    %p181 = scmp.eq.s32.totalorder %s17, 1
    %p182 = scmp.ne.s32.totalorder %s177, %s179
    %p183 = scmp.eq.s32.totalorder %s17, 0
    %p184 = por %p182, %p183
    %p185 = scmp.ne.s32.totalorder %s177, %s179
    %p186 = scmp.eq.s32.totalorder %s22, 1
    %p187 = por %p185, %p186
    %p188 = scmp.ne.s32.totalorder %s179, %s180
    %p189 = scmp.eq.s32.totalorder %s22, 0
    %p190 = por %p188, %p189
    %p191 = scmp.ne.s32.totalorder %s179, %s180
    %p192 = scmp.eq.s32.totalorder %s23, 1
    %p193 = por %p191, %p192
    %p195 = scmp.ne.s32.totalorder %s180, %s194
    %p196 = scmp.eq.s32.totalorder %s23, 0
    %p197 = por %p195, %p196
    %s199 = sadd.s32 %s198, 1
    %p202 = scmp.eq.s32.totalorder %s17, 1
    %p203 = scmp.ne.s32.totalorder %s198, %s200
    %p204 = scmp.eq.s32.totalorder %s17, 0
    %p205 = por %p203, %p204
    %p206 = scmp.ne.s32.totalorder %s198, %s200
    %p207 = scmp.eq.s32.totalorder %s22, 1
    %p208 = por %p206, %p207
    %p209 = scmp.ne.s32.totalorder %s200, %s201
    %p210 = scmp.eq.s32.totalorder %s22, 0
    %p211 = por %p209, %p210
    %p212 = scmp.ne.s32.totalorder %s200, %s201
    %p213 = scmp.eq.s32.totalorder %s23, 1
    %p214 = por %p212, %p213
    %p216 = scmp.ne.s32.totalorder %s201, %s215
    %p217 = scmp.eq.s32.totalorder %s23, 0
    %p218 = por %p216, %p217
    %s220 = sadd.s32 %s219, 1
    %p223 = scmp.eq.s32.totalorder %s17, 1
    %p224 = scmp.ne.s32.totalorder %s219, %s221
    %p225 = scmp.eq.s32.totalorder %s17, 0
    %p226 = por %p224, %p225
    %p227 = scmp.ne.s32.totalorder %s219, %s221
    %p228 = scmp.eq.s32.totalorder %s22, 1
    %p229 = por %p227, %p228
    %p230 = scmp.ne.s32.totalorder %s221, %s222
    %p231 = scmp.eq.s32.totalorder %s22, 0
    %p232 = por %p230, %p231
    %p233 = scmp.ne.s32.totalorder %s221, %s222
    %p234 = scmp.eq.s32.totalorder %s23, 1
    %p235 = por %p233, %p234
    %p237 = scmp.ne.s32.totalorder %s222, %s236
    %p238 = scmp.eq.s32.totalorder %s23, 0
    %p239 = por %p237, %p238
    %s241 = sadd.s32 %s240, 1
    %p244 = scmp.eq.s32.totalorder %s17, 1
    %p245 = scmp.ne.s32.totalorder %s240, %s242
    %p246 = scmp.eq.s32.totalorder %s17, 0
    %p247 = por %p245, %p246
    %p248 = scmp.ne.s32.totalorder %s240, %s242
    %p249 = scmp.eq.s32.totalorder %s22, 1
    %p250 = por %p248, %p249
    %p251 = scmp.ne.s32.totalorder %s242, %s243
    %p252 = scmp.eq.s32.totalorder %s22, 0
    %p253 = por %p251, %p252
    %p254 = scmp.ne.s32.totalorder %s242, %s243
    %p255 = scmp.eq.s32.totalorder %s23, 1
    %p256 = por %p254, %p255
    %p258 = scmp.ne.s32.totalorder %s243, %s257
    %p259 = scmp.eq.s32.totalorder %s23, 0
    %p260 = por %p258, %p259
    %s261 = ssub.s32 %s17, %s24
    %p262 = scmp.eq.s32.totalorder %s261, 0
    %s264 = sadd.s32 %s263, 1
    %s265 = scalar_select %p262, %s263, %s264
    %p268 = pneg %p262
    %p269 = scmp.eq.s32.totalorder %s17, 1
    %p270 = por %p268, %p269
    %p271 = scmp.ne.s32.totalorder %s263, %s266
    %p272 = scmp.eq.s32.totalorder %s17, 0
    %p273 = por %p271, %p272
    %p274 = scmp.ne.s32.totalorder %s263, %s266
    %p275 = scmp.eq.s32.totalorder %s22, 1
    %p276 = por %p274, %p275
    %p277 = scmp.ne.s32.totalorder %s266, %s267
    %p278 = scmp.eq.s32.totalorder %s22, 0
    %p279 = por %p277, %p278
    %p280 = scmp.ne.s32.totalorder %s266, %s267
    %p281 = scmp.eq.s32.totalorder %s23, 1
    %p282 = por %p280, %p281
    %p284 = scmp.ne.s32.totalorder %s267, %s283
    %p285 = scmp.eq.s32.totalorder %s23, 0
    %p286 = por %p284, %p285
    %p287 = scmp.le.s32.totalorder 1, %s17
    %p288 = scmp.lt.s32.totalorder %s17, 3
    %p289 = pnand %p287, %p288
    %p290 = pneg %p289
    // Predicated region
    $region9: #{lenet_forward.1} parent=5 // pred_check
      _
    $region10: #{lenet_forward.1} parent=5 // pred_check_branch
      %292 = sbr.rel (%p289) target = $region12
    $region11: #{lenet_forward.1} parent=5 // pred_region
      %s293 = ssub.s32 %s17, 1
      // Predicated region
      $region13: #{lenet_forward.1} parent=11 // pred_check
        %p294 = pneg %p64
      $region14: #{lenet_forward.1} parent=11 // pred_check_branch
        %296 = sbr.rel (%p294) target = $region16
      $region15: #{lenet_forward.1} parent=11 // pred_region
        _
      $region16: #{lenet_forward.1} parent=11 // pred_fallthru
        _
      // Predicated region
      $region17: #{lenet_forward.1} parent=11 // pred_check
        %p297 = pneg %p85
      $region18: #{lenet_forward.1} parent=11 // pred_check_branch
        %299 = sbr.rel (%p297) target = $region20
      $region19: #{lenet_forward.1} parent=11 // pred_region
        _
      $region20: #{lenet_forward.1} parent=11 // pred_fallthru
        _
      // Predicated region
      $region21: #{lenet_forward.1} parent=11 // pred_check
        %p300 = pneg %p106
      $region22: #{lenet_forward.1} parent=11 // pred_check_branch
        %302 = sbr.rel (%p300) target = $region24
      $region23: #{lenet_forward.1} parent=11 // pred_region
        _
      $region24: #{lenet_forward.1} parent=11 // pred_fallthru
        _
      // Predicated region
      $region25: #{lenet_forward.1} parent=11 // pred_check
        %p303 = pneg %p127
      $region26: #{lenet_forward.1} parent=11 // pred_check_branch
        %305 = sbr.rel (%p303) target = $region28
      $region27: #{lenet_forward.1} parent=11 // pred_region
        _
      $region28: #{lenet_forward.1} parent=11 // pred_fallthru
        _
      // Predicated region
      $region29: #{lenet_forward.1} parent=11 // pred_check
        %p306 = pneg %p148
      $region30: #{lenet_forward.1} parent=11 // pred_check_branch
        %308 = sbr.rel (%p306) target = $region32
      $region31: #{lenet_forward.1} parent=11 // pred_region
        _
      $region32: #{lenet_forward.1} parent=11 // pred_fallthru
        _
      // Predicated region
      $region33: #{lenet_forward.1} parent=11 // pred_check
        %p309 = pneg %p169
      $region34: #{lenet_forward.1} parent=11 // pred_check_branch
        %311 = sbr.rel (%p309) target = $region36
      $region35: #{lenet_forward.1} parent=11 // pred_region
        _
      $region36: #{lenet_forward.1} parent=11 // pred_fallthru
        _
      // Predicated region
      $region37: #{lenet_forward.1} parent=11 // pred_check
        %p312 = pneg %p190
      $region38: #{lenet_forward.1} parent=11 // pred_check_branch
        %314 = sbr.rel (%p312) target = $region40
      $region39: #{lenet_forward.1} parent=11 // pred_region
        _
      $region40: #{lenet_forward.1} parent=11 // pred_fallthru
        _
      // Predicated region
      $region41: #{lenet_forward.1} parent=11 // pred_check
        %p315 = pneg %p211
      $region42: #{lenet_forward.1} parent=11 // pred_check_branch
        %317 = sbr.rel (%p315) target = $region44
      $region43: #{lenet_forward.1} parent=11 // pred_region
        _
      $region44: #{lenet_forward.1} parent=11 // pred_fallthru
        _
      // Predicated region
      $region45: #{lenet_forward.1} parent=11 // pred_check
        %p318 = pneg %p232
      $region46: #{lenet_forward.1} parent=11 // pred_check_branch
        %320 = sbr.rel (%p318) target = $region48
      $region47: #{lenet_forward.1} parent=11 // pred_region
        _
      $region48: #{lenet_forward.1} parent=11 // pred_fallthru
        _
      // Predicated region
      $region49: #{lenet_forward.1} parent=11 // pred_check
        %p321 = pneg %p253
      $region50: #{lenet_forward.1} parent=11 // pred_check_branch
        %323 = sbr.rel (%p321) target = $region52
      $region51: #{lenet_forward.1} parent=11 // pred_region
        _
      $region52: #{lenet_forward.1} parent=11 // pred_fallthru
        _
    $region12: #{lenet_forward.1} parent=5 // pred_fallthru
      _
    %p324 = scmp.lt.s32.totalorder %s17, 2
    // Predicated region
    $region53: #{lenet_forward.1} parent=5 // pred_check
      %p325 = pneg %p324
    $region54: #{lenet_forward.1} parent=5 // pred_check_branch
      %327 = sbr.rel (%p325) target = $region56
    $region55: #{lenet_forward.1} parent=5 // pred_region
      // Predicated region
      $region57: #{lenet_forward.1} parent=55 // pred_check
        %p328 = pneg %p37
      $region58: #{lenet_forward.1} parent=55 // pred_check_branch
        %330 = sbr.rel (%p328) target = $region60
      $region59: #{lenet_forward.1} parent=55 // pred_region
        %p331 = scmp.lt.s32.totalorder %s17, 1
        %s332 = scalar_select %p331, %s17, 1
        %s333 = smul.addr %s332, 8
        %s334 = smul.addr %s333, 4
        %s335 = scalar_lea.vmem %s0, %s334
      $region60: #{lenet_forward.1} parent=55 // pred_fallthru
        _
    $region56: #{lenet_forward.1} parent=5 // pred_fallthru
      _
    %p336 = scmp.le.s32.totalorder 1, %s17
    %p337 = scmp.lt.s32.totalorder %s17, 3
    %p338 = pnand %p336, %p337
    %p339 = pneg %p338
    // Predicated region
    $region61: #{lenet_forward.1} parent=5 // pred_check
      _
    $region62: #{lenet_forward.1} parent=5 // pred_check_branch
      %341 = sbr.rel (%p338) target = $region64
    $region63: #{lenet_forward.1} parent=5 // pred_region
      %s342 = ssub.s32 %s17, 1
      %p343 = scmp.lt.s32.totalorder %s22, 1
      %s344 = scalar_select %p343, %s22, 1
      %s345 = smul.addr %s344, 8
      %s346 = smul.addr %s345, 4
      %s347 = scalar_lea.vmem %s0, %s346
      %p348 = pneg %p43
      %p349 = pneg %p40
      %p350 = pneg %p64
      %p351 = pneg %p61
      %p352 = pneg %p85
      %p353 = pneg %p82
      %p354 = pneg %p106
      %p355 = pneg %p103
      %p356 = pneg %p127
      %p357 = pneg %p124
      %p358 = pneg %p148
      %p359 = pneg %p145
      %p360 = pneg %p169
      %p361 = pneg %p166
      %p362 = pneg %p190
      %p363 = pneg %p187
      %p364 = pneg %p211
      %p365 = pneg %p208
      %p366 = pneg %p232
      %p367 = pneg %p229
      %p368 = pneg %p253
      %p369 = pneg %p250
      %p370 = pneg %p279
      %p371 = pneg %p276
      %p372 = scmp.lt.s32.totalorder %s22, 1
      %s373 = scalar_select %p372, %s22, 1
      %s374 = smul.addr %s373, 2
      %s375 = smul.addr %s374, 8
      %s376 = scalar_lea.vmem %s11, %s375
      %p377 = scmp.lt.s32.totalorder %s22, 1
      %s378 = scalar_select %p377, %s22, 1
      %s379 = smul.addr %s378, 8
      %s380 = smul.addr %s379, 4
      %s381 = scalar_lea.vmem %s0, %s380
      %p382 = scmp.lt.s32.totalorder %s22, 1
      %s383 = scalar_select %p382, %s22, 1
      %s384 = smul.addr %s383, 2
      %s385 = smul.addr %s384, 8
      %s386 = scalar_lea.vmem %s11, %s385
      %v388 = vld [vmem:[%s10] sm:$0xff]
      %v389 = vld [vmem:[%s10 + $0x8] sm:$0xff]
      %v390 = vld [vmem:[%s10 + $0x10] sm:$0xff]
      %v391 = vld [vmem:[%s10 + $0x18] sm:$0xff]
      %v392 = vld [vmem:[%s10 + $0x20] sm:$0xff]
      %v393 = vld [vmem:[%s10 + $0x28] sm:$0xff]
      %v394 = vld [vmem:[%s10 + $0x30] sm:$0xff]
      %v395 = vld [vmem:[%s10 + $0x38] sm:$0xff]
      %v396 = vld [vmem:[%s10 + $0x40] sm:$0xff]
      %v397 = vld [vmem:[%s10 + $0x48] sm:$0xff]
      %v398 = vld [vmem:[%s10 + $0x50] sm:$0xff]
      %v399 = vld [vmem:[%s10 + $0x58] sm:$0xff]
      %v400 = vld [vmem:[%s10 + $0x60] sm:$0xff]
      %v401 = vld [vmem:[%s10 + $0x68] sm:$0xff]
      %v402 = vld [vmem:[%s10 + $0x70] sm:$0xff]
      %v403 = vld [vmem:[%s10 + $0x78] sm:$0xff]
      %v404 = vld [vmem:[%s10 + $0x80] sm:$0xff]
      %v405 = vld [vmem:[%s10 + $0x88] sm:$0xff]
      %v406 = vld [vmem:[%s10 + $0x90] sm:$0xff]
      %v407 = vld [vmem:[%s10 + $0x98] sm:$0xff]
      %v408 = vld [vmem:[%s10 + $0xa0] sm:$0xff]
      %v409 = vld [vmem:[%s10 + $0xa8] sm:$0xff]
      %v410 = vld [vmem:[%s10 + $0xb0] sm:$0xff]
      %v411 = vld [vmem:[%s10 + $0xb8] sm:$0xff]
      %v412 = vld [vmem:[%s10 + $0xc0] sm:$0xff]
      %v413 = vld [vmem:[%s10 + $0xc8] sm:$0xff]
      %v414 = vld [vmem:[%s10 + $0xd0] sm:$0xff]
      %v415 = vld [vmem:[%s10 + $0xd8] sm:$0xff]
      %v416 = vld [vmem:[%s10 + $0xe0] sm:$0xff]
      %v417 = vld [vmem:[%s10 + $0xe8] sm:$0xff]
      %v418 = vld [vmem:[%s10 + $0xf0] sm:$0xff]
      %v419 = vld [vmem:[%s10 + $0xf8] sm:$0xff]
      %v420 = vld [vmem:[%s10 + $0x100] sm:$0xff]
      %v421 = vld [vmem:[%s10 + $0x108] sm:$0xff]
      %v422 = vld [vmem:[%s10 + $0x110] sm:$0xff]
      %v423 = vld [vmem:[%s10 + $0x118] sm:$0xff]
      %v424 = vld [vmem:[%s10 + $0x120] sm:$0xff]
      %v425 = vld [vmem:[%s10 + $0x128] sm:$0xff]
      %v426 = vld [vmem:[%s10 + $0x130] sm:$0xff]
      %v427 = vld [vmem:[%s10 + $0x138] sm:$0xff]
      %v428 = vld [vmem:[%s10 + $0x140] sm:$0xff]
      %v429 = vld [vmem:[%s10 + $0x148] sm:$0xff]
      %v430 = vld [vmem:[%s10 + $0x150] sm:$0xff]
      %v431 = vld [vmem:[%s10 + $0x158] sm:$0xff]
      %v432 = vld [vmem:[%s10 + $0x160] sm:$0xff]
      %v433 = vld [vmem:[%s10 + $0x168] sm:$0xff]
      %v434 = vld [vmem:[%s10 + $0x170] sm:$0xff]
      %v435 = vld [vmem:[%s10 + $0x178] sm:$0xff]
      %v436 = vld [vmem:[%s10 + $0x180] sm:$0xff]
      %v437 = vld [vmem:[%s10 + $0x188] sm:$0xff]
      %v438 = vld [vmem:[%s10 + $0x190] sm:$0xff]
      %v439 = vld [vmem:[%s10 + $0x198] sm:$0xff]
      %v440 = vld [vmem:[%s10 + $0x1a0] sm:$0xff]
      %v441 = vld [vmem:[%s10 + $0x1a8] sm:$0xff]
      %v442 = vld [vmem:[%s10 + $0x1b0] sm:$0xff]
      %v443 = vld [vmem:[%s10 + $0x1b8] sm:$0xff]
      %v444 = vld [vmem:[%s10 + $0x1c0] sm:$0xff]
      %v445 = vld [vmem:[%s10 + $0x1c8] sm:$0xff]
      %v446 = vld [vmem:[%s10 + $0x1d0] sm:$0xff]
      %v447 = vld [vmem:[%s10 + $0x1d8] sm:$0xff]
      %v448 = vld [vmem:[%s10 + $0x1e0] sm:$0xff]
      %v449 = vld [vmem:[%s10 + $0x1e8] sm:$0xff]
      %v450 = vld [vmem:[%s10 + $0x1f0] sm:$0xff]
      %v451 = vld [vmem:[%s10 + $0x1f8] sm:$0xff]
      %v452 = vld [vmem:[%s10 + $0x200] sm:$0xff]
      %v453 = vld [vmem:[%s10 + $0x208] sm:$0xff]
      %v454 = vld [vmem:[%s10 + $0x210] sm:$0xf]
      %v455 = vld [vmem:[%s10 + $0x218] sm:$0xff]
      %v456 = vld [vmem:[%s10 + $0x220] sm:$0x3]
      %v457 = vld [vmem:[%s381] sm:$0xf]
      %v458 = vld [vmem:[%s381 + $0x8] sm:$0xf]
      %v459 = vld [vmem:[%s381 + $0x10] sm:$0xf]
      %v460 = vld [vmem:[%s381 + $0x18] sm:$0xf]
      %v465 = vunpack.c.l.b16 %v457
      %v466 = vunpack.c.l.b16 %v458
      %v467 = vunpack.c.l.b16 %v459
      %v468 = vunpack.c.l.b16 %v460
      %v469 = vpack.c.b16 %v466, %v465
      %v470 = vpack.c.b16 %v468, %v467
      %473 = vrot.lane.b32.xlu0 %v469, 127
      %v474 = vpop.permute.xlu0 %473
      %475 = vrot.lane.b32.xlu0 %v470, 127
      %v476 = vpop.permute.xlu0 %475
      %479 = vrot.lane.b32.xlu0 %v469, 126
      %v480 = vpop.permute.xlu0 %479
      %481 = vrot.lane.b32.xlu0 %v470, 126
      %v482 = vpop.permute.xlu0 %481
      %485 = vrot.lane.b32.xlu0 %v469, 125
      %v486 = vpop.permute.xlu0 %485
      %487 = vrot.lane.b32.xlu0 %v470, 125
      %v488 = vpop.permute.xlu0 %487
      %491 = vrot.lane.b32.xlu0 %v469, 124
      %v492 = vpop.permute.xlu0 %491
      %493 = vrot.lane.b32.xlu0 %v470, 124
      %v494 = vpop.permute.xlu0 %493
      %v497 = vld [vmem:[%s1] sm:$0xff]
      %v498 = vld [vmem:[%s1 + $0x8] sm:$0xff]
      %v499 = vld [vmem:[%s1 + $0x10] sm:$0xff]
      %v500 = vld [vmem:[%s1 + $0x18] sm:$0xff]
      %v501 = vld [vmem:[%s1 + $0x20] sm:$0xff]
      %v502 = vld [vmem:[%s1 + $0x28] sm:$0xff]
      %v503 = vld [vmem:[%s1 + $0x30] sm:$0xff]
      %v504 = vld [vmem:[%s1 + $0x38] sm:$0xff]
      %v505 = vld [vmem:[%s1 + $0x40] sm:$0xff]
      %v506 = vld [vmem:[%s1 + $0x48] sm:$0xff]
      %v507 = vld [vmem:[%s1 + $0x50] sm:$0xff]
      %v508 = vld [vmem:[%s1 + $0x58] sm:$0xff]
      %v509 = vld [vmem:[%s1 + $0x60] sm:$0xff]
      %v510 = vld [vmem:[%s1 + $0x68] sm:$0xff]
      %v511 = vld [vmem:[%s1 + $0x70] sm:$0xff]
      %v512 = vld [vmem:[%s1 + $0x78] sm:$0xff]
      %v513 = vld [vmem:[%s1 + $0x80] sm:$0xff]
      %v514 = vld [vmem:[%s1 + $0x88] sm:$0xff]
      %v515 = vld [vmem:[%s1 + $0x90] sm:$0xff]
      %v516 = vld [vmem:[%s1 + $0x98] sm:$0xff]
      %v517 = vld [vmem:[%s1 + $0xa0] sm:$0xff]
      %519 = vset.pattern.permute.xlu0 0
      %520 = vperm.xlu0 %519, %v388
      %v521 = vpop.permute.xlu0 %520
      %524 = vset.pattern.permute.xlu0 0
      %525 = vperm.xlu0 %524, %v389
      %v526 = vpop.permute.xlu0 %525
      %529 = vset.pattern.permute.xlu0 0
      %530 = vperm.xlu0 %529, %v390
      %v531 = vpop.permute.xlu0 %530
      %534 = vset.pattern.permute.xlu0 0
      %535 = vperm.xlu0 %534, %v391
      %v536 = vpop.permute.xlu0 %535
      %539 = vset.pattern.permute.xlu0 0
      %540 = vperm.xlu0 %539, %v392
      %v541 = vpop.permute.xlu0 %540
      %544 = vset.pattern.permute.xlu0 0
      %545 = vperm.xlu0 %544, %v393
      %v546 = vpop.permute.xlu0 %545
      %549 = vset.pattern.permute.xlu0 0
      %550 = vperm.xlu0 %549, %v394
      %v551 = vpop.permute.xlu0 %550
      %554 = vset.pattern.permute.xlu0 0
      %555 = vperm.xlu0 %554, %v395
      %v556 = vpop.permute.xlu0 %555
      %559 = vset.pattern.permute.xlu0 0
      %560 = vperm.xlu0 %559, %v396
      %v561 = vpop.permute.xlu0 %560
      %564 = vset.pattern.permute.xlu0 0
      %565 = vperm.xlu0 %564, %v397
      %v566 = vpop.permute.xlu0 %565
      %569 = vset.pattern.permute.xlu0 0
      %570 = vperm.xlu0 %569, %v398
      %v571 = vpop.permute.xlu0 %570
      %574 = vset.pattern.permute.xlu0 0
      %575 = vperm.xlu0 %574, %v399
      %v576 = vpop.permute.xlu0 %575
      %579 = vset.pattern.permute.xlu0 0
      %580 = vperm.xlu0 %579, %v400
      %v581 = vpop.permute.xlu0 %580
      %584 = vset.pattern.permute.xlu0 0
      %585 = vperm.xlu0 %584, %v401
      %v586 = vpop.permute.xlu0 %585
      %589 = vset.pattern.permute.xlu0 0
      %590 = vperm.xlu0 %589, %v402
      %v591 = vpop.permute.xlu0 %590
      %594 = vset.pattern.permute.xlu0 0
      %595 = vperm.xlu0 %594, %v403
      %v596 = vpop.permute.xlu0 %595
      %599 = vset.pattern.permute.xlu0 0
      %600 = vperm.xlu0 %599, %v404
      %v601 = vpop.permute.xlu0 %600
      %604 = vset.pattern.permute.xlu0 0
      %605 = vperm.xlu0 %604, %v405
      %v606 = vpop.permute.xlu0 %605
      %609 = vset.pattern.permute.xlu0 0
      %610 = vperm.xlu0 %609, %v406
      %v611 = vpop.permute.xlu0 %610
      %614 = vset.pattern.permute.xlu0 0
      %615 = vperm.xlu0 %614, %v407
      %v616 = vpop.permute.xlu0 %615
      %619 = vset.pattern.permute.xlu0 0
      %620 = vperm.xlu0 %619, %v408
      %v621 = vpop.permute.xlu0 %620
      %v644 = vunpack.c.l.b16 %v497
      %v645 = vunpack.c.h.b16 %v497
      %v646 = vunpack.c.l.b16 %v498
      %v647 = vunpack.c.h.b16 %v498
      %v648 = vunpack.c.l.b16 %v499
      %v649 = vunpack.c.h.b16 %v499
      %v650 = vunpack.c.l.b16 %v500
      %v651 = vunpack.c.h.b16 %v500
      %v652 = vunpack.c.l.b16 %v501
      %v653 = vunpack.c.h.b16 %v501
      %v654 = vunpack.c.l.b16 %v502
      %v655 = vunpack.c.h.b16 %v502
      %v656 = vunpack.c.l.b16 %v503
      %v657 = vunpack.c.h.b16 %v503
      %v658 = vunpack.c.l.b16 %v504
      %v659 = vunpack.c.h.b16 %v504
      %v660 = vunpack.c.l.b16 %v505
      %v661 = vunpack.c.h.b16 %v505
      %v662 = vunpack.c.l.b16 %v506
      %v663 = vunpack.c.h.b16 %v506
      %v664 = vunpack.c.l.b16 %v507
      %v665 = vunpack.c.h.b16 %v507
      %v666 = vunpack.c.l.b16 %v508
      %v667 = vunpack.c.h.b16 %v508
      %v668 = vunpack.c.l.b16 %v509
      %v669 = vunpack.c.h.b16 %v509
      %v670 = vunpack.c.l.b16 %v510
      %v671 = vunpack.c.h.b16 %v510
      %v672 = vunpack.c.l.b16 %v511
      %v673 = vunpack.c.h.b16 %v511
      %v674 = vunpack.c.l.b16 %v512
      %v675 = vunpack.c.h.b16 %v512
      %v676 = vunpack.c.l.b16 %v513
      %v677 = vunpack.c.h.b16 %v513
      %v678 = vunpack.c.l.b16 %v514
      %v679 = vunpack.c.h.b16 %v514
      %v680 = vunpack.c.l.b16 %v515
      %v681 = vunpack.c.h.b16 %v515
      %v682 = vunpack.c.l.b16 %v516
      %v683 = vunpack.c.h.b16 %v516
      %v684 = vunpack.c.l.b16 %v517
      %v685 = vunpack.c.h.b16 %v517
      %v686 = vpack.c.b16 %v646, %v644
      %v687 = vpack.c.b16 %v647, %v645
      %v688 = vpack.c.b16 %v650, %v648
      %v689 = vpack.c.b16 %v651, %v649
      %v690 = vpack.c.b16 %v654, %v652
      %v691 = vpack.c.b16 %v655, %v653
      %v692 = vpack.c.b16 %v658, %v656
      %v693 = vpack.c.b16 %v659, %v657
      %v694 = vpack.c.b16 %v662, %v660
      %v695 = vpack.c.b16 %v663, %v661
      %v696 = vpack.c.b16 %v666, %v664
      %v697 = vpack.c.b16 %v667, %v665
      %v698 = vpack.c.b16 %v670, %v668
      %v699 = vpack.c.b16 %v671, %v669
      %v700 = vpack.c.b16 %v674, %v672
      %v701 = vpack.c.b16 %v675, %v673
      %v702 = vpack.c.b16 %v678, %v676
      %v703 = vpack.c.b16 %v679, %v677
      %v704 = vpack.c.b16 %v682, %v680
      %v705 = vpack.c.b16 %v683, %v681
      %v706 = vpack.c.b16 %v684, %v684
      %v707 = vpack.c.b16 %v685, %v685
      %vm719 = vcmask 261120
      %v721 = vsel %vm719, %v687, 0
      %v724 = vsel %vm719, %v689, 0
      %v727 = vsel %vm719, %v691, 0
      %v730 = vsel %vm719, %v693, 0
      %v733 = vsel %vm719, %v695, 0
      %v736 = vsel %vm719, %v697, 0
      %v739 = vsel %vm719, %v699, 0
      %v742 = vsel %vm719, %v701, 0
      %v745 = vsel %vm719, %v703, 0
      %v748 = vsel %vm719, %v705, 0
      %v751 = vsel %vm719, %v707, 0
      %753 = vmatprep.subr.bf16.mxu0 0
      %754 = vmatpush1.bf16.msra.mxu0 %v469
      %755 = vmatprep.subr.bf16.mxu0 0
      %756 = vmatpush1.bf16.msra.mxu0 %v470
      %757 = vmatprep.subr.bf16.mxu0 0
      %758 = vmatpush1.bf16.msra.mxu0 %v474
      %759 = vmatprep.subr.bf16.mxu0 0
      %760 = vmatpush1.bf16.msra.mxu0 %v476
      %761 = vmatprep.subr.bf16.mxu0 0
      %762 = vmatpush1.bf16.msra.mxu0 %v480
      %763 = vmatprep.subr.bf16.mxu0 0
      %764 = vmatpush1.bf16.msra.mxu0 %v482
      %765 = vmatprep.subr.bf16.mxu0 0
      %766 = vmatpush1.bf16.msra.mxu0 %v486
      %767 = vmatprep.subr.bf16.mxu0 0
      %768 = vmatpush1.bf16.msra.mxu0 %v488
      %769 = vmatprep.subr.bf16.mxu0 0
      %770 = vmatpush1.bf16.msra.mxu0 %v492
      %771 = vmatprep.subr.bf16.mxu0 0
      %772 = vmatpush1.bf16.msra.mxu0 %v494
      %773 = vmatprep.subr.bf16.mxu0 0
      %774 = vmatpush1.bf16.msra.mxu0 0
      %775 = vmatprep.subr.bf16.mxu0 0
      %776 = vmatpush1.bf16.msra.mxu0 0
      %777 = vmatprep.subr.bf16.mxu0 0
      %778 = vmatpush1.bf16.msra.mxu0 0
      %779 = vmatprep.subr.bf16.mxu0 0
      %780 = vmatpush1.bf16.msra.mxu0 0
      %781 = vmatprep.subr.bf16.mxu0 0
      %782 = vmatpush1.bf16.msra.mxu0 0
      %783 = vmatprep.subr.bf16.mxu0 0
      %784 = vmatpush1.bf16.msra.mxu0 0
      %785 = vmatprep.mubr.bf16.mxu0 %v721
      %786 = vmatmul.mubr.bf16.gmra.mrb[0].mxu0 %v686
      %v787 = vpop.f32.mrb[0].mxu0
      %v788 = vadd.f32 %v521, %v787
      %v789 = vpop.f32.mrb[0].mxu0
      %v790 = vpop.f32.mrb[0].mxu0
      %v791 = vadd.f32 %v526, %v790
      %v792 = vpop.f32.mrb[0].mxu0
      %793 = vmatprep.mubr.bf16.mxu0 %v724
      %794 = vmatmul.mubr.bf16.gmra.mrb[0].mxu0 %v688
      %v795 = vpop.f32.mrb[0].mxu0
      %v796 = vadd.f32 %v531, %v795
      %v797 = vpop.f32.mrb[0].mxu0
      %v798 = vpop.f32.mrb[0].mxu0
      %v799 = vadd.f32 %v536, %v798
      %v800 = vpop.f32.mrb[0].mxu0
      %801 = vmatprep.mubr.bf16.mxu0 %v727
      %802 = vmatmul.mubr.bf16.gmra.mrb[0].mxu0 %v690
      %v803 = vpop.f32.mrb[0].mxu0
      %v804 = vadd.f32 %v541, %v803
      %v805 = vpop.f32.mrb[0].mxu0
      %v806 = vpop.f32.mrb[0].mxu0
      %v807 = vadd.f32 %v546, %v806
      %v808 = vpop.f32.mrb[0].mxu0
      %809 = vmatprep.mubr.bf16.mxu0 %v730
      %810 = vmatmul.mubr.bf16.gmra.mrb[0].mxu0 %v692
      %v811 = vpop.f32.mrb[0].mxu0
      %v812 = vadd.f32 %v551, %v811
      %v813 = vpop.f32.mrb[0].mxu0
      %v814 = vpop.f32.mrb[0].mxu0
      %v815 = vadd.f32 %v556, %v814
      %v816 = vpop.f32.mrb[0].mxu0
      %817 = vmatprep.mubr.bf16.mxu0 %v733
      %818 = vmatmul.mubr.bf16.gmra.mrb[0].mxu0 %v694
      %v819 = vpop.f32.mrb[0].mxu0
      %v820 = vadd.f32 %v561, %v819
      %v821 = vpop.f32.mrb[0].mxu0
      %v822 = vpop.f32.mrb[0].mxu0
      %v823 = vadd.f32 %v566, %v822
      %v824 = vpop.f32.mrb[0].mxu0
      %825 = vmatprep.mubr.bf16.mxu0 %v736
      %826 = vmatmul.mubr.bf16.gmra.mrb[0].mxu0 %v696
      %v827 = vpop.f32.mrb[0].mxu0
      %v828 = vadd.f32 %v571, %v827
      %v829 = vpop.f32.mrb[0].mxu0
      %v830 = vpop.f32.mrb[0].mxu0
      %v831 = vadd.f32 %v576, %v830
      %v832 = vpop.f32.mrb[0].mxu0
      %833 = vmatprep.mubr.bf16.mxu0 %v739
      %834 = vmatmul.mubr.bf16.gmra.mrb[0].mxu0 %v698
      %v835 = vpop.f32.mrb[0].mxu0
      %v836 = vadd.f32 %v581, %v835
      %v837 = vpop.f32.mrb[0].mxu0
      %v838 = vpop.f32.mrb[0].mxu0
      %v839 = vadd.f32 %v586, %v838
      %v840 = vpop.f32.mrb[0].mxu0
      %841 = vmatprep.mubr.bf16.mxu0 %v742
      %842 = vmatmul.mubr.bf16.gmra.mrb[0].mxu0 %v700
      %v843 = vpop.f32.mrb[0].mxu0
      %v844 = vadd.f32 %v591, %v843
      %v845 = vpop.f32.mrb[0].mxu0
      %v846 = vpop.f32.mrb[0].mxu0
      %v847 = vadd.f32 %v596, %v846
      %v848 = vpop.f32.mrb[0].mxu0
      %849 = vmatprep.mubr.bf16.mxu0 %v745
      %850 = vmatmul.mubr.bf16.gmra.mrb[0].mxu0 %v702
      %v851 = vpop.f32.mrb[0].mxu0
      %v852 = vadd.f32 %v601, %v851
      %v853 = vpop.f32.mrb[0].mxu0
      %v854 = vpop.f32.mrb[0].mxu0
      %v855 = vadd.f32 %v606, %v854
      %v856 = vpop.f32.mrb[0].mxu0
      %857 = vmatprep.mubr.bf16.mxu0 %v748
      %858 = vmatmul.mubr.bf16.gmra.mrb[0].mxu0 %v704
      %v859 = vpop.f32.mrb[0].mxu0
      %v860 = vadd.f32 %v611, %v859
      %v861 = vpop.f32.mrb[0].mxu0
      %v862 = vpop.f32.mrb[0].mxu0
      %v863 = vadd.f32 %v616, %v862
      %v864 = vpop.f32.mrb[0].mxu0
      %865 = vmatprep.mubr.bf16.mxu0 %v751
      %866 = vmatmul.mubr.bf16.gmra.mrb[0].mxu0 %v706
      %v867 = vpop.f32.mrb[0].mxu0
      %v868 = vadd.f32 %v621, %v867
      %v869 = vpop.f32.mrb[0].mxu0
      %v870 = vpop.f32.mrb[0].mxu0
      %v871 = vpop.f32.mrb[0].mxu0
      %872 = vdwg.mxu0
      %894 = vrot.lane.b32.xlu0 %v788, 127
      %v895 = vpop.permute.xlu0 %894
      %896 = vrot.lane.b32.xlu0 %v791, 127
      %v897 = vpop.permute.xlu0 %896
      %898 = vrot.lane.b32.xlu0 %v796, 127
      %v899 = vpop.permute.xlu0 %898
      %900 = vrot.lane.b32.xlu0 %v799, 127
      %v901 = vpop.permute.xlu0 %900
      %902 = vrot.lane.b32.xlu0 %v804, 127
      %v903 = vpop.permute.xlu0 %902
      %904 = vrot.lane.b32.xlu0 %v807, 127
      %v905 = vpop.permute.xlu0 %904
      %906 = vrot.lane.b32.xlu0 %v812, 127
      %v907 = vpop.permute.xlu0 %906
      %908 = vrot.lane.b32.xlu0 %v815, 127
      %v909 = vpop.permute.xlu0 %908
      %910 = vrot.lane.b32.xlu0 %v820, 127
      %v911 = vpop.permute.xlu0 %910
      %912 = vrot.lane.b32.xlu0 %v823, 127
      %v913 = vpop.permute.xlu0 %912
      %914 = vrot.lane.b32.xlu0 %v828, 127
      %v915 = vpop.permute.xlu0 %914
      %916 = vrot.lane.b32.xlu0 %v831, 127
      %v917 = vpop.permute.xlu0 %916
      %918 = vrot.lane.b32.xlu0 %v836, 127
      %v919 = vpop.permute.xlu0 %918
      %920 = vrot.lane.b32.xlu0 %v839, 127
      %v921 = vpop.permute.xlu0 %920
      %922 = vrot.lane.b32.xlu0 %v844, 127
      %v923 = vpop.permute.xlu0 %922
      %924 = vrot.lane.b32.xlu0 %v847, 127
      %v925 = vpop.permute.xlu0 %924
      %926 = vrot.lane.b32.xlu0 %v852, 127
      %v927 = vpop.permute.xlu0 %926
      %928 = vrot.lane.b32.xlu0 %v855, 127
      %v929 = vpop.permute.xlu0 %928
      %930 = vrot.lane.b32.xlu0 %v860, 127
      %v931 = vpop.permute.xlu0 %930
      %932 = vrot.lane.b32.xlu0 %v863, 127
      %v933 = vpop.permute.xlu0 %932
      %934 = vrot.lane.b32.xlu0 %v868, 127
      %v935 = vpop.permute.xlu0 %934
      %v957 = vmax.f32 %v788, %v895
      %v958 = vmax.f32 %v791, %v897
      %v959 = vmax.f32 %v796, %v899
      %v960 = vmax.f32 %v799, %v901
      %v961 = vmax.f32 %v804, %v903
      %v962 = vmax.f32 %v807, %v905
      %v963 = vmax.f32 %v812, %v907
      %v964 = vmax.f32 %v815, %v909
      %v965 = vmax.f32 %v820, %v911
      %v966 = vmax.f32 %v823, %v913
      %v967 = vmax.f32 %v828, %v915
      %v968 = vmax.f32 %v831, %v917
      %v969 = vmax.f32 %v836, %v919
      %v970 = vmax.f32 %v839, %v921
      %v971 = vmax.f32 %v844, %v923
      %v972 = vmax.f32 %v847, %v925
      %v973 = vmax.f32 %v852, %v927
      %v974 = vmax.f32 %v855, %v929
      %v975 = vmax.f32 %v860, %v931
      %v976 = vmax.f32 %v863, %v933
      %v977 = vmax.f32 %v868, %v935
      %v978 = vld [vmem:[%s2] sm:$0xff]
      %v979 = vld [vmem:[%s2 + $0x8] sm:$0xff]
      %v980 = vld [vmem:[%s2 + $0x10] sm:$0xff]
      %v981 = vld [vmem:[%s2 + $0x18] sm:$0xff]
      %v982 = vld [vmem:[%s2 + $0x20] sm:$0xff]
      %v983 = vld [vmem:[%s2 + $0x28] sm:$0xff]
      %v984 = vld [vmem:[%s2 + $0x30] sm:$0xff]
      %v985 = vld [vmem:[%s2 + $0x38] sm:$0xff]
      %v986 = vld [vmem:[%s2 + $0x40] sm:$0xff]
      %v987 = vld [vmem:[%s2 + $0x48] sm:$0xff]
      %v988 = vld [vmem:[%s2 + $0x50] sm:$0xff]
      %v989 = vld [vmem:[%s2 + $0x58] sm:$0xff]
      %v990 = vld [vmem:[%s2 + $0x60] sm:$0xff]
      %v991 = vld [vmem:[%s2 + $0x68] sm:$0xff]
      %v992 = vld [vmem:[%s2 + $0x70] sm:$0xff]
      %v993 = vld [vmem:[%s2 + $0x78] sm:$0x7f]
      %vm994 = vcmask 1039360
      %v996 = vsel %vm994, %v957, 0
      %v999 = vsel %vm994, %v958, 0
      %v1002 = vsel %vm994, %v959, 0
      %v1005 = vsel %vm994, %v960, 0
      %v1008 = vsel %vm994, %v961, 0
      %v1011 = vsel %vm994, %v962, 0
      %v1014 = vsel %vm994, %v963, 0
      %v1017 = vsel %vm994, %v964, 0
      %v1020 = vsel %vm994, %v965, 0
      %v1023 = vsel %vm994, %v966, 0
      %v1026 = vsel %vm994, %v967, 0
      %v1029 = vsel %vm994, %v968, 0
      %v1032 = vsel %vm994, %v969, 0
      %v1035 = vsel %vm994, %v970, 0
      %v1038 = vsel %vm994, %v971, 0
      %v1041 = vsel %vm994, %v972, 0
      %v1044 = vsel %vm994, %v973, 0
      %v1047 = vsel %vm994, %v974, 0
      %v1050 = vsel %vm994, %v975, 0
      %v1053 = vsel %vm994, %v976, 0
      %v1056 = vsel %vm994, %v977, 0
      %vm1058 = vcmask 1046528
      %v1060 = vsel %vm1058, %v993, 0
      %1062 = vmatprep.subr.mxu0 0.0
      %1063 = vmatpush1.msra.mxu0 %v978
      %1064 = vmatprep.subr.mxu0 0.0
      %1065 = vmatpush1.msra.mxu0 %v979
      %1066 = vmatprep.subr.mxu0 0.0
      %1067 = vmatpush1.msra.mxu0 %v980
      %1068 = vmatprep.subr.mxu0 0.0
      %1069 = vmatpush1.msra.mxu0 %v981
      %1070 = vmatprep.subr.mxu0 0.0
      %1071 = vmatpush1.msra.mxu0 %v982
      %1072 = vmatprep.subr.mxu0 0.0
      %1073 = vmatpush1.msra.mxu0 %v983
      %1074 = vmatprep.subr.mxu0 0.0
      %1075 = vmatpush1.msra.mxu0 %v984
      %1076 = vmatprep.subr.mxu0 0.0
      %1077 = vmatpush1.msra.mxu0 %v985
      %1078 = vmatprep.subr.mxu0 0.0
      %1079 = vmatpush1.msra.mxu0 %v986
      %1080 = vmatprep.subr.mxu0 0.0
      %1081 = vmatpush1.msra.mxu0 %v987
      %1082 = vmatprep.subr.mxu0 0.0
      %1083 = vmatpush1.msra.mxu0 %v988
      %1084 = vmatprep.subr.mxu0 0.0
      %1085 = vmatpush1.msra.mxu0 %v989
      %1086 = vmatprep.subr.mxu0 0.0
      %1087 = vmatpush1.msra.mxu0 %v990
      %1088 = vmatprep.subr.mxu0 0.0
      %1089 = vmatpush1.msra.mxu0 %v991
      %1090 = vmatprep.subr.mxu0 0.0
      %1091 = vmatpush1.msra.mxu0 %v992
      %1092 = vmatprep.subr.mxu0 0.0
      %1093 = vmatpush1.msra.mxu0 %v1060
      %1094 = vmatprep.subr.mxu0 0.0
      %1095 = vmatpush1.msra.mxu0 0.0
      %1096 = vmatprep.subr.mxu0 0.0
      %1097 = vmatpush1.msra.mxu0 0.0
      %1098 = vmatprep.subr.mxu0 0.0
      %1099 = vmatpush1.msra.mxu0 0.0
      %1100 = vmatprep.subr.mxu0 0.0
      %1101 = vmatpush1.msra.mxu0 0.0
      %1102 = vmatprep.subr.mxu0 0.0
      %1103 = vmatpush1.msra.mxu0 0.0
      %1104 = vmatprep.subr.mxu0 0.0
      %1105 = vmatpush1.msra.mxu0 0.0
      %1106 = vmatprep.subr.mxu0 0.0
      %1107 = vmatpush1.msra.mxu0 0.0
      %1108 = vmatprep.subr.mxu0 0.0
      %1109 = vmatpush1.msra.mxu0 0.0
      %1110 = vmatprep.subr.mxu0 0.0
      %1111 = vmatpush1.msra.mxu0 0.0
      %1112 = vmatprep.subr.mxu0 0.0
      %1113 = vmatpush1.msra.mxu0 0.0
      %1114 = vmatprep.subr.mxu0 0.0
      %1115 = vmatpush1.msra.mxu0 0.0
      %1116 = vmatprep.subr.mxu0 0.0
      %1117 = vmatpush1.msra.mxu0 0.0
      %1118 = vmatprep.subr.mxu0 0.0
      %1119 = vmatpush1.msra.mxu0 0.0
      %1120 = vmatprep.subr.mxu0 0.0
      %1121 = vmatpush1.msra.mxu0 0.0
      %1122 = vmatprep.subr.mxu0 0.0
      %1123 = vmatpush1.msra.mxu0 0.0
      %1124 = vmatprep.subr.mxu0 0.0
      %1125 = vmatpush1.msra.mxu0 0.0
      %1126 = vmatprep.mubr.f32.mxu0 0.0
      %1127 = vmatmul.mubr.f32.gmra.mrb[0].mxu0 %v996
      %v1128 = vpop.f32.mrb[0].mxu0
      %v1129 = vadd.f32 0.0, %v1128
      %v1130 = vpop.f32.mrb[0].mxu0
      %1131 = vmatprep.mubr.f32.mxu0 0.0
      %1132 = vmatmul.mubr.f32.gmra.mrb[0].mxu0 %v999
      %v1133 = vpop.f32.mrb[0].mxu0
      %v1134 = vadd.f32 0.0, %v1133
      %v1135 = vpop.f32.mrb[0].mxu0
      %1136 = vmatprep.mubr.f32.mxu0 0.0
      %1137 = vmatmul.mubr.f32.gmra.mrb[0].mxu0 %v1002
      %v1138 = vpop.f32.mrb[0].mxu0
      %v1139 = vadd.f32 0.0, %v1138
      %v1140 = vpop.f32.mrb[0].mxu0
      %1141 = vmatprep.mubr.f32.mxu0 0.0
      %1142 = vmatmul.mubr.f32.gmra.mrb[0].mxu0 %v1005
      %v1143 = vpop.f32.mrb[0].mxu0
      %v1144 = vadd.f32 0.0, %v1143
      %v1145 = vpop.f32.mrb[0].mxu0
      %1146 = vmatprep.mubr.f32.mxu0 0.0
      %1147 = vmatmul.mubr.f32.gmra.mrb[0].mxu0 %v1008
      %v1148 = vpop.f32.mrb[0].mxu0
      %v1149 = vadd.f32 0.0, %v1148
      %v1150 = vpop.f32.mrb[0].mxu0
      %1151 = vmatprep.mubr.f32.mxu0 0.0
      %1152 = vmatmul.mubr.f32.gmra.mrb[0].mxu0 %v1011
      %v1153 = vpop.f32.mrb[0].mxu0
      %v1154 = vadd.f32 0.0, %v1153
      %v1155 = vpop.f32.mrb[0].mxu0
      %1156 = vmatprep.mubr.f32.mxu0 0.0
      %1157 = vmatmul.mubr.f32.gmra.mrb[0].mxu0 %v1014
      %v1158 = vpop.f32.mrb[0].mxu0
      %v1159 = vadd.f32 0.0, %v1158
      %v1160 = vpop.f32.mrb[0].mxu0
      %1161 = vmatprep.mubr.f32.mxu0 0.0
      %1162 = vmatmul.mubr.f32.gmra.mrb[0].mxu0 %v1017
      %v1163 = vpop.f32.mrb[0].mxu0
      %v1164 = vadd.f32 0.0, %v1163
      %v1165 = vpop.f32.mrb[0].mxu0
      %1166 = vmatprep.mubr.f32.mxu0 0.0
      %1167 = vmatmul.mubr.f32.gmra.mrb[0].mxu0 %v1020
      %v1168 = vpop.f32.mrb[0].mxu0
      %v1169 = vadd.f32 0.0, %v1168
      %v1170 = vpop.f32.mrb[0].mxu0
      %1171 = vmatprep.mubr.f32.mxu0 0.0
      %1172 = vmatmul.mubr.f32.gmra.mrb[0].mxu0 %v1023
      %v1173 = vpop.f32.mrb[0].mxu0
      %v1174 = vadd.f32 0.0, %v1173
      %v1175 = vpop.f32.mrb[0].mxu0
      %1176 = vmatprep.mubr.f32.mxu0 0.0
      %1177 = vmatmul.mubr.f32.gmra.mrb[0].mxu0 %v1026
      %v1178 = vpop.f32.mrb[0].mxu0
      %v1179 = vadd.f32 0.0, %v1178
      %v1180 = vpop.f32.mrb[0].mxu0
      %1181 = vmatprep.mubr.f32.mxu0 0.0
      %1182 = vmatmul.mubr.f32.gmra.mrb[0].mxu0 %v1029
      %v1183 = vpop.f32.mrb[0].mxu0
      %v1184 = vadd.f32 0.0, %v1183
      %v1185 = vpop.f32.mrb[0].mxu0
      %1186 = vmatprep.mubr.f32.mxu0 0.0
      %1187 = vmatmul.mubr.f32.gmra.mrb[0].mxu0 %v1032
      %v1188 = vpop.f32.mrb[0].mxu0
      %v1189 = vadd.f32 0.0, %v1188
      %v1190 = vpop.f32.mrb[0].mxu0
      %1191 = vmatprep.mubr.f32.mxu0 0.0
      %1192 = vmatmul.mubr.f32.gmra.mrb[0].mxu0 %v1035
      %v1193 = vpop.f32.mrb[0].mxu0
      %v1194 = vadd.f32 0.0, %v1193
      %v1195 = vpop.f32.mrb[0].mxu0
      %1196 = vmatprep.mubr.f32.mxu0 0.0
      %1197 = vmatmul.mubr.f32.gmra.mrb[0].mxu0 %v1038
      %v1198 = vpop.f32.mrb[0].mxu0
      %v1199 = vadd.f32 0.0, %v1198
      %v1200 = vpop.f32.mrb[0].mxu0
      %1201 = vmatprep.mubr.f32.mxu0 0.0
      %1202 = vmatmul.mubr.f32.gmra.mrb[0].mxu0 %v1041
      %v1203 = vpop.f32.mrb[0].mxu0
      %v1204 = vadd.f32 0.0, %v1203
      %v1205 = vpop.f32.mrb[0].mxu0
      %1206 = vmatprep.mubr.f32.mxu0 0.0
      %1207 = vmatmul.mubr.f32.gmra.mrb[0].mxu0 %v1044
      %v1208 = vpop.f32.mrb[0].mxu0
      %v1209 = vadd.f32 0.0, %v1208
      %v1210 = vpop.f32.mrb[0].mxu0
      %1211 = vmatprep.mubr.f32.mxu0 0.0
      %1212 = vmatmul.mubr.f32.gmra.mrb[0].mxu0 %v1047
      %v1213 = vpop.f32.mrb[0].mxu0
      %v1214 = vadd.f32 0.0, %v1213
      %v1215 = vpop.f32.mrb[0].mxu0
      %1216 = vmatprep.mubr.f32.mxu0 0.0
      %1217 = vmatmul.mubr.f32.gmra.mrb[0].mxu0 %v1050
      %v1218 = vpop.f32.mrb[0].mxu0
      %v1219 = vadd.f32 0.0, %v1218
      %v1220 = vpop.f32.mrb[0].mxu0
      %1221 = vmatprep.mubr.f32.mxu0 0.0
      %1222 = vmatmul.mubr.f32.gmra.mrb[0].mxu0 %v1053
      %v1223 = vpop.f32.mrb[0].mxu0
      %v1224 = vadd.f32 0.0, %v1223
      %v1225 = vpop.f32.mrb[0].mxu0
      %1226 = vmatprep.mubr.f32.mxu0 0.0
      %1227 = vmatmul.mubr.f32.gmra.mrb[0].mxu0 %v1056
      %v1228 = vpop.f32.mrb[0].mxu0
      %v1229 = vadd.f32 0.0, %v1228
      %v1230 = vpop.f32.mrb[0].mxu0
      %1231 = vdwg.mxu0
      %v1253 = vrot.slane %v1129, 1
      %v1254 = vrot.slane %v1134, 1
      %v1255 = vsel %vm1058, %v1253, %v1254
      %v1256 = vrot.slane %v1139, 1
      %v1257 = vsel %vm1058, %v1254, %v1256
      %v1258 = vrot.slane %v1144, 1
      %v1259 = vsel %vm1058, %v1256, %v1258
      %v1260 = vrot.slane %v1149, 1
      %v1261 = vsel %vm1058, %v1258, %v1260
      %v1262 = vrot.slane %v1154, 1
      %v1263 = vsel %vm1058, %v1260, %v1262
      %v1264 = vrot.slane %v1159, 1
      %v1265 = vsel %vm1058, %v1262, %v1264
      %v1266 = vrot.slane %v1164, 1
      %v1267 = vsel %vm1058, %v1264, %v1266
      %v1268 = vrot.slane %v1169, 1
      %v1269 = vsel %vm1058, %v1266, %v1268
      %v1270 = vrot.slane %v1174, 1
      %v1271 = vsel %vm1058, %v1268, %v1270
      %v1272 = vrot.slane %v1179, 1
      %v1273 = vsel %vm1058, %v1270, %v1272
      %v1274 = vrot.slane %v1184, 1
      %v1275 = vsel %vm1058, %v1272, %v1274
      %v1276 = vrot.slane %v1189, 1
      %v1277 = vsel %vm1058, %v1274, %v1276
      %v1278 = vrot.slane %v1194, 1
      %v1279 = vsel %vm1058, %v1276, %v1278
      %v1280 = vrot.slane %v1199, 1
      %v1281 = vsel %vm1058, %v1278, %v1280
      %v1282 = vrot.slane %v1204, 1
      %v1283 = vsel %vm1058, %v1280, %v1282
      %v1284 = vrot.slane %v1209, 1
      %v1285 = vsel %vm1058, %v1282, %v1284
      %v1286 = vrot.slane %v1214, 1
      %v1287 = vsel %vm1058, %v1284, %v1286
      %v1288 = vrot.slane %v1219, 1
      %v1289 = vsel %vm1058, %v1286, %v1288
      %v1290 = vrot.slane %v1224, 1
      %v1291 = vsel %vm1058, %v1288, %v1290
      %v1292 = vrot.slane %v1229, 1
      %v1293 = vsel %vm1058, %v1290, %v1292
      %v1315 = vmax.f32 %v1129, %v1255
      %v1316 = vmax.f32 %v1134, %v1257
      %v1317 = vmax.f32 %v1139, %v1259
      %v1318 = vmax.f32 %v1144, %v1261
      %v1319 = vmax.f32 %v1149, %v1263
      %v1320 = vmax.f32 %v1154, %v1265
      %v1321 = vmax.f32 %v1159, %v1267
      %v1322 = vmax.f32 %v1164, %v1269
      %v1323 = vmax.f32 %v1169, %v1271
      %v1324 = vmax.f32 %v1174, %v1273
      %v1325 = vmax.f32 %v1179, %v1275
      %v1326 = vmax.f32 %v1184, %v1277
      %v1327 = vmax.f32 %v1189, %v1279
      %v1328 = vmax.f32 %v1194, %v1281
      %v1329 = vmax.f32 %v1199, %v1283
      %v1330 = vmax.f32 %v1204, %v1285
      %v1331 = vmax.f32 %v1209, %v1287
      %v1332 = vmax.f32 %v1214, %v1289
      %v1333 = vmax.f32 %v1219, %v1291
      %v1334 = vmax.f32 %v1224, %v1293
      %v1335 = vmax.f32 %v1229, %v1292
      %v1336 = vld [vmem:[%s3] sm:$0xff]
      %v1337 = vld [vmem:[%s3 + $0x8] sm:$0xff]
      %v1338 = vld [vmem:[%s3 + $0x10] sm:$0xff]
      %v1339 = vld [vmem:[%s3 + $0x18] sm:$0xff]
      %v1340 = vld [vmem:[%s3 + $0x20] sm:$0xff]
      %v1341 = vld [vmem:[%s3 + $0x28] sm:$0xff]
      %v1342 = vld [vmem:[%s3 + $0x30] sm:$0xff]
      %v1343 = vld [vmem:[%s3 + $0x38] sm:$0xff]
      %v1344 = vld [vmem:[%s3 + $0x40] sm:$0xff]
      %v1345 = vld [vmem:[%s3 + $0x48] sm:$0xff]
      %v1346 = vld [vmem:[%s3 + $0x50] sm:$0xff]
      %v1347 = vld [vmem:[%s3 + $0x58] sm:$0xff]
      %v1348 = vld [vmem:[%s3 + $0x60] sm:$0xff]
      %v1349 = vld [vmem:[%s3 + $0x68] sm:$0xff]
      %v1350 = vld [vmem:[%s3 + $0x70] sm:$0xff]
      %v1351 = vld [vmem:[%s3 + $0x78] sm:$0xff]
      %v1352 = vld [vmem:[%s3 + $0x80] sm:$0xff]
      %v1353 = vld [vmem:[%s3 + $0x88] sm:$0xff]
      %v1354 = vld [vmem:[%s3 + $0x90] sm:$0xff]
      %v1355 = vld [vmem:[%s3 + $0x98] sm:$0xff]
      %v1356 = vld [vmem:[%s3 + $0xa0] sm:$0xff]
      %v1357 = vld [vmem:[%s3 + $0xa8] sm:$0xff]
      %v1358 = vld [vmem:[%s3 + $0xb0] sm:$0xff]
      %v1359 = vld [vmem:[%s3 + $0xb8] sm:$0xff]
      %vm1360 = vcmask 318464
      %v1362 = vsel %vm1360, %v1337, 0
      %v1365 = vsel %vm1360, %v1339, 0
      %v1368 = vsel %vm1360, %v1341, 0
      %v1371 = vsel %vm1360, %v1343, 0
      %v1374 = vsel %vm1360, %v1345, 0
      %v1377 = vsel %vm1360, %v1347, 0
      %v1380 = vsel %vm1360, %v1349, 0
      %v1383 = vsel %vm1360, %v1351, 0
      %v1386 = vsel %vm1360, %v1353, 0
      %v1389 = vsel %vm1360, %v1355, 0
      %v1392 = vsel %vm1360, %v1357, 0
      %v1395 = vsel %vm1360, %v1359, 0
      %v1398 = vsel %vm1058, %v1335, 0
      %1400 = vmatprep.subr.mxu0 0.0
      %1401 = vmatpush1.msra.mxu0 %v1315
      %1402 = vmatprep.subr.mxu0 0.0
      %1403 = vmatpush1.msra.mxu0 %v1316
      %1404 = vmatprep.subr.mxu0 0.0
      %1405 = vmatpush1.msra.mxu0 %v1317
      %1406 = vmatprep.subr.mxu0 0.0
      %1407 = vmatpush1.msra.mxu0 %v1318
      %1408 = vmatprep.subr.mxu0 0.0
      %1409 = vmatpush1.msra.mxu0 %v1319
      %1410 = vmatprep.subr.mxu0 0.0
      %1411 = vmatpush1.msra.mxu0 %v1320
      %1412 = vmatprep.subr.mxu0 0.0
      %1413 = vmatpush1.msra.mxu0 %v1321
      %1414 = vmatprep.subr.mxu0 0.0
      %1415 = vmatpush1.msra.mxu0 %v1322
      %1416 = vmatprep.subr.mxu0 0.0
      %1417 = vmatpush1.msra.mxu0 %v1323
      %1418 = vmatprep.subr.mxu0 0.0
      %1419 = vmatpush1.msra.mxu0 %v1324
      %1420 = vmatprep.subr.mxu0 0.0
      %1421 = vmatpush1.msra.mxu0 %v1325
      %1422 = vmatprep.subr.mxu0 0.0
      %1423 = vmatpush1.msra.mxu0 %v1326
      %1424 = vmatprep.subr.mxu0 0.0
      %1425 = vmatpush1.msra.mxu0 %v1327
      %1426 = vmatprep.subr.mxu0 0.0
      %1427 = vmatpush1.msra.mxu0 %v1328
      %1428 = vmatprep.subr.mxu0 0.0
      %1429 = vmatpush1.msra.mxu0 %v1329
      %1430 = vmatprep.subr.mxu0 0.0
      %1431 = vmatpush1.msra.mxu0 %v1330
      %1432 = vmatprep.subr.mxu0 0.0
      %1433 = vmatpush1.msra.mxu0 %v1331
      %1434 = vmatprep.subr.mxu0 0.0
      %1435 = vmatpush1.msra.mxu0 %v1332
      %1436 = vmatprep.subr.mxu0 0.0
      %1437 = vmatpush1.msra.mxu0 %v1333
      %1438 = vmatprep.subr.mxu0 0.0
      %1439 = vmatpush1.msra.mxu0 %v1334
      %1440 = vmatprep.subr.mxu0 0.0
      %1441 = vmatpush1.msra.mxu0 %v1398
      %1442 = vmatprep.subr.mxu0 0.0
      %1443 = vmatpush1.msra.mxu0 0.0
      %1444 = vmatprep.subr.mxu0 0.0
      %1445 = vmatpush1.msra.mxu0 0.0
      %1446 = vmatprep.subr.mxu0 0.0
      %1447 = vmatpush1.msra.mxu0 0.0
      %1448 = vmatprep.subr.mxu0 0.0
      %1449 = vmatpush1.msra.mxu0 0.0
      %1450 = vmatprep.subr.mxu0 0.0
      %1451 = vmatpush1.msra.mxu0 0.0
      %1452 = vmatprep.subr.mxu0 0.0
      %1453 = vmatpush1.msra.mxu0 0.0
      %1454 = vmatprep.subr.mxu0 0.0
      %1455 = vmatpush1.msra.mxu0 0.0
      %1456 = vmatprep.subr.mxu0 0.0
      %1457 = vmatpush1.msra.mxu0 0.0
      %1458 = vmatprep.subr.mxu0 0.0
      %1459 = vmatpush1.msra.mxu0 0.0
      %1460 = vmatprep.subr.mxu0 0.0
      %1461 = vmatpush1.msra.mxu0 0.0
      %1462 = vmatprep.subr.mxu0 0.0
      %1463 = vmatpush1.msra.mxu0 0.0
      %1464 = vmatprep.mubr.f32.mxu0 %v1362
      %1465 = vmatmul.mubr.f32.gmra.mrb[0].mxu0 %v1336
      %v1466 = vpop.f32.mrb[0].mxu0
      %v1467 = vadd.f32 0.0, %v1466
      %v1468 = vpop.f32.mrb[0].mxu0
      %1469 = vmatprep.mubr.f32.mxu0 %v1365
      %1470 = vmatmul.mubr.f32.gmra.mrb[0].mxu0 %v1338
      %v1471 = vpop.f32.mrb[0].mxu0
      %v1472 = vadd.f32 0.0, %v1471
      %v1473 = vpop.f32.mrb[0].mxu0
      %1474 = vmatprep.mubr.f32.mxu0 %v1368
      %1475 = vmatmul.mubr.f32.gmra.mrb[0].mxu0 %v1340
      %v1476 = vpop.f32.mrb[0].mxu0
      %v1477 = vadd.f32 0.0, %v1476
      %v1478 = vpop.f32.mrb[0].mxu0
      %1479 = vmatprep.mubr.f32.mxu0 %v1371
      %1480 = vmatmul.mubr.f32.gmra.mrb[0].mxu0 %v1342
      %v1481 = vpop.f32.mrb[0].mxu0
      %v1482 = vadd.f32 0.0, %v1481
      %v1483 = vpop.f32.mrb[0].mxu0
      %1484 = vmatprep.mubr.f32.mxu0 %v1374
      %1485 = vmatmul.mubr.f32.gmra.mrb[0].mxu0 %v1344
      %v1486 = vpop.f32.mrb[0].mxu0
      %v1487 = vadd.f32 0.0, %v1486
      %v1488 = vpop.f32.mrb[0].mxu0
      %1489 = vmatprep.mubr.f32.mxu0 %v1377
      %1490 = vmatmul.mubr.f32.gmra.mrb[0].mxu0 %v1346
      %v1491 = vpop.f32.mrb[0].mxu0
      %v1492 = vadd.f32 0.0, %v1491
      %v1493 = vpop.f32.mrb[0].mxu0
      %1494 = vmatprep.mubr.f32.mxu0 %v1380
      %1495 = vmatmul.mubr.f32.gmra.mrb[0].mxu0 %v1348
      %v1496 = vpop.f32.mrb[0].mxu0
      %v1497 = vadd.f32 0.0, %v1496
      %v1498 = vpop.f32.mrb[0].mxu0
      %1499 = vmatprep.mubr.f32.mxu0 %v1383
      %1500 = vmatmul.mubr.f32.gmra.mrb[0].mxu0 %v1350
      %v1501 = vpop.f32.mrb[0].mxu0
      %v1502 = vadd.f32 0.0, %v1501
      %v1503 = vpop.f32.mrb[0].mxu0
      %1504 = vmatprep.mubr.f32.mxu0 %v1386
      %1505 = vmatmul.mubr.f32.gmra.mrb[0].mxu0 %v1352
      %v1506 = vpop.f32.mrb[0].mxu0
      %v1507 = vadd.f32 0.0, %v1506
      %v1508 = vpop.f32.mrb[0].mxu0
      %1509 = vmatprep.mubr.f32.mxu0 %v1389
      %1510 = vmatmul.mubr.f32.gmra.mrb[0].mxu0 %v1354
      %v1511 = vpop.f32.mrb[0].mxu0
      %v1512 = vadd.f32 0.0, %v1511
      %v1513 = vpop.f32.mrb[0].mxu0
      %1514 = vmatprep.mubr.f32.mxu0 %v1392
      %1515 = vmatmul.mubr.f32.gmra.mrb[0].mxu0 %v1356
      %v1516 = vpop.f32.mrb[0].mxu0
      %v1517 = vadd.f32 0.0, %v1516
      %v1518 = vpop.f32.mrb[0].mxu0
      %1519 = vmatprep.mubr.f32.mxu0 %v1395
      %1520 = vmatmul.mubr.f32.gmra.mrb[0].mxu0 %v1358
      %v1521 = vpop.f32.mrb[0].mxu0
      %v1522 = vadd.f32 0.0, %v1521
      %v1523 = vpop.f32.mrb[0].mxu0
      %1524 = vdwg.mxu0
      %v1525 = vpack.c.bf16 %v1472, %v1467
      %v1526 = vpack.c.bf16 %v1482, %v1477
      %v1527 = vpack.c.bf16 %v1492, %v1487
      %v1528 = vpack.c.bf16 %v1502, %v1497
      %v1529 = vpack.c.bf16 %v1512, %v1507
      %v1530 = vpack.c.bf16 %v1522, %v1517
      %1537 = vrot.lane.b32.xlu0 %v1525, 127
      %v1538 = vpop.permute.xlu0 %1537
      %1539 = vrot.lane.b32.xlu0 %v1526, 127
      %v1540 = vpop.permute.xlu0 %1539
      %1541 = vrot.lane.b32.xlu0 %v1527, 127
      %v1542 = vpop.permute.xlu0 %1541
      %1543 = vrot.lane.b32.xlu0 %v1528, 127
      %v1544 = vpop.permute.xlu0 %1543
      %1545 = vrot.lane.b32.xlu0 %v1529, 127
      %v1546 = vpop.permute.xlu0 %1545
      %1547 = vrot.lane.b32.xlu0 %v1530, 127
      %v1548 = vpop.permute.xlu0 %1547
      %1555 = vrot.lane.b32.xlu0 %v1525, 126
      %v1556 = vpop.permute.xlu0 %1555
      %1557 = vrot.lane.b32.xlu0 %v1526, 126
      %v1558 = vpop.permute.xlu0 %1557
      %1559 = vrot.lane.b32.xlu0 %v1527, 126
      %v1560 = vpop.permute.xlu0 %1559
      %1561 = vrot.lane.b32.xlu0 %v1528, 126
      %v1562 = vpop.permute.xlu0 %1561
      %1563 = vrot.lane.b32.xlu0 %v1529, 126
      %v1564 = vpop.permute.xlu0 %1563
      %1565 = vrot.lane.b32.xlu0 %v1530, 126
      %v1566 = vpop.permute.xlu0 %1565
      %1573 = vrot.lane.b32.xlu0 %v1525, 125
      %v1574 = vpop.permute.xlu0 %1573
      %1575 = vrot.lane.b32.xlu0 %v1526, 125
      %v1576 = vpop.permute.xlu0 %1575
      %1577 = vrot.lane.b32.xlu0 %v1527, 125
      %v1578 = vpop.permute.xlu0 %1577
      %1579 = vrot.lane.b32.xlu0 %v1528, 125
      %v1580 = vpop.permute.xlu0 %1579
      %1581 = vrot.lane.b32.xlu0 %v1529, 125
      %v1582 = vpop.permute.xlu0 %1581
      %1583 = vrot.lane.b32.xlu0 %v1530, 125
      %v1584 = vpop.permute.xlu0 %1583
      %1591 = vrot.lane.b32.xlu0 %v1525, 124
      %v1592 = vpop.permute.xlu0 %1591
      %1593 = vrot.lane.b32.xlu0 %v1526, 124
      %v1594 = vpop.permute.xlu0 %1593
      %1595 = vrot.lane.b32.xlu0 %v1527, 124
      %v1596 = vpop.permute.xlu0 %1595
      %1597 = vrot.lane.b32.xlu0 %v1528, 124
      %v1598 = vpop.permute.xlu0 %1597
      %1599 = vrot.lane.b32.xlu0 %v1529, 124
      %v1600 = vpop.permute.xlu0 %1599
      %1601 = vrot.lane.b32.xlu0 %v1530, 124
      %v1602 = vpop.permute.xlu0 %1601
      %v1609 = vld [vmem:[%s4] sm:$0xff]
      %v1610 = vld [vmem:[%s4 + $0x8] sm:$0xff]
      %v1611 = vld [vmem:[%s4 + $0x10] sm:$0xff]
      %v1612 = vld [vmem:[%s4 + $0x18] sm:$0xff]
      %v1613 = vld [vmem:[%s4 + $0x20] sm:$0xff]
      %v1614 = vld [vmem:[%s4 + $0x28] sm:$0xff]
      %v1615 = vld [vmem:[%s4 + $0x30] sm:$0xff]
      %v1616 = vld [vmem:[%s4 + $0x38] sm:$0xff]
      %v1617 = vld [vmem:[%s4 + $0x40] sm:$0xff]
      %v1618 = vld [vmem:[%s4 + $0x48] sm:$0xff]
      %v1619 = vld [vmem:[%s4 + $0x50] sm:$0xff]
      %v1620 = vld [vmem:[%s4 + $0x58] sm:$0xff]
      %v1621 = vld [vmem:[%s4 + $0x60] sm:$0xff]
      %v1622 = vld [vmem:[%s4 + $0x68] sm:$0xff]
      %v1623 = vld [vmem:[%s4 + $0x70] sm:$0xff]
      %v1624 = vld [vmem:[%s4 + $0x78] sm:$0xff]
      %v1625 = vld [vmem:[%s4 + $0x80] sm:$0xff]
      %v1626 = vld [vmem:[%s4 + $0x88] sm:$0xff]
      %v1627 = vld [vmem:[%s4 + $0x90] sm:$0xff]
      %v1628 = vld [vmem:[%s4 + $0x98] sm:$0xff]
      %v1629 = vld [vmem:[%s4 + $0xa0] sm:$0xff]
      %v1630 = vld [vmem:[%s4 + $0xa8] sm:$0xff]
      %v1631 = vld [vmem:[%s4 + $0xb0] sm:$0xff]
      %v1632 = vld [vmem:[%s4 + $0xb8] sm:$0xff]
      %v1633 = vld [vmem:[%s4 + $0xc0] sm:$0xff]
      %v1634 = vld [vmem:[%s4 + $0xc8] sm:$0xff]
      %v1635 = vld [vmem:[%s4 + $0xd0] sm:$0xff]
      %v1636 = vld [vmem:[%s4 + $0xd8] sm:$0xff]
      %v1637 = vld [vmem:[%s4 + $0xe0] sm:$0xff]
      %v1638 = vld [vmem:[%s4 + $0xe8] sm:$0xff]
      %v1639 = vld [vmem:[%s4 + $0xf0] sm:$0xff]
      %v1640 = vld [vmem:[%s4 + $0xf8] sm:$0xff]
      %v1641 = vld [vmem:[%s4 + $0x100] sm:$0xff]
      %v1642 = vld [vmem:[%s4 + $0x108] sm:$0xff]
      %v1643 = vld [vmem:[%s4 + $0x110] sm:$0xff]
      %v1644 = vld [vmem:[%s4 + $0x118] sm:$0xff]
      %v1645 = vld [vmem:[%s4 + $0x120] sm:$0xff]
      %v1646 = vld [vmem:[%s4 + $0x128] sm:$0xff]
      %v1647 = vld [vmem:[%s4 + $0x130] sm:$0xff]
      %v1648 = vld [vmem:[%s4 + $0x138] sm:$0xff]
      %1650 = vset.pattern.permute.xlu0 0
      %1651 = vperm.xlu0 %1650, %v409
      %v1652 = vpop.permute.xlu0 %1651
      %1655 = vset.pattern.permute.xlu0 0
      %1656 = vperm.xlu0 %1655, %v410
      %v1657 = vpop.permute.xlu0 %1656
      %1660 = vset.pattern.permute.xlu0 0
      %1661 = vperm.xlu0 %1660, %v411
      %v1662 = vpop.permute.xlu0 %1661
      %1665 = vset.pattern.permute.xlu0 0
      %1666 = vperm.xlu0 %1665, %v412
      %v1667 = vpop.permute.xlu0 %1666
      %1670 = vset.pattern.permute.xlu0 0
      %1671 = vperm.xlu0 %1670, %v413
      %v1672 = vpop.permute.xlu0 %1671
      %1675 = vset.pattern.permute.xlu0 0
      %1676 = vperm.xlu0 %1675, %v414
      %v1677 = vpop.permute.xlu0 %1676
      %1680 = vset.pattern.permute.xlu0 0
      %1681 = vperm.xlu0 %1680, %v415
      %v1682 = vpop.permute.xlu0 %1681
      %1685 = vset.pattern.permute.xlu0 0
      %1686 = vperm.xlu0 %1685, %v416
      %v1687 = vpop.permute.xlu0 %1686
      %1690 = vset.pattern.permute.xlu0 0
      %1691 = vperm.xlu0 %1690, %v417
      %v1692 = vpop.permute.xlu0 %1691
      %1695 = vset.pattern.permute.xlu0 0
      %1696 = vperm.xlu0 %1695, %v418
      %v1697 = vpop.permute.xlu0 %1696
      %1700 = vset.pattern.permute.xlu0 0
      %1701 = vperm.xlu0 %1700, %v419
      %v1702 = vpop.permute.xlu0 %1701
      %1705 = vset.pattern.permute.xlu0 0
      %1706 = vperm.xlu0 %1705, %v420
      %v1707 = vpop.permute.xlu0 %1706
      %1710 = vset.pattern.permute.xlu0 0
      %1711 = vperm.xlu0 %1710, %v421
      %v1712 = vpop.permute.xlu0 %1711
      %1715 = vset.pattern.permute.xlu0 0
      %1716 = vperm.xlu0 %1715, %v422
      %v1717 = vpop.permute.xlu0 %1716
      %1720 = vset.pattern.permute.xlu0 0
      %1721 = vperm.xlu0 %1720, %v423
      %v1722 = vpop.permute.xlu0 %1721
      %1725 = vset.pattern.permute.xlu0 0
      %1726 = vperm.xlu0 %1725, %v424
      %v1727 = vpop.permute.xlu0 %1726
      %1730 = vset.pattern.permute.xlu0 0
      %1731 = vperm.xlu0 %1730, %v425
      %v1732 = vpop.permute.xlu0 %1731
      %1735 = vset.pattern.permute.xlu0 0
      %1736 = vperm.xlu0 %1735, %v426
      %v1737 = vpop.permute.xlu0 %1736
      %1740 = vset.pattern.permute.xlu0 0
      %1741 = vperm.xlu0 %1740, %v427
      %v1742 = vpop.permute.xlu0 %1741
      %1745 = vset.pattern.permute.xlu0 0
      %1746 = vperm.xlu0 %1745, %v428
      %v1747 = vpop.permute.xlu0 %1746
      %v1789 = vunpack.c.l.b16 %v1609
      %v1790 = vunpack.c.h.b16 %v1609
      %v1791 = vunpack.c.l.b16 %v1610
      %v1792 = vunpack.c.h.b16 %v1610
      %v1793 = vunpack.c.l.b16 %v1611
      %v1794 = vunpack.c.h.b16 %v1611
      %v1795 = vunpack.c.l.b16 %v1612
      %v1796 = vunpack.c.h.b16 %v1612
      %v1797 = vunpack.c.l.b16 %v1613
      %v1798 = vunpack.c.h.b16 %v1613
      %v1799 = vunpack.c.l.b16 %v1614
      %v1800 = vunpack.c.h.b16 %v1614
      %v1801 = vunpack.c.l.b16 %v1615
      %v1802 = vunpack.c.h.b16 %v1615
      %v1803 = vunpack.c.l.b16 %v1616
      %v1804 = vunpack.c.h.b16 %v1616
      %v1805 = vunpack.c.l.b16 %v1617
      %v1806 = vunpack.c.h.b16 %v1617
      %v1807 = vunpack.c.l.b16 %v1618
      %v1808 = vunpack.c.h.b16 %v1618
      %v1809 = vunpack.c.l.b16 %v1619
      %v1810 = vunpack.c.h.b16 %v1619
      %v1811 = vunpack.c.l.b16 %v1620
      %v1812 = vunpack.c.h.b16 %v1620
      %v1813 = vunpack.c.l.b16 %v1621
      %v1814 = vunpack.c.h.b16 %v1621
      %v1815 = vunpack.c.l.b16 %v1622
      %v1816 = vunpack.c.h.b16 %v1622
      %v1817 = vunpack.c.l.b16 %v1623
      %v1818 = vunpack.c.h.b16 %v1623
      %v1819 = vunpack.c.l.b16 %v1624
      %v1820 = vunpack.c.h.b16 %v1624
      %v1821 = vunpack.c.l.b16 %v1625
      %v1822 = vunpack.c.h.b16 %v1625
      %v1823 = vunpack.c.l.b16 %v1626
      %v1824 = vunpack.c.h.b16 %v1626
      %v1825 = vunpack.c.l.b16 %v1627
      %v1826 = vunpack.c.h.b16 %v1627
      %v1827 = vunpack.c.l.b16 %v1628
      %v1828 = vunpack.c.h.b16 %v1628
      %v1829 = vunpack.c.l.b16 %v1629
      %v1830 = vunpack.c.h.b16 %v1629
      %v1831 = vunpack.c.l.b16 %v1630
      %v1832 = vunpack.c.h.b16 %v1630
      %v1833 = vunpack.c.l.b16 %v1631
      %v1834 = vunpack.c.h.b16 %v1631
      %v1835 = vunpack.c.l.b16 %v1632
      %v1836 = vunpack.c.h.b16 %v1632
      %v1837 = vunpack.c.l.b16 %v1633
      %v1838 = vunpack.c.h.b16 %v1633
      %v1839 = vunpack.c.l.b16 %v1634
      %v1840 = vunpack.c.h.b16 %v1634
      %v1841 = vunpack.c.l.b16 %v1635
      %v1842 = vunpack.c.h.b16 %v1635
      %v1843 = vunpack.c.l.b16 %v1636
      %v1844 = vunpack.c.h.b16 %v1636
      %v1845 = vunpack.c.l.b16 %v1637
      %v1846 = vunpack.c.h.b16 %v1637
      %v1847 = vunpack.c.l.b16 %v1638
      %v1848 = vunpack.c.h.b16 %v1638
      %v1849 = vunpack.c.l.b16 %v1639
      %v1850 = vunpack.c.h.b16 %v1639
      %v1851 = vunpack.c.l.b16 %v1640
      %v1852 = vunpack.c.h.b16 %v1640
      %v1853 = vunpack.c.l.b16 %v1641
      %v1854 = vunpack.c.h.b16 %v1641
      %v1855 = vunpack.c.l.b16 %v1642
      %v1856 = vunpack.c.h.b16 %v1642
      %v1857 = vunpack.c.l.b16 %v1643
      %v1858 = vunpack.c.h.b16 %v1643
      %v1859 = vunpack.c.l.b16 %v1644
      %v1860 = vunpack.c.h.b16 %v1644
      %v1861 = vunpack.c.l.b16 %v1645
      %v1862 = vunpack.c.h.b16 %v1645
      %v1863 = vunpack.c.l.b16 %v1646
      %v1864 = vunpack.c.h.b16 %v1646
      %v1865 = vunpack.c.l.b16 %v1647
      %v1866 = vunpack.c.h.b16 %v1647
      %v1867 = vunpack.c.l.b16 %v1648
      %v1868 = vunpack.c.h.b16 %v1648
      %v1869 = vpack.c.b16 %v1793, %v1789
      %v1870 = vpack.c.b16 %v1794, %v1790
      %v1871 = vpack.c.b16 %v1795, %v1791
      %v1872 = vpack.c.b16 %v1796, %v1792
      %v1873 = vpack.c.b16 %v1801, %v1797
      %v1874 = vpack.c.b16 %v1802, %v1798
      %v1875 = vpack.c.b16 %v1803, %v1799
      %v1876 = vpack.c.b16 %v1804, %v1800
      %v1877 = vpack.c.b16 %v1809, %v1805
      %v1878 = vpack.c.b16 %v1810, %v1806
      %v1879 = vpack.c.b16 %v1811, %v1807
      %v1880 = vpack.c.b16 %v1812, %v1808
      %v1881 = vpack.c.b16 %v1817, %v1813
      %v1882 = vpack.c.b16 %v1818, %v1814
      %v1883 = vpack.c.b16 %v1819, %v1815
      %v1884 = vpack.c.b16 %v1820, %v1816
      %v1885 = vpack.c.b16 %v1825, %v1821
      %v1886 = vpack.c.b16 %v1826, %v1822
      %v1887 = vpack.c.b16 %v1827, %v1823
      %v1888 = vpack.c.b16 %v1828, %v1824
      %v1889 = vpack.c.b16 %v1833, %v1829
      %v1890 = vpack.c.b16 %v1834, %v1830
      %v1891 = vpack.c.b16 %v1835, %v1831
      %v1892 = vpack.c.b16 %v1836, %v1832
      %v1893 = vpack.c.b16 %v1841, %v1837
      %v1894 = vpack.c.b16 %v1842, %v1838
      %v1895 = vpack.c.b16 %v1843, %v1839
      %v1896 = vpack.c.b16 %v1844, %v1840
      %v1897 = vpack.c.b16 %v1849, %v1845
      %v1898 = vpack.c.b16 %v1850, %v1846
      %v1899 = vpack.c.b16 %v1851, %v1847
      %v1900 = vpack.c.b16 %v1852, %v1848
      %v1901 = vpack.c.b16 %v1857, %v1853
      %v1902 = vpack.c.b16 %v1858, %v1854
      %v1903 = vpack.c.b16 %v1859, %v1855
      %v1904 = vpack.c.b16 %v1860, %v1856
      %v1905 = vpack.c.b16 %v1865, %v1861
      %v1906 = vpack.c.b16 %v1866, %v1862
      %v1907 = vpack.c.b16 %v1867, %v1863
      %v1908 = vpack.c.b16 %v1868, %v1864
      %vm1939 = vcmask 785408
      %v1941 = vsel %vm1939, %v1872, 0
      %v1944 = vsel %vm1939, %v1876, 0
      %v1947 = vsel %vm1939, %v1880, 0
      %v1950 = vsel %vm1939, %v1884, 0
      %v1953 = vsel %vm1939, %v1888, 0
      %v1956 = vsel %vm1939, %v1892, 0
      %v1959 = vsel %vm1939, %v1896, 0
      %v1962 = vsel %vm1939, %v1900, 0
      %v1965 = vsel %vm1939, %v1904, 0
      %v1968 = vsel %vm1939, %v1908, 0
      %1970 = vmatprep.subr.bf16.mxu0 0
      %1971 = vmatpush1.bf16.msra.mxu0 %v1525
      %1972 = vmatprep.subr.bf16.mxu0 0
      %1973 = vmatpush1.bf16.msra.mxu0 %v1526
      %1974 = vmatprep.subr.bf16.mxu0 0
      %1975 = vmatpush1.bf16.msra.mxu0 %v1527
      %1976 = vmatprep.subr.bf16.mxu0 0
      %1977 = vmatpush1.bf16.msra.mxu0 %v1528
      %1978 = vmatprep.subr.bf16.mxu0 0
      %1979 = vmatpush1.bf16.msra.mxu0 %v1529
      %1980 = vmatprep.subr.bf16.mxu0 0
      %1981 = vmatpush1.bf16.msra.mxu0 %v1530
      %1982 = vmatprep.subr.bf16.mxu0 0
      %1983 = vmatpush1.bf16.msra.mxu0 %v1538
      %1984 = vmatprep.subr.bf16.mxu0 0
      %1985 = vmatpush1.bf16.msra.mxu0 %v1540
      %1986 = vmatprep.subr.bf16.mxu0 0
      %1987 = vmatpush1.bf16.msra.mxu0 %v1542
      %1988 = vmatprep.subr.bf16.mxu0 0
      %1989 = vmatpush1.bf16.msra.mxu0 %v1544
      %1990 = vmatprep.subr.bf16.mxu0 0
      %1991 = vmatpush1.bf16.msra.mxu0 %v1546
      %1992 = vmatprep.subr.bf16.mxu0 0
      %1993 = vmatpush1.bf16.msra.mxu0 %v1548
      %1994 = vmatprep.subr.bf16.mxu0 0
      %1995 = vmatpush1.bf16.msra.mxu0 %v1556
      %1996 = vmatprep.subr.bf16.mxu0 0
      %1997 = vmatpush1.bf16.msra.mxu0 %v1558
      %1998 = vmatprep.subr.bf16.mxu0 0
      %1999 = vmatpush1.bf16.msra.mxu0 %v1560
      %2000 = vmatprep.subr.bf16.mxu0 0
      %2001 = vmatpush1.bf16.msra.mxu0 %v1562
      %2002 = vmatprep.mubr.bf16.mxu0 %v1870
      %2003 = vmatmul.mubr.bf16.gmra.mrb[0].mxu0 %v1869
      %v2004 = vpop.f32.mrb[0].mxu0
      %v2005 = vadd.f32 %v1652, %v2004
      %v2006 = vpop.f32.mrb[0].mxu0
      %v2007 = vpop.f32.mrb[0].mxu0
      %v2008 = vadd.f32 %v1657, %v2007
      %v2009 = vpop.f32.mrb[0].mxu0
      %2010 = vmatprep.mubr.bf16.mxu0 %v1874
      %2011 = vmatmul.mubr.bf16.gmra.mrb[0].mxu0 %v1873
      %v2012 = vpop.f32.mrb[0].mxu0
      %v2013 = vadd.f32 %v1662, %v2012
      %v2014 = vpop.f32.mrb[0].mxu0
      %v2015 = vpop.f32.mrb[0].mxu0
      %v2016 = vadd.f32 %v1667, %v2015
      %v2017 = vpop.f32.mrb[0].mxu0
      %2018 = vmatprep.mubr.bf16.mxu0 %v1878
      %2019 = vmatmul.mubr.bf16.gmra.mrb[0].mxu0 %v1877
      %v2020 = vpop.f32.mrb[0].mxu0
      %v2021 = vadd.f32 %v1672, %v2020
      %v2022 = vpop.f32.mrb[0].mxu0
      %v2023 = vpop.f32.mrb[0].mxu0
      %v2024 = vadd.f32 %v1677, %v2023
      %v2025 = vpop.f32.mrb[0].mxu0
      %2026 = vmatprep.mubr.bf16.mxu0 %v1882
      %2027 = vmatmul.mubr.bf16.gmra.mrb[0].mxu0 %v1881
      %v2028 = vpop.f32.mrb[0].mxu0
      %v2029 = vadd.f32 %v1682, %v2028
      %v2030 = vpop.f32.mrb[0].mxu0
      %v2031 = vpop.f32.mrb[0].mxu0
      %v2032 = vadd.f32 %v1687, %v2031
      %v2033 = vpop.f32.mrb[0].mxu0
      %2034 = vmatprep.mubr.bf16.mxu0 %v1886
      %2035 = vmatmul.mubr.bf16.gmra.mrb[0].mxu0 %v1885
      %v2036 = vpop.f32.mrb[0].mxu0
      %v2037 = vadd.f32 %v1692, %v2036
      %v2038 = vpop.f32.mrb[0].mxu0
      %v2039 = vpop.f32.mrb[0].mxu0
      %v2040 = vadd.f32 %v1697, %v2039
      %v2041 = vpop.f32.mrb[0].mxu0
      %2042 = vmatprep.mubr.bf16.mxu0 %v1890
      %2043 = vmatmul.mubr.bf16.gmra.mrb[0].mxu0 %v1889
      %v2044 = vpop.f32.mrb[0].mxu0
      %v2045 = vadd.f32 %v1702, %v2044
      %v2046 = vpop.f32.mrb[0].mxu0
      %v2047 = vpop.f32.mrb[0].mxu0
      %v2048 = vadd.f32 %v1707, %v2047
      %v2049 = vpop.f32.mrb[0].mxu0
      %2050 = vmatprep.mubr.bf16.mxu0 %v1894
      %2051 = vmatmul.mubr.bf16.gmra.mrb[0].mxu0 %v1893
      %v2052 = vpop.f32.mrb[0].mxu0
      %v2053 = vadd.f32 %v1712, %v2052
      %v2054 = vpop.f32.mrb[0].mxu0
      %v2055 = vpop.f32.mrb[0].mxu0
      %v2056 = vadd.f32 %v1717, %v2055
      %v2057 = vpop.f32.mrb[0].mxu0
      %2058 = vmatprep.mubr.bf16.mxu0 %v1898
      %2059 = vmatmul.mubr.bf16.gmra.mrb[0].mxu0 %v1897
      %v2060 = vpop.f32.mrb[0].mxu0
      %v2061 = vadd.f32 %v1722, %v2060
      %v2062 = vpop.f32.mrb[0].mxu0
      %v2063 = vpop.f32.mrb[0].mxu0
      %v2064 = vadd.f32 %v1727, %v2063
      %v2065 = vpop.f32.mrb[0].mxu0
      %2066 = vmatprep.mubr.bf16.mxu0 %v1902
      %2067 = vmatmul.mubr.bf16.gmra.mrb[0].mxu0 %v1901
      %v2068 = vpop.f32.mrb[0].mxu0
      %v2069 = vadd.f32 %v1732, %v2068
      %v2070 = vpop.f32.mrb[0].mxu0
      %v2071 = vpop.f32.mrb[0].mxu0
      %v2072 = vadd.f32 %v1737, %v2071
      %v2073 = vpop.f32.mrb[0].mxu0
      %2074 = vmatprep.mubr.bf16.mxu0 %v1906
      %2075 = vmatmul.mubr.bf16.gmra.mrb[0].mxu0 %v1905
      %v2076 = vpop.f32.mrb[0].mxu0
      %v2077 = vadd.f32 %v1742, %v2076
      %v2078 = vpop.f32.mrb[0].mxu0
      %v2079 = vpop.f32.mrb[0].mxu0
      %v2080 = vadd.f32 %v1747, %v2079
      %v2081 = vpop.f32.mrb[0].mxu0
      %2082 = vdwg.mxu0
      %2083 = vmatprep.subr.bf16.mxu0 0
      %2084 = vmatpush1.bf16.msra.mxu0 %v1564
      %2085 = vmatprep.subr.bf16.mxu0 0
      %2086 = vmatpush1.bf16.msra.mxu0 %v1566
      %2087 = vmatprep.subr.bf16.mxu0 0
      %2088 = vmatpush1.bf16.msra.mxu0 %v1574
      %2089 = vmatprep.subr.bf16.mxu0 0
      %2090 = vmatpush1.bf16.msra.mxu0 %v1576
      %2091 = vmatprep.subr.bf16.mxu0 0
      %2092 = vmatpush1.bf16.msra.mxu0 %v1578
      %2093 = vmatprep.subr.bf16.mxu0 0
      %2094 = vmatpush1.bf16.msra.mxu0 %v1580
      %2095 = vmatprep.subr.bf16.mxu0 0
      %2096 = vmatpush1.bf16.msra.mxu0 %v1582
      %2097 = vmatprep.subr.bf16.mxu0 0
      %2098 = vmatpush1.bf16.msra.mxu0 %v1584
      %2099 = vmatprep.subr.bf16.mxu0 0
      %2100 = vmatpush1.bf16.msra.mxu0 %v1592
      %2101 = vmatprep.subr.bf16.mxu0 0
      %2102 = vmatpush1.bf16.msra.mxu0 %v1594
      %2103 = vmatprep.subr.bf16.mxu0 0
      %2104 = vmatpush1.bf16.msra.mxu0 %v1596
      %2105 = vmatprep.subr.bf16.mxu0 0
      %2106 = vmatpush1.bf16.msra.mxu0 %v1598
      %2107 = vmatprep.subr.bf16.mxu0 0
      %2108 = vmatpush1.bf16.msra.mxu0 %v1600
      %2109 = vmatprep.subr.bf16.mxu0 0
      %2110 = vmatpush1.bf16.msra.mxu0 %v1602
      %2111 = vmatprep.subr.bf16.mxu0 0
      %2112 = vmatpush1.bf16.msra.mxu0 0
      %2113 = vmatprep.subr.bf16.mxu0 0
      %2114 = vmatpush1.bf16.msra.mxu0 0
      %2115 = vmatprep.mubr.bf16.mxu0 %v1941
      %2116 = vmatmul.mubr.bf16.gmra.mrb[0].mxu0 %v1871
      %v2117 = vpop.f32.mrb[0].mxu0
      %v2118 = vadd.f32 %v2005, %v2117
      %v2119 = vpop.f32.mrb[0].mxu0
      %v2120 = vpop.f32.mrb[0].mxu0
      %v2121 = vadd.f32 %v2008, %v2120
      %v2122 = vpop.f32.mrb[0].mxu0
      %2123 = vmatprep.mubr.bf16.mxu0 %v1944
      %2124 = vmatmul.mubr.bf16.gmra.mrb[0].mxu0 %v1875
      %v2125 = vpop.f32.mrb[0].mxu0
      %v2126 = vadd.f32 %v2013, %v2125
      %v2127 = vpop.f32.mrb[0].mxu0
      %v2128 = vpop.f32.mrb[0].mxu0
      %v2129 = vadd.f32 %v2016, %v2128
      %v2130 = vpop.f32.mrb[0].mxu0
      %2131 = vmatprep.mubr.bf16.mxu0 %v1947
      %2132 = vmatmul.mubr.bf16.gmra.mrb[0].mxu0 %v1879
      %v2133 = vpop.f32.mrb[0].mxu0
      %v2134 = vadd.f32 %v2021, %v2133
      %v2135 = vpop.f32.mrb[0].mxu0
      %v2136 = vpop.f32.mrb[0].mxu0
      %v2137 = vadd.f32 %v2024, %v2136
      %v2138 = vpop.f32.mrb[0].mxu0
      %2139 = vmatprep.mubr.bf16.mxu0 %v1950
      %2140 = vmatmul.mubr.bf16.gmra.mrb[0].mxu0 %v1883
      %v2141 = vpop.f32.mrb[0].mxu0
      %v2142 = vadd.f32 %v2029, %v2141
      %v2143 = vpop.f32.mrb[0].mxu0
      %v2144 = vpop.f32.mrb[0].mxu0
      %v2145 = vadd.f32 %v2032, %v2144
      %v2146 = vpop.f32.mrb[0].mxu0
      %2147 = vmatprep.mubr.bf16.mxu0 %v1953
      %2148 = vmatmul.mubr.bf16.gmra.mrb[0].mxu0 %v1887
      %v2149 = vpop.f32.mrb[0].mxu0
      %v2150 = vadd.f32 %v2037, %v2149
      %v2151 = vpop.f32.mrb[0].mxu0
      %v2152 = vpop.f32.mrb[0].mxu0
      %v2153 = vadd.f32 %v2040, %v2152
      %v2154 = vpop.f32.mrb[0].mxu0
      %2155 = vmatprep.mubr.bf16.mxu0 %v1956
      %2156 = vmatmul.mubr.bf16.gmra.mrb[0].mxu0 %v1891
      %v2157 = vpop.f32.mrb[0].mxu0
      %v2158 = vadd.f32 %v2045, %v2157
      %v2159 = vpop.f32.mrb[0].mxu0
      %v2160 = vpop.f32.mrb[0].mxu0
      %v2161 = vadd.f32 %v2048, %v2160
      %v2162 = vpop.f32.mrb[0].mxu0
      %2163 = vmatprep.mubr.bf16.mxu0 %v1959
      %2164 = vmatmul.mubr.bf16.gmra.mrb[0].mxu0 %v1895
      %v2165 = vpop.f32.mrb[0].mxu0
      %v2166 = vadd.f32 %v2053, %v2165
      %v2167 = vpop.f32.mrb[0].mxu0
      %v2168 = vpop.f32.mrb[0].mxu0
      %v2169 = vadd.f32 %v2056, %v2168
      %v2170 = vpop.f32.mrb[0].mxu0
      %2171 = vmatprep.mubr.bf16.mxu0 %v1962
      %2172 = vmatmul.mubr.bf16.gmra.mrb[0].mxu0 %v1899
      %v2173 = vpop.f32.mrb[0].mxu0
      %v2174 = vadd.f32 %v2061, %v2173
      %v2175 = vpop.f32.mrb[0].mxu0
      %v2176 = vpop.f32.mrb[0].mxu0
      %v2177 = vadd.f32 %v2064, %v2176
      %v2178 = vpop.f32.mrb[0].mxu0
      %2179 = vmatprep.mubr.bf16.mxu0 %v1965
      %2180 = vmatmul.mubr.bf16.gmra.mrb[0].mxu0 %v1903
      %v2181 = vpop.f32.mrb[0].mxu0
      %v2182 = vadd.f32 %v2069, %v2181
      %v2183 = vpop.f32.mrb[0].mxu0
      %v2184 = vpop.f32.mrb[0].mxu0
      %v2185 = vadd.f32 %v2072, %v2184
      %v2186 = vpop.f32.mrb[0].mxu0
      %2187 = vmatprep.mubr.bf16.mxu0 %v1968
      %2188 = vmatmul.mubr.bf16.gmra.mrb[0].mxu0 %v1907
      %v2189 = vpop.f32.mrb[0].mxu0
      %v2190 = vadd.f32 %v2077, %v2189
      %v2191 = vpop.f32.mrb[0].mxu0
      %v2192 = vpop.f32.mrb[0].mxu0
      %v2193 = vadd.f32 %v2080, %v2192
      %v2194 = vpop.f32.mrb[0].mxu0
      %2195 = vdwg.mxu0
      %2216 = vrot.lane.b32.xlu0 %v2118, 127
      %v2217 = vpop.permute.xlu0 %2216
      %2218 = vrot.lane.b32.xlu0 %v2121, 127
      %v2219 = vpop.permute.xlu0 %2218
      %2220 = vrot.lane.b32.xlu0 %v2126, 127
      %v2221 = vpop.permute.xlu0 %2220
      %2222 = vrot.lane.b32.xlu0 %v2129, 127
      %v2223 = vpop.permute.xlu0 %2222
      %2224 = vrot.lane.b32.xlu0 %v2134, 127
      %v2225 = vpop.permute.xlu0 %2224
      %2226 = vrot.lane.b32.xlu0 %v2137, 127
      %v2227 = vpop.permute.xlu0 %2226
      %2228 = vrot.lane.b32.xlu0 %v2142, 127
      %v2229 = vpop.permute.xlu0 %2228
      %2230 = vrot.lane.b32.xlu0 %v2145, 127
      %v2231 = vpop.permute.xlu0 %2230
      %2232 = vrot.lane.b32.xlu0 %v2150, 127
      %v2233 = vpop.permute.xlu0 %2232
      %2234 = vrot.lane.b32.xlu0 %v2153, 127
      %v2235 = vpop.permute.xlu0 %2234
      %2236 = vrot.lane.b32.xlu0 %v2158, 127
      %v2237 = vpop.permute.xlu0 %2236
      %2238 = vrot.lane.b32.xlu0 %v2161, 127
      %v2239 = vpop.permute.xlu0 %2238
      %2240 = vrot.lane.b32.xlu0 %v2166, 127
      %v2241 = vpop.permute.xlu0 %2240
      %2242 = vrot.lane.b32.xlu0 %v2169, 127
      %v2243 = vpop.permute.xlu0 %2242
      %2244 = vrot.lane.b32.xlu0 %v2174, 127
      %v2245 = vpop.permute.xlu0 %2244
      %2246 = vrot.lane.b32.xlu0 %v2177, 127
      %v2247 = vpop.permute.xlu0 %2246
      %2248 = vrot.lane.b32.xlu0 %v2182, 127
      %v2249 = vpop.permute.xlu0 %2248
      %2250 = vrot.lane.b32.xlu0 %v2185, 127
      %v2251 = vpop.permute.xlu0 %2250
      %2252 = vrot.lane.b32.xlu0 %v2190, 127
      %v2253 = vpop.permute.xlu0 %2252
      %2254 = vrot.lane.b32.xlu0 %v2193, 127
      %v2255 = vpop.permute.xlu0 %2254
      %v2276 = vmax.f32 %v2118, %v2217
      %v2277 = vmax.f32 %v2121, %v2219
      %v2278 = vmax.f32 %v2126, %v2221
      %v2279 = vmax.f32 %v2129, %v2223
      %v2280 = vmax.f32 %v2134, %v2225
      %v2281 = vmax.f32 %v2137, %v2227
      %v2282 = vmax.f32 %v2142, %v2229
      %v2283 = vmax.f32 %v2145, %v2231
      %v2284 = vmax.f32 %v2150, %v2233
      %v2285 = vmax.f32 %v2153, %v2235
      %v2286 = vmax.f32 %v2158, %v2237
      %v2287 = vmax.f32 %v2161, %v2239
      %v2288 = vmax.f32 %v2166, %v2241
      %v2289 = vmax.f32 %v2169, %v2243
      %v2290 = vmax.f32 %v2174, %v2245
      %v2291 = vmax.f32 %v2177, %v2247
      %v2292 = vmax.f32 %v2182, %v2249
      %v2293 = vmax.f32 %v2185, %v2251
      %v2294 = vmax.f32 %v2190, %v2253
      %v2295 = vmax.f32 %v2193, %v2255
      %v2296 = vld [vmem:[%s5] sm:$0xff]
      %v2297 = vld [vmem:[%s5 + $0x8] sm:$0xff]
      %v2298 = vld [vmem:[%s5 + $0x10] sm:$0xff]
      %v2299 = vld [vmem:[%s5 + $0x18] sm:$0xff]
      %v2300 = vld [vmem:[%s5 + $0x20] sm:$0xff]
      %v2301 = vld [vmem:[%s5 + $0x28] sm:$0xff]
      %v2302 = vld [vmem:[%s5 + $0x30] sm:$0xff]
      %v2303 = vld [vmem:[%s5 + $0x38] sm:$0xff]
      %v2304 = vld [vmem:[%s5 + $0x40] sm:$0xff]
      %v2305 = vld [vmem:[%s5 + $0x48] sm:$0xff]
      %v2306 = vld [vmem:[%s5 + $0x50] sm:$0xff]
      %v2307 = vld [vmem:[%s5 + $0x58] sm:$0xff]
      %v2308 = vld [vmem:[%s5 + $0x60] sm:$0xff]
      %v2309 = vld [vmem:[%s5 + $0x68] sm:$0xff]
      %v2310 = vld [vmem:[%s5 + $0x70] sm:$0xff]
      %v2311 = vld [vmem:[%s5 + $0x78] sm:$0x7f]
      %v2313 = vsel %vm994, %v2276, 0
      %v2316 = vsel %vm994, %v2277, 0
      %v2319 = vsel %vm994, %v2278, 0
      %v2322 = vsel %vm994, %v2279, 0
      %v2325 = vsel %vm994, %v2280, 0
      %v2328 = vsel %vm994, %v2281, 0
      %v2331 = vsel %vm994, %v2282, 0
      %v2334 = vsel %vm994, %v2283, 0
      %v2337 = vsel %vm994, %v2284, 0
      %v2340 = vsel %vm994, %v2285, 0
      %v2343 = vsel %vm994, %v2286, 0
      %v2346 = vsel %vm994, %v2287, 0
      %v2349 = vsel %vm994, %v2288, 0
      %v2352 = vsel %vm994, %v2289, 0
      %v2355 = vsel %vm994, %v2290, 0
      %v2358 = vsel %vm994, %v2291, 0
      %v2361 = vsel %vm994, %v2292, 0
      %v2364 = vsel %vm994, %v2293, 0
      %v2367 = vsel %vm994, %v2294, 0
      %v2370 = vsel %vm994, %v2295, 0
      %v2373 = vsel %vm1058, %v2311, 0
      %2375 = vmatprep.subr.mxu0 0.0
      %2376 = vmatpush1.msra.mxu0 %v2296
      %2377 = vmatprep.subr.mxu0 0.0
      %2378 = vmatpush1.msra.mxu0 %v2297
      %2379 = vmatprep.subr.mxu0 0.0
      %2380 = vmatpush1.msra.mxu0 %v2298
      %2381 = vmatprep.subr.mxu0 0.0
      %2382 = vmatpush1.msra.mxu0 %v2299
      %2383 = vmatprep.subr.mxu0 0.0
      %2384 = vmatpush1.msra.mxu0 %v2300
      %2385 = vmatprep.subr.mxu0 0.0
      %2386 = vmatpush1.msra.mxu0 %v2301
      %2387 = vmatprep.subr.mxu0 0.0
      %2388 = vmatpush1.msra.mxu0 %v2302
      %2389 = vmatprep.subr.mxu0 0.0
      %2390 = vmatpush1.msra.mxu0 %v2303
      %2391 = vmatprep.subr.mxu0 0.0
      %2392 = vmatpush1.msra.mxu0 %v2304
      %2393 = vmatprep.subr.mxu0 0.0
      %2394 = vmatpush1.msra.mxu0 %v2305
      %2395 = vmatprep.subr.mxu0 0.0
      %2396 = vmatpush1.msra.mxu0 %v2306
      %2397 = vmatprep.subr.mxu0 0.0
      %2398 = vmatpush1.msra.mxu0 %v2307
      %2399 = vmatprep.subr.mxu0 0.0
      %2400 = vmatpush1.msra.mxu0 %v2308
      %2401 = vmatprep.subr.mxu0 0.0
      %2402 = vmatpush1.msra.mxu0 %v2309
      %2403 = vmatprep.subr.mxu0 0.0
      %2404 = vmatpush1.msra.mxu0 %v2310
      %2405 = vmatprep.subr.mxu0 0.0
      %2406 = vmatpush1.msra.mxu0 %v2373
      %2407 = vmatprep.subr.mxu0 0.0
      %2408 = vmatpush1.msra.mxu0 0.0
      %2409 = vmatprep.subr.mxu0 0.0
      %2410 = vmatpush1.msra.mxu0 0.0
      %2411 = vmatprep.subr.mxu0 0.0
      %2412 = vmatpush1.msra.mxu0 0.0
      %2413 = vmatprep.subr.mxu0 0.0
      %2414 = vmatpush1.msra.mxu0 0.0
      %2415 = vmatprep.subr.mxu0 0.0
      %2416 = vmatpush1.msra.mxu0 0.0
      %2417 = vmatprep.subr.mxu0 0.0
      %2418 = vmatpush1.msra.mxu0 0.0
      %2419 = vmatprep.subr.mxu0 0.0
      %2420 = vmatpush1.msra.mxu0 0.0
      %2421 = vmatprep.subr.mxu0 0.0
      %2422 = vmatpush1.msra.mxu0 0.0
      %2423 = vmatprep.subr.mxu0 0.0
      %2424 = vmatpush1.msra.mxu0 0.0
      %2425 = vmatprep.subr.mxu0 0.0
      %2426 = vmatpush1.msra.mxu0 0.0
      %2427 = vmatprep.subr.mxu0 0.0
      %2428 = vmatpush1.msra.mxu0 0.0
      %2429 = vmatprep.subr.mxu0 0.0
      %2430 = vmatpush1.msra.mxu0 0.0
      %2431 = vmatprep.subr.mxu0 0.0
      %2432 = vmatpush1.msra.mxu0 0.0
      %2433 = vmatprep.subr.mxu0 0.0
      %2434 = vmatpush1.msra.mxu0 0.0
      %2435 = vmatprep.subr.mxu0 0.0
      %2436 = vmatpush1.msra.mxu0 0.0
      %2437 = vmatprep.subr.mxu0 0.0
      %2438 = vmatpush1.msra.mxu0 0.0
      %2439 = vmatprep.mubr.f32.mxu0 0.0
      %2440 = vmatmul.mubr.f32.gmra.mrb[0].mxu0 %v2313
      %v2441 = vpop.f32.mrb[0].mxu0
      %v2442 = vadd.f32 0.0, %v2441
      %v2443 = vpop.f32.mrb[0].mxu0
      %2444 = vmatprep.mubr.f32.mxu0 0.0
      %2445 = vmatmul.mubr.f32.gmra.mrb[0].mxu0 %v2316
      %v2446 = vpop.f32.mrb[0].mxu0
      %v2447 = vadd.f32 0.0, %v2446
      %v2448 = vpop.f32.mrb[0].mxu0
      %2449 = vmatprep.mubr.f32.mxu0 0.0
      %2450 = vmatmul.mubr.f32.gmra.mrb[0].mxu0 %v2319
      %v2451 = vpop.f32.mrb[0].mxu0
      %v2452 = vadd.f32 0.0, %v2451
      %v2453 = vpop.f32.mrb[0].mxu0
      %2454 = vmatprep.mubr.f32.mxu0 0.0
      %2455 = vmatmul.mubr.f32.gmra.mrb[0].mxu0 %v2322
      %v2456 = vpop.f32.mrb[0].mxu0
      %v2457 = vadd.f32 0.0, %v2456
      %v2458 = vpop.f32.mrb[0].mxu0
      %2459 = vmatprep.mubr.f32.mxu0 0.0
      %2460 = vmatmul.mubr.f32.gmra.mrb[0].mxu0 %v2325
      %v2461 = vpop.f32.mrb[0].mxu0
      %v2462 = vadd.f32 0.0, %v2461
      %v2463 = vpop.f32.mrb[0].mxu0
      %2464 = vmatprep.mubr.f32.mxu0 0.0
      %2465 = vmatmul.mubr.f32.gmra.mrb[0].mxu0 %v2328
      %v2466 = vpop.f32.mrb[0].mxu0
      %v2467 = vadd.f32 0.0, %v2466
      %v2468 = vpop.f32.mrb[0].mxu0
      %2469 = vmatprep.mubr.f32.mxu0 0.0
      %2470 = vmatmul.mubr.f32.gmra.mrb[0].mxu0 %v2331
      %v2471 = vpop.f32.mrb[0].mxu0
      %v2472 = vadd.f32 0.0, %v2471
      %v2473 = vpop.f32.mrb[0].mxu0
      %2474 = vmatprep.mubr.f32.mxu0 0.0
      %2475 = vmatmul.mubr.f32.gmra.mrb[0].mxu0 %v2334
      %v2476 = vpop.f32.mrb[0].mxu0
      %v2477 = vadd.f32 0.0, %v2476
      %v2478 = vpop.f32.mrb[0].mxu0
      %2479 = vmatprep.mubr.f32.mxu0 0.0
      %2480 = vmatmul.mubr.f32.gmra.mrb[0].mxu0 %v2337
      %v2481 = vpop.f32.mrb[0].mxu0
      %v2482 = vadd.f32 0.0, %v2481
      %v2483 = vpop.f32.mrb[0].mxu0
      %2484 = vmatprep.mubr.f32.mxu0 0.0
      %2485 = vmatmul.mubr.f32.gmra.mrb[0].mxu0 %v2340
      %v2486 = vpop.f32.mrb[0].mxu0
      %v2487 = vadd.f32 0.0, %v2486
      %v2488 = vpop.f32.mrb[0].mxu0
      %2489 = vmatprep.mubr.f32.mxu0 0.0
      %2490 = vmatmul.mubr.f32.gmra.mrb[0].mxu0 %v2343
      %v2491 = vpop.f32.mrb[0].mxu0
      %v2492 = vadd.f32 0.0, %v2491
      %v2493 = vpop.f32.mrb[0].mxu0
      %2494 = vmatprep.mubr.f32.mxu0 0.0
      %2495 = vmatmul.mubr.f32.gmra.mrb[0].mxu0 %v2346
      %v2496 = vpop.f32.mrb[0].mxu0
      %v2497 = vadd.f32 0.0, %v2496
      %v2498 = vpop.f32.mrb[0].mxu0
      %2499 = vmatprep.mubr.f32.mxu0 0.0
      %2500 = vmatmul.mubr.f32.gmra.mrb[0].mxu0 %v2349
      %v2501 = vpop.f32.mrb[0].mxu0
      %v2502 = vadd.f32 0.0, %v2501
      %v2503 = vpop.f32.mrb[0].mxu0
      %2504 = vmatprep.mubr.f32.mxu0 0.0
      %2505 = vmatmul.mubr.f32.gmra.mrb[0].mxu0 %v2352
      %v2506 = vpop.f32.mrb[0].mxu0
      %v2507 = vadd.f32 0.0, %v2506
      %v2508 = vpop.f32.mrb[0].mxu0
      %2509 = vmatprep.mubr.f32.mxu0 0.0
      %2510 = vmatmul.mubr.f32.gmra.mrb[0].mxu0 %v2355
      %v2511 = vpop.f32.mrb[0].mxu0
      %v2512 = vadd.f32 0.0, %v2511
      %v2513 = vpop.f32.mrb[0].mxu0
      %2514 = vmatprep.mubr.f32.mxu0 0.0
      %2515 = vmatmul.mubr.f32.gmra.mrb[0].mxu0 %v2358
      %v2516 = vpop.f32.mrb[0].mxu0
      %v2517 = vadd.f32 0.0, %v2516
      %v2518 = vpop.f32.mrb[0].mxu0
      %2519 = vmatprep.mubr.f32.mxu0 0.0
      %2520 = vmatmul.mubr.f32.gmra.mrb[0].mxu0 %v2361
      %v2521 = vpop.f32.mrb[0].mxu0
      %v2522 = vadd.f32 0.0, %v2521
      %v2523 = vpop.f32.mrb[0].mxu0
      %2524 = vmatprep.mubr.f32.mxu0 0.0
      %2525 = vmatmul.mubr.f32.gmra.mrb[0].mxu0 %v2364
      %v2526 = vpop.f32.mrb[0].mxu0
      %v2527 = vadd.f32 0.0, %v2526
      %v2528 = vpop.f32.mrb[0].mxu0
      %2529 = vmatprep.mubr.f32.mxu0 0.0
      %2530 = vmatmul.mubr.f32.gmra.mrb[0].mxu0 %v2367
      %v2531 = vpop.f32.mrb[0].mxu0
      %v2532 = vadd.f32 0.0, %v2531
      %v2533 = vpop.f32.mrb[0].mxu0
      %2534 = vmatprep.mubr.f32.mxu0 0.0
      %2535 = vmatmul.mubr.f32.gmra.mrb[0].mxu0 %v2370
      %v2536 = vpop.f32.mrb[0].mxu0
      %v2537 = vadd.f32 0.0, %v2536
      %v2538 = vpop.f32.mrb[0].mxu0
      %2539 = vdwg.mxu0
      %v2560 = vrot.slane %v2442, 1
      %v2561 = vrot.slane %v2447, 1
      %v2562 = vsel %vm1058, %v2560, %v2561
      %v2563 = vrot.slane %v2452, 1
      %v2564 = vsel %vm1058, %v2561, %v2563
      %v2565 = vrot.slane %v2457, 1
      %v2566 = vsel %vm1058, %v2563, %v2565
      %v2567 = vrot.slane %v2462, 1
      %v2568 = vsel %vm1058, %v2565, %v2567
      %v2569 = vrot.slane %v2467, 1
      %v2570 = vsel %vm1058, %v2567, %v2569
      %v2571 = vrot.slane %v2472, 1
      %v2572 = vsel %vm1058, %v2569, %v2571
      %v2573 = vrot.slane %v2477, 1
      %v2574 = vsel %vm1058, %v2571, %v2573
      %v2575 = vrot.slane %v2482, 1
      %v2576 = vsel %vm1058, %v2573, %v2575
      %v2577 = vrot.slane %v2487, 1
      %v2578 = vsel %vm1058, %v2575, %v2577
      %v2579 = vrot.slane %v2492, 1
      %v2580 = vsel %vm1058, %v2577, %v2579
      %v2581 = vrot.slane %v2497, 1
      %v2582 = vsel %vm1058, %v2579, %v2581
      %v2583 = vrot.slane %v2502, 1
      %v2584 = vsel %vm1058, %v2581, %v2583
      %v2585 = vrot.slane %v2507, 1
      %v2586 = vsel %vm1058, %v2583, %v2585
      %v2587 = vrot.slane %v2512, 1
      %v2588 = vsel %vm1058, %v2585, %v2587
      %v2589 = vrot.slane %v2517, 1
      %v2590 = vsel %vm1058, %v2587, %v2589
      %v2591 = vrot.slane %v2522, 1
      %v2592 = vsel %vm1058, %v2589, %v2591
      %v2593 = vrot.slane %v2527, 1
      %v2594 = vsel %vm1058, %v2591, %v2593
      %v2595 = vrot.slane %v2532, 1
      %v2596 = vsel %vm1058, %v2593, %v2595
      %v2597 = vrot.slane %v2537, 1
      %v2598 = vsel %vm1058, %v2595, %v2597
      %v2619 = vmax.f32 %v2442, %v2562
      %v2620 = vmax.f32 %v2447, %v2564
      %v2621 = vmax.f32 %v2452, %v2566
      %v2622 = vmax.f32 %v2457, %v2568
      %v2623 = vmax.f32 %v2462, %v2570
      %v2624 = vmax.f32 %v2467, %v2572
      %v2625 = vmax.f32 %v2472, %v2574
      %v2626 = vmax.f32 %v2477, %v2576
      %v2627 = vmax.f32 %v2482, %v2578
      %v2628 = vmax.f32 %v2487, %v2580
      %v2629 = vmax.f32 %v2492, %v2582
      %v2630 = vmax.f32 %v2497, %v2584
      %v2631 = vmax.f32 %v2502, %v2586
      %v2632 = vmax.f32 %v2507, %v2588
      %v2633 = vmax.f32 %v2512, %v2590
      %v2634 = vmax.f32 %v2517, %v2592
      %v2635 = vmax.f32 %v2522, %v2594
      %v2636 = vmax.f32 %v2527, %v2596
      %v2637 = vmax.f32 %v2532, %v2598
      %v2638 = vmax.f32 %v2537, %v2597
      %v2639 = vld [vmem:[%s6] sm:$0xff]
      %v2640 = vld [vmem:[%s6 + $0x8] sm:$0xff]
      %v2641 = vld [vmem:[%s6 + $0x10] sm:$0xff]
      %v2642 = vld [vmem:[%s6 + $0x18] sm:$0xff]
      %v2643 = vld [vmem:[%s6 + $0x20] sm:$0xff]
      %v2644 = vld [vmem:[%s6 + $0x28] sm:$0xff]
      %v2645 = vld [vmem:[%s6 + $0x30] sm:$0xff]
      %v2646 = vld [vmem:[%s6 + $0x38] sm:$0xff]
      %v2647 = vld [vmem:[%s6 + $0x40] sm:$0xff]
      %v2648 = vld [vmem:[%s6 + $0x48] sm:$0xff]
      %v2649 = vld [vmem:[%s6 + $0x50] sm:$0xff]
      %v2650 = vld [vmem:[%s6 + $0x58] sm:$0xff]
      %v2651 = vld [vmem:[%s6 + $0x60] sm:$0xff]
      %v2652 = vld [vmem:[%s6 + $0x68] sm:$0xff]
      %v2653 = vld [vmem:[%s6 + $0x70] sm:$0xff]
      %v2654 = vld [vmem:[%s6 + $0x78] sm:$0xff]
      %v2655 = vld [vmem:[%s6 + $0x80] sm:$0xff]
      %v2656 = vld [vmem:[%s6 + $0x88] sm:$0xff]
      %v2657 = vld [vmem:[%s6 + $0x90] sm:$0xff]
      %v2658 = vld [vmem:[%s6 + $0x98] sm:$0xff]
      %vm2659 = vcmask 252928
      %v2661 = vsel %vm2659, %v2640, 0
      %v2664 = vsel %vm2659, %v2642, 0
      %v2667 = vsel %vm2659, %v2644, 0
      %v2670 = vsel %vm2659, %v2646, 0
      %v2673 = vsel %vm2659, %v2648, 0
      %v2676 = vsel %vm2659, %v2650, 0
      %v2679 = vsel %vm2659, %v2652, 0
      %v2682 = vsel %vm2659, %v2654, 0
      %v2685 = vsel %vm2659, %v2656, 0
      %v2688 = vsel %vm2659, %v2658, 0
      %v2691 = vsel %vm1058, %v2638, 0
      %2693 = vmatprep.subr.mxu0 0.0
      %2694 = vmatpush1.msra.mxu0 %v2619
      %2695 = vmatprep.subr.mxu0 0.0
      %2696 = vmatpush1.msra.mxu0 %v2620
      %2697 = vmatprep.subr.mxu0 0.0
      %2698 = vmatpush1.msra.mxu0 %v2621
      %2699 = vmatprep.subr.mxu0 0.0
      %2700 = vmatpush1.msra.mxu0 %v2622
      %2701 = vmatprep.subr.mxu0 0.0
      %2702 = vmatpush1.msra.mxu0 %v2623
      %2703 = vmatprep.subr.mxu0 0.0
      %2704 = vmatpush1.msra.mxu0 %v2624
      %2705 = vmatprep.subr.mxu0 0.0
      %2706 = vmatpush1.msra.mxu0 %v2625
      %2707 = vmatprep.subr.mxu0 0.0
      %2708 = vmatpush1.msra.mxu0 %v2626
      %2709 = vmatprep.subr.mxu0 0.0
      %2710 = vmatpush1.msra.mxu0 %v2627
      %2711 = vmatprep.subr.mxu0 0.0
      %2712 = vmatpush1.msra.mxu0 %v2628
      %2713 = vmatprep.subr.mxu0 0.0
      %2714 = vmatpush1.msra.mxu0 %v2629
      %2715 = vmatprep.subr.mxu0 0.0
      %2716 = vmatpush1.msra.mxu0 %v2630
      %2717 = vmatprep.subr.mxu0 0.0
      %2718 = vmatpush1.msra.mxu0 %v2631
      %2719 = vmatprep.subr.mxu0 0.0
      %2720 = vmatpush1.msra.mxu0 %v2632
      %2721 = vmatprep.subr.mxu0 0.0
      %2722 = vmatpush1.msra.mxu0 %v2633
      %2723 = vmatprep.subr.mxu0 0.0
      %2724 = vmatpush1.msra.mxu0 %v2634
      %2725 = vmatprep.subr.mxu0 0.0
      %2726 = vmatpush1.msra.mxu0 %v2635
      %2727 = vmatprep.subr.mxu0 0.0
      %2728 = vmatpush1.msra.mxu0 %v2636
      %2729 = vmatprep.subr.mxu0 0.0
      %2730 = vmatpush1.msra.mxu0 %v2637
      %2731 = vmatprep.subr.mxu0 0.0
      %2732 = vmatpush1.msra.mxu0 %v2691
      %2733 = vmatprep.subr.mxu0 0.0
      %2734 = vmatpush1.msra.mxu0 0.0
      %2735 = vmatprep.subr.mxu0 0.0
      %2736 = vmatpush1.msra.mxu0 0.0
      %2737 = vmatprep.subr.mxu0 0.0
      %2738 = vmatpush1.msra.mxu0 0.0
      %2739 = vmatprep.subr.mxu0 0.0
      %2740 = vmatpush1.msra.mxu0 0.0
      %2741 = vmatprep.subr.mxu0 0.0
      %2742 = vmatpush1.msra.mxu0 0.0
      %2743 = vmatprep.subr.mxu0 0.0
      %2744 = vmatpush1.msra.mxu0 0.0
      %2745 = vmatprep.subr.mxu0 0.0
      %2746 = vmatpush1.msra.mxu0 0.0
      %2747 = vmatprep.subr.mxu0 0.0
      %2748 = vmatpush1.msra.mxu0 0.0
      %2749 = vmatprep.subr.mxu0 0.0
      %2750 = vmatpush1.msra.mxu0 0.0
      %2751 = vmatprep.subr.mxu0 0.0
      %2752 = vmatpush1.msra.mxu0 0.0
      %2753 = vmatprep.subr.mxu0 0.0
      %2754 = vmatpush1.msra.mxu0 0.0
      %2755 = vmatprep.subr.mxu0 0.0
      %2756 = vmatpush1.msra.mxu0 0.0
      %2757 = vmatprep.mubr.f32.mxu0 %v2661
      %2758 = vmatmul.mubr.f32.gmra.mrb[0].mxu0 %v2639
      %v2759 = vpop.f32.mrb[0].mxu0
      %v2760 = vadd.f32 0.0, %v2759
      %v2761 = vpop.f32.mrb[0].mxu0
      %2762 = vmatprep.mubr.f32.mxu0 %v2664
      %2763 = vmatmul.mubr.f32.gmra.mrb[0].mxu0 %v2641
      %v2764 = vpop.f32.mrb[0].mxu0
      %v2765 = vadd.f32 0.0, %v2764
      %v2766 = vpop.f32.mrb[0].mxu0
      %2767 = vmatprep.mubr.f32.mxu0 %v2667
      %2768 = vmatmul.mubr.f32.gmra.mrb[0].mxu0 %v2643
      %v2769 = vpop.f32.mrb[0].mxu0
      %v2770 = vadd.f32 0.0, %v2769
      %v2771 = vpop.f32.mrb[0].mxu0
      %2772 = vmatprep.mubr.f32.mxu0 %v2670
      %2773 = vmatmul.mubr.f32.gmra.mrb[0].mxu0 %v2645
      %v2774 = vpop.f32.mrb[0].mxu0
      %v2775 = vadd.f32 0.0, %v2774
      %v2776 = vpop.f32.mrb[0].mxu0
      %2777 = vmatprep.mubr.f32.mxu0 %v2673
      %2778 = vmatmul.mubr.f32.gmra.mrb[0].mxu0 %v2647
      %v2779 = vpop.f32.mrb[0].mxu0
      %v2780 = vadd.f32 0.0, %v2779
      %v2781 = vpop.f32.mrb[0].mxu0
      %2782 = vmatprep.mubr.f32.mxu0 %v2676
      %2783 = vmatmul.mubr.f32.gmra.mrb[0].mxu0 %v2649
      %v2784 = vpop.f32.mrb[0].mxu0
      %v2785 = vadd.f32 0.0, %v2784
      %v2786 = vpop.f32.mrb[0].mxu0
      %2787 = vmatprep.mubr.f32.mxu0 %v2679
      %2788 = vmatmul.mubr.f32.gmra.mrb[0].mxu0 %v2651
      %v2789 = vpop.f32.mrb[0].mxu0
      %v2790 = vadd.f32 0.0, %v2789
      %v2791 = vpop.f32.mrb[0].mxu0
      %2792 = vmatprep.mubr.f32.mxu0 %v2682
      %2793 = vmatmul.mubr.f32.gmra.mrb[0].mxu0 %v2653
      %v2794 = vpop.f32.mrb[0].mxu0
      %v2795 = vadd.f32 0.0, %v2794
      %v2796 = vpop.f32.mrb[0].mxu0
      %2797 = vmatprep.mubr.f32.mxu0 %v2685
      %2798 = vmatmul.mubr.f32.gmra.mrb[0].mxu0 %v2655
      %v2799 = vpop.f32.mrb[0].mxu0
      %v2800 = vadd.f32 0.0, %v2799
      %v2801 = vpop.f32.mrb[0].mxu0
      %2802 = vmatprep.mubr.f32.mxu0 %v2688
      %2803 = vmatmul.mubr.f32.gmra.mrb[0].mxu0 %v2657
      %v2804 = vpop.f32.mrb[0].mxu0
      %v2805 = vadd.f32 0.0, %v2804
      %v2806 = vpop.f32.mrb[0].mxu0
      %2807 = vdwg.mxu0
      %vm2808 = vcmask 31744
      %2809 = vst.msk [vmem:[#allocation2] sm:$0xff] %vm2808, %v2760
      %2810 = vst.msk [vmem:[#allocation2 + $0x8] sm:$0xff] %vm2808, %v2765
      %2811 = vst.msk [vmem:[#allocation2 + $0x10] sm:$0xff] %vm2808, %v2770
      %2812 = vst.msk [vmem:[#allocation2 + $0x18] sm:$0xff] %vm2808, %v2775
      %2813 = vst.msk [vmem:[#allocation2 + $0x20] sm:$0xff] %vm2808, %v2780
      %2814 = vst.msk [vmem:[#allocation2 + $0x28] sm:$0xff] %vm2808, %v2785
      %2815 = vst.msk [vmem:[#allocation2 + $0x30] sm:$0xff] %vm2808, %v2790
      %2816 = vst.msk [vmem:[#allocation2 + $0x38] sm:$0xff] %vm2808, %v2795
      %2817 = vst.msk [vmem:[#allocation2 + $0x40] sm:$0xff] %vm2808, %v2800
      %2818 = vst.msk [vmem:[#allocation2 + $0x48] sm:$0xff] %vm2808, %v2805
      %2829 = vrot.lane.b32.xlu0 %v2760, 124
      %v2830 = vpop.permute.xlu0 %2829
      %2831 = vrot.lane.b32.xlu0 %v2765, 124
      %v2832 = vpop.permute.xlu0 %2831
      %2833 = vrot.lane.b32.xlu0 %v2770, 124
      %v2834 = vpop.permute.xlu0 %2833
      %2835 = vrot.lane.b32.xlu0 %v2775, 124
      %v2836 = vpop.permute.xlu0 %2835
      %2837 = vrot.lane.b32.xlu0 %v2780, 124
      %v2838 = vpop.permute.xlu0 %2837
      %2839 = vrot.lane.b32.xlu0 %v2785, 124
      %v2840 = vpop.permute.xlu0 %2839
      %2841 = vrot.lane.b32.xlu0 %v2790, 124
      %v2842 = vpop.permute.xlu0 %2841
      %2843 = vrot.lane.b32.xlu0 %v2795, 124
      %v2844 = vpop.permute.xlu0 %2843
      %2845 = vrot.lane.b32.xlu0 %v2800, 124
      %v2846 = vpop.permute.xlu0 %2845
      %2847 = vrot.lane.b32.xlu0 %v2805, 124
      %v2848 = vpop.permute.xlu0 %2847
      %2859 = vst.msk [vmem:[#allocation2 + $0x50] sm:$0xff] %vm2808, %v2830
      %2860 = vst.msk [vmem:[#allocation2 + $0x58] sm:$0xff] %vm2808, %v2832
      %2861 = vst.msk [vmem:[#allocation2 + $0x60] sm:$0xff] %vm2808, %v2834
      %2862 = vst.msk [vmem:[#allocation2 + $0x68] sm:$0xff] %vm2808, %v2836
      %2863 = vst.msk [vmem:[#allocation2 + $0x70] sm:$0xff] %vm2808, %v2838
      %2864 = vst.msk [vmem:[#allocation2 + $0x78] sm:$0xff] %vm2808, %v2840
      %2865 = vst.msk [vmem:[#allocation2 + $0x80] sm:$0xff] %vm2808, %v2842
      %2866 = vst.msk [vmem:[#allocation2 + $0x88] sm:$0xff] %vm2808, %v2844
      %2867 = vst.msk [vmem:[#allocation2 + $0x90] sm:$0xff] %vm2808, %v2846
      %2868 = vst.msk [vmem:[#allocation2 + $0x98] sm:$0xff] %vm2808, %v2848
      %2869 = vrot.lane.b32.xlu0 %v2760, 120
      %v2870 = vpop.permute.xlu0 %2869
      %2871 = vrot.lane.b32.xlu0 %v2765, 120
      %v2872 = vpop.permute.xlu0 %2871
      %2873 = vrot.lane.b32.xlu0 %v2770, 120
      %v2874 = vpop.permute.xlu0 %2873
      %2875 = vrot.lane.b32.xlu0 %v2775, 120
      %v2876 = vpop.permute.xlu0 %2875
      %2877 = vrot.lane.b32.xlu0 %v2780, 120
      %v2878 = vpop.permute.xlu0 %2877
      %2879 = vrot.lane.b32.xlu0 %v2785, 120
      %v2880 = vpop.permute.xlu0 %2879
      %2881 = vrot.lane.b32.xlu0 %v2790, 120
      %v2882 = vpop.permute.xlu0 %2881
      %2883 = vrot.lane.b32.xlu0 %v2795, 120
      %v2884 = vpop.permute.xlu0 %2883
      %2885 = vrot.lane.b32.xlu0 %v2800, 120
      %v2886 = vpop.permute.xlu0 %2885
      %2887 = vrot.lane.b32.xlu0 %v2805, 120
      %v2888 = vpop.permute.xlu0 %2887
      %2899 = vst.msk [vmem:[#allocation2 + $0xa0] sm:$0xff] %vm2808, %v2870
      %2900 = vst.msk [vmem:[#allocation2 + $0xa8] sm:$0xff] %vm2808, %v2872
      %2901 = vst.msk [vmem:[#allocation2 + $0xb0] sm:$0xff] %vm2808, %v2874
      %2902 = vst.msk [vmem:[#allocation2 + $0xb8] sm:$0xff] %vm2808, %v2876
      %2903 = vst.msk [vmem:[#allocation2 + $0xc0] sm:$0xff] %vm2808, %v2878
      %2904 = vst.msk [vmem:[#allocation2 + $0xc8] sm:$0xff] %vm2808, %v2880
      %2905 = vst.msk [vmem:[#allocation2 + $0xd0] sm:$0xff] %vm2808, %v2882
      %2906 = vst.msk [vmem:[#allocation2 + $0xd8] sm:$0xff] %vm2808, %v2884
      %2907 = vst.msk [vmem:[#allocation2 + $0xe0] sm:$0xff] %vm2808, %v2886
      %2908 = vst.msk [vmem:[#allocation2 + $0xe8] sm:$0xff] %vm2808, %v2888
      %2909 = vrot.lane.b32.xlu0 %v2760, 116
      %v2910 = vpop.permute.xlu0 %2909
      %2911 = vrot.lane.b32.xlu0 %v2765, 116
      %v2912 = vpop.permute.xlu0 %2911
      %2913 = vrot.lane.b32.xlu0 %v2770, 116
      %v2914 = vpop.permute.xlu0 %2913
      %2915 = vrot.lane.b32.xlu0 %v2775, 116
      %v2916 = vpop.permute.xlu0 %2915
      %2917 = vrot.lane.b32.xlu0 %v2780, 116
      %v2918 = vpop.permute.xlu0 %2917
      %2919 = vrot.lane.b32.xlu0 %v2785, 116
      %v2920 = vpop.permute.xlu0 %2919
      %2921 = vrot.lane.b32.xlu0 %v2790, 116
      %v2922 = vpop.permute.xlu0 %2921
      %2923 = vrot.lane.b32.xlu0 %v2795, 116
      %v2924 = vpop.permute.xlu0 %2923
      %2925 = vrot.lane.b32.xlu0 %v2800, 116
      %v2926 = vpop.permute.xlu0 %2925
      %2927 = vrot.lane.b32.xlu0 %v2805, 116
      %v2928 = vpop.permute.xlu0 %2927
      %2939 = vst.msk [vmem:[#allocation2 + $0xf0] sm:$0xff] %vm2808, %v2910
      %2940 = vst.msk [vmem:[#allocation2 + $0xf8] sm:$0xff] %vm2808, %v2912
      %2941 = vst.msk [vmem:[#allocation2 + $0x100] sm:$0xff] %vm2808, %v2914
      %2942 = vst.msk [vmem:[#allocation2 + $0x108] sm:$0xff] %vm2808, %v2916
      %2943 = vst.msk [vmem:[#allocation2 + $0x110] sm:$0xff] %vm2808, %v2918
      %2944 = vst.msk [vmem:[#allocation2 + $0x118] sm:$0xff] %vm2808, %v2920
      %2945 = vst.msk [vmem:[#allocation2 + $0x120] sm:$0xff] %vm2808, %v2922
      %2946 = vst.msk [vmem:[#allocation2 + $0x128] sm:$0xff] %vm2808, %v2924
      %2947 = vst.msk [vmem:[#allocation2 + $0x130] sm:$0xff] %vm2808, %v2926
      %2948 = vst.msk [vmem:[#allocation2 + $0x138] sm:$0xff] %vm2808, %v2928
      %2949 = vrot.lane.b32.xlu0 %v2760, 112
      %v2950 = vpop.permute.xlu0 %2949
      %2951 = vrot.lane.b32.xlu0 %v2765, 112
      %v2952 = vpop.permute.xlu0 %2951
      %2953 = vrot.lane.b32.xlu0 %v2770, 112
      %v2954 = vpop.permute.xlu0 %2953
      %2955 = vrot.lane.b32.xlu0 %v2775, 112
      %v2956 = vpop.permute.xlu0 %2955
      %2957 = vrot.lane.b32.xlu0 %v2780, 112
      %v2958 = vpop.permute.xlu0 %2957
      %2959 = vrot.lane.b32.xlu0 %v2785, 112
      %v2960 = vpop.permute.xlu0 %2959
      %2961 = vrot.lane.b32.xlu0 %v2790, 112
      %v2962 = vpop.permute.xlu0 %2961
      %2963 = vrot.lane.b32.xlu0 %v2795, 112
      %v2964 = vpop.permute.xlu0 %2963
      %2965 = vrot.lane.b32.xlu0 %v2800, 112
      %v2966 = vpop.permute.xlu0 %2965
      %2967 = vrot.lane.b32.xlu0 %v2805, 112
      %v2968 = vpop.permute.xlu0 %2967
      %2979 = vst.msk [vmem:[#allocation2 + $0x140] sm:$0xff] %vm2808, %v2950
      %2980 = vst.msk [vmem:[#allocation2 + $0x148] sm:$0xff] %vm2808, %v2952
      %2981 = vst.msk [vmem:[#allocation2 + $0x150] sm:$0xff] %vm2808, %v2954
      %2982 = vst.msk [vmem:[#allocation2 + $0x158] sm:$0xff] %vm2808, %v2956
      %2983 = vst.msk [vmem:[#allocation2 + $0x160] sm:$0xff] %vm2808, %v2958
      %2984 = vst.msk [vmem:[#allocation2 + $0x168] sm:$0xff] %vm2808, %v2960
      %2985 = vst.msk [vmem:[#allocation2 + $0x170] sm:$0xff] %vm2808, %v2962
      %2986 = vst.msk [vmem:[#allocation2 + $0x178] sm:$0xff] %vm2808, %v2964
      %2987 = vst.msk [vmem:[#allocation2 + $0x180] sm:$0xff] %vm2808, %v2966
      %2988 = vst.msk [vmem:[#allocation2 + $0x188] sm:$0xff] %vm2808, %v2968
      %v2989 = vld [vmem:[%s381 + $0x4] sm:$0xf]
      %v2990 = vld [vmem:[%s381 + $0xc] sm:$0xf]
      %v2991 = vld [vmem:[%s381 + $0x14] sm:$0xf]
      %v2992 = vld [vmem:[%s381 + $0x1c] sm:$0xf]
      %v2997 = vunpack.c.l.b16 %v2989
      %v2998 = vunpack.c.l.b16 %v2990
      %v2999 = vunpack.c.l.b16 %v2991
      %v3000 = vunpack.c.l.b16 %v2992
      %v3001 = vpack.c.b16 %v2998, %v2997
      %v3002 = vpack.c.b16 %v3000, %v2999
      %3005 = vrot.lane.b32.xlu0 %v3001, 127
      %v3006 = vpop.permute.xlu0 %3005
      %3007 = vrot.lane.b32.xlu0 %v3002, 127
      %v3008 = vpop.permute.xlu0 %3007
      %3011 = vrot.lane.b32.xlu0 %v3001, 126
      %v3012 = vpop.permute.xlu0 %3011
      %3013 = vrot.lane.b32.xlu0 %v3002, 126
      %v3014 = vpop.permute.xlu0 %3013
      %3017 = vrot.lane.b32.xlu0 %v3001, 125
      %v3018 = vpop.permute.xlu0 %3017
      %3019 = vrot.lane.b32.xlu0 %v3002, 125
      %v3020 = vpop.permute.xlu0 %3019
      %3023 = vrot.lane.b32.xlu0 %v3001, 124
      %v3024 = vpop.permute.xlu0 %3023
      %3025 = vrot.lane.b32.xlu0 %v3002, 124
      %v3026 = vpop.permute.xlu0 %3025
      %v3029 = vld [vmem:[%s1] sm:$0xff]
      %v3030 = vld [vmem:[%s1 + $0x8] sm:$0xff]
      %v3031 = vld [vmem:[%s1 + $0x10] sm:$0xff]
      %v3032 = vld [vmem:[%s1 + $0x18] sm:$0xff]
      %v3033 = vld [vmem:[%s1 + $0x20] sm:$0xff]
      %v3034 = vld [vmem:[%s1 + $0x28] sm:$0xff]
      %v3035 = vld [vmem:[%s1 + $0x30] sm:$0xff]
      %v3036 = vld [vmem:[%s1 + $0x38] sm:$0xff]
      %v3037 = vld [vmem:[%s1 + $0x40] sm:$0xff]
      %v3038 = vld [vmem:[%s1 + $0x48] sm:$0xff]
      %v3039 = vld [vmem:[%s1 + $0x50] sm:$0xff]
      %v3040 = vld [vmem:[%s1 + $0x58] sm:$0xff]
      %v3041 = vld [vmem:[%s1 + $0x60] sm:$0xff]
      %v3042 = vld [vmem:[%s1 + $0x68] sm:$0xff]
      %v3043 = vld [vmem:[%s1 + $0x70] sm:$0xff]
      %v3044 = vld [vmem:[%s1 + $0x78] sm:$0xff]
      %v3045 = vld [vmem:[%s1 + $0x80] sm:$0xff]
      %v3046 = vld [vmem:[%s1 + $0x88] sm:$0xff]
      %v3047 = vld [vmem:[%s1 + $0x90] sm:$0xff]
      %v3048 = vld [vmem:[%s1 + $0x98] sm:$0xff]
      %v3049 = vld [vmem:[%s1 + $0xa0] sm:$0xff]
      %v3071 = vunpack.c.l.b16 %v3029
      %v3072 = vunpack.c.h.b16 %v3029
      %v3073 = vunpack.c.l.b16 %v3030
      %v3074 = vunpack.c.h.b16 %v3030
      %v3075 = vunpack.c.l.b16 %v3031
      %v3076 = vunpack.c.h.b16 %v3031
      %v3077 = vunpack.c.l.b16 %v3032
      %v3078 = vunpack.c.h.b16 %v3032
      %v3079 = vunpack.c.l.b16 %v3033
      %v3080 = vunpack.c.h.b16 %v3033
      %v3081 = vunpack.c.l.b16 %v3034
      %v3082 = vunpack.c.h.b16 %v3034
      %v3083 = vunpack.c.l.b16 %v3035
      %v3084 = vunpack.c.h.b16 %v3035
      %v3085 = vunpack.c.l.b16 %v3036
      %v3086 = vunpack.c.h.b16 %v3036
      %v3087 = vunpack.c.l.b16 %v3037
      %v3088 = vunpack.c.h.b16 %v3037
      %v3089 = vunpack.c.l.b16 %v3038
      %v3090 = vunpack.c.h.b16 %v3038
      %v3091 = vunpack.c.l.b16 %v3039
      %v3092 = vunpack.c.h.b16 %v3039
      %v3093 = vunpack.c.l.b16 %v3040
      %v3094 = vunpack.c.h.b16 %v3040
      %v3095 = vunpack.c.l.b16 %v3041
      %v3096 = vunpack.c.h.b16 %v3041
      %v3097 = vunpack.c.l.b16 %v3042
      %v3098 = vunpack.c.h.b16 %v3042
      %v3099 = vunpack.c.l.b16 %v3043
      %v3100 = vunpack.c.h.b16 %v3043
      %v3101 = vunpack.c.l.b16 %v3044
      %v3102 = vunpack.c.h.b16 %v3044
      %v3103 = vunpack.c.l.b16 %v3045
      %v3104 = vunpack.c.h.b16 %v3045
      %v3105 = vunpack.c.l.b16 %v3046
      %v3106 = vunpack.c.h.b16 %v3046
      %v3107 = vunpack.c.l.b16 %v3047
      %v3108 = vunpack.c.h.b16 %v3047
      %v3109 = vunpack.c.l.b16 %v3048
      %v3110 = vunpack.c.h.b16 %v3048
      %v3111 = vunpack.c.l.b16 %v3049
      %v3112 = vunpack.c.h.b16 %v3049
      %v3113 = vpack.c.b16 %v3073, %v3071
      %v3114 = vpack.c.b16 %v3074, %v3072
      %v3115 = vpack.c.b16 %v3077, %v3075
      %v3116 = vpack.c.b16 %v3078, %v3076
      %v3117 = vpack.c.b16 %v3081, %v3079
      %v3118 = vpack.c.b16 %v3082, %v3080
      %v3119 = vpack.c.b16 %v3085, %v3083
      %v3120 = vpack.c.b16 %v3086, %v3084
      %v3121 = vpack.c.b16 %v3089, %v3087
      %v3122 = vpack.c.b16 %v3090, %v3088
      %v3123 = vpack.c.b16 %v3093, %v3091
      %v3124 = vpack.c.b16 %v3094, %v3092
      %v3125 = vpack.c.b16 %v3097, %v3095
      %v3126 = vpack.c.b16 %v3098, %v3096
      %v3127 = vpack.c.b16 %v3101, %v3099
      %v3128 = vpack.c.b16 %v3102, %v3100
      %v3129 = vpack.c.b16 %v3105, %v3103
      %v3130 = vpack.c.b16 %v3106, %v3104
      %v3131 = vpack.c.b16 %v3109, %v3107
      %v3132 = vpack.c.b16 %v3110, %v3108
      %v3133 = vpack.c.b16 %v3111, %v3111
      %v3134 = vpack.c.b16 %v3112, %v3112
      %v3147 = vsel %vm719, %v3114, 0
      %v3150 = vsel %vm719, %v3116, 0
      %v3153 = vsel %vm719, %v3118, 0
      %v3156 = vsel %vm719, %v3120, 0
      %v3159 = vsel %vm719, %v3122, 0
      %v3162 = vsel %vm719, %v3124, 0
      %v3165 = vsel %vm719, %v3126, 0
      %v3168 = vsel %vm719, %v3128, 0
      %v3171 = vsel %vm719, %v3130, 0
      %v3174 = vsel %vm719, %v3132, 0
      %v3177 = vsel %vm719, %v3134, 0
      %3179 = vmatprep.subr.bf16.mxu0 0
      %3180 = vmatpush1.bf16.msra.mxu0 %v3001
      %3181 = vmatprep.subr.bf16.mxu0 0
      %3182 = vmatpush1.bf16.msra.mxu0 %v3002
      %3183 = vmatprep.subr.bf16.mxu0 0
      %3184 = vmatpush1.bf16.msra.mxu0 %v3006
      %3185 = vmatprep.subr.bf16.mxu0 0
      %3186 = vmatpush1.bf16.msra.mxu0 %v3008
      %3187 = vmatprep.subr.bf16.mxu0 0
      %3188 = vmatpush1.bf16.msra.mxu0 %v3012
      %3189 = vmatprep.subr.bf16.mxu0 0
      %3190 = vmatpush1.bf16.msra.mxu0 %v3014
      %3191 = vmatprep.subr.bf16.mxu0 0
      %3192 = vmatpush1.bf16.msra.mxu0 %v3018
      %3193 = vmatprep.subr.bf16.mxu0 0
      %3194 = vmatpush1.bf16.msra.mxu0 %v3020
      %3195 = vmatprep.subr.bf16.mxu0 0
      %3196 = vmatpush1.bf16.msra.mxu0 %v3024
      %3197 = vmatprep.subr.bf16.mxu0 0
      %3198 = vmatpush1.bf16.msra.mxu0 %v3026
      %3199 = vmatprep.subr.bf16.mxu0 0
      %3200 = vmatpush1.bf16.msra.mxu0 0
      %3201 = vmatprep.subr.bf16.mxu0 0
      %3202 = vmatpush1.bf16.msra.mxu0 0
      %3203 = vmatprep.subr.bf16.mxu0 0
      %3204 = vmatpush1.bf16.msra.mxu0 0
      %3205 = vmatprep.subr.bf16.mxu0 0
      %3206 = vmatpush1.bf16.msra.mxu0 0
      %3207 = vmatprep.subr.bf16.mxu0 0
      %3208 = vmatpush1.bf16.msra.mxu0 0
      %3209 = vmatprep.subr.bf16.mxu0 0
      %3210 = vmatpush1.bf16.msra.mxu0 0
      %3211 = vmatprep.mubr.bf16.mxu0 %v3147
      %3212 = vmatmul.mubr.bf16.gmra.mrb[0].mxu0 %v3113
      %v3213 = vpop.f32.mrb[0].mxu0
      %v3214 = vadd.f32 %v521, %v3213
      %v3215 = vpop.f32.mrb[0].mxu0
      %v3216 = vpop.f32.mrb[0].mxu0
      %v3217 = vadd.f32 %v526, %v3216
      %v3218 = vpop.f32.mrb[0].mxu0
      %3219 = vmatprep.mubr.bf16.mxu0 %v3150
      %3220 = vmatmul.mubr.bf16.gmra.mrb[0].mxu0 %v3115
      %v3221 = vpop.f32.mrb[0].mxu0
      %v3222 = vadd.f32 %v531, %v3221
      %v3223 = vpop.f32.mrb[0].mxu0
      %v3224 = vpop.f32.mrb[0].mxu0
      %v3225 = vadd.f32 %v536, %v3224
      %v3226 = vpop.f32.mrb[0].mxu0
      %3227 = vmatprep.mubr.bf16.mxu0 %v3153
      %3228 = vmatmul.mubr.bf16.gmra.mrb[0].mxu0 %v3117
      %v3229 = vpop.f32.mrb[0].mxu0
      %v3230 = vadd.f32 %v541, %v3229
      %v3231 = vpop.f32.mrb[0].mxu0
      %v3232 = vpop.f32.mrb[0].mxu0
      %v3233 = vadd.f32 %v546, %v3232
      %v3234 = vpop.f32.mrb[0].mxu0
      %3235 = vmatprep.mubr.bf16.mxu0 %v3156
      %3236 = vmatmul.mubr.bf16.gmra.mrb[0].mxu0 %v3119
      %v3237 = vpop.f32.mrb[0].mxu0
      %v3238 = vadd.f32 %v551, %v3237
      %v3239 = vpop.f32.mrb[0].mxu0
      %v3240 = vpop.f32.mrb[0].mxu0
      %v3241 = vadd.f32 %v556, %v3240
      %v3242 = vpop.f32.mrb[0].mxu0
      %3243 = vmatprep.mubr.bf16.mxu0 %v3159
      %3244 = vmatmul.mubr.bf16.gmra.mrb[0].mxu0 %v3121
      %v3245 = vpop.f32.mrb[0].mxu0
      %v3246 = vadd.f32 %v561, %v3245
      %v3247 = vpop.f32.mrb[0].mxu0
      %v3248 = vpop.f32.mrb[0].mxu0
      %v3249 = vadd.f32 %v566, %v3248
      %v3250 = vpop.f32.mrb[0].mxu0
      %3251 = vmatprep.mubr.bf16.mxu0 %v3162
      %3252 = vmatmul.mubr.bf16.gmra.mrb[0].mxu0 %v3123
      %v3253 = vpop.f32.mrb[0].mxu0
      %v3254 = vadd.f32 %v571, %v3253
      %v3255 = vpop.f32.mrb[0].mxu0
      %v3256 = vpop.f32.mrb[0].mxu0
      %v3257 = vadd.f32 %v576, %v3256
      %v3258 = vpop.f32.mrb[0].mxu0
      %3259 = vmatprep.mubr.bf16.mxu0 %v3165
      %3260 = vmatmul.mubr.bf16.gmra.mrb[0].mxu0 %v3125
      %v3261 = vpop.f32.mrb[0].mxu0
      %v3262 = vadd.f32 %v581, %v3261
      %v3263 = vpop.f32.mrb[0].mxu0
      %v3264 = vpop.f32.mrb[0].mxu0
      %v3265 = vadd.f32 %v586, %v3264
      %v3266 = vpop.f32.mrb[0].mxu0
      %3267 = vmatprep.mubr.bf16.mxu0 %v3168
      %3268 = vmatmul.mubr.bf16.gmra.mrb[0].mxu0 %v3127
      %v3269 = vpop.f32.mrb[0].mxu0
      %v3270 = vadd.f32 %v591, %v3269
      %v3271 = vpop.f32.mrb[0].mxu0
      %v3272 = vpop.f32.mrb[0].mxu0
      %v3273 = vadd.f32 %v596, %v3272
      %v3274 = vpop.f32.mrb[0].mxu0
      %3275 = vmatprep.mubr.bf16.mxu0 %v3171
      %3276 = vmatmul.mubr.bf16.gmra.mrb[0].mxu0 %v3129
      %v3277 = vpop.f32.mrb[0].mxu0
      %v3278 = vadd.f32 %v601, %v3277
      %v3279 = vpop.f32.mrb[0].mxu0
      %v3280 = vpop.f32.mrb[0].mxu0
      %v3281 = vadd.f32 %v606, %v3280
      %v3282 = vpop.f32.mrb[0].mxu0
      %3283 = vmatprep.mubr.bf16.mxu0 %v3174
      %3284 = vmatmul.mubr.bf16.gmra.mrb[0].mxu0 %v3131
      %v3285 = vpop.f32.mrb[0].mxu0
      %v3286 = vadd.f32 %v611, %v3285
      %v3287 = vpop.f32.mrb[0].mxu0
      %v3288 = vpop.f32.mrb[0].mxu0
      %v3289 = vadd.f32 %v616, %v3288
      %v3290 = vpop.f32.mrb[0].mxu0
      %3291 = vmatprep.mubr.bf16.mxu0 %v3177
      %3292 = vmatmul.mubr.bf16.gmra.mrb[0].mxu0 %v3133
      %v3293 = vpop.f32.mrb[0].mxu0
      %v3294 = vadd.f32 %v621, %v3293
      %v3295 = vpop.f32.mrb[0].mxu0
      %v3296 = vpop.f32.mrb[0].mxu0
      %v3297 = vpop.f32.mrb[0].mxu0
      %3298 = vdwg.mxu0
      %3320 = vrot.lane.b32.xlu0 %v3214, 127
      %v3321 = vpop.permute.xlu0 %3320
      %3322 = vrot.lane.b32.xlu0 %v3217, 127
      %v3323 = vpop.permute.xlu0 %3322
      %3324 = vrot.lane.b32.xlu0 %v3222, 127
      %v3325 = vpop.permute.xlu0 %3324
      %3326 = vrot.lane.b32.xlu0 %v3225, 127
      %v3327 = vpop.permute.xlu0 %3326
      %3328 = vrot.lane.b32.xlu0 %v3230, 127
      %v3329 = vpop.permute.xlu0 %3328
      %3330 = vrot.lane.b32.xlu0 %v3233, 127
      %v3331 = vpop.permute.xlu0 %3330
      %3332 = vrot.lane.b32.xlu0 %v3238, 127
      %v3333 = vpop.permute.xlu0 %3332
      %3334 = vrot.lane.b32.xlu0 %v3241, 127
      %v3335 = vpop.permute.xlu0 %3334
      %3336 = vrot.lane.b32.xlu0 %v3246, 127
      %v3337 = vpop.permute.xlu0 %3336
      %3338 = vrot.lane.b32.xlu0 %v3249, 127
      %v3339 = vpop.permute.xlu0 %3338
      %3340 = vrot.lane.b32.xlu0 %v3254, 127
      %v3341 = vpop.permute.xlu0 %3340
      %3342 = vrot.lane.b32.xlu0 %v3257, 127
      %v3343 = vpop.permute.xlu0 %3342
      %3344 = vrot.lane.b32.xlu0 %v3262, 127
      %v3345 = vpop.permute.xlu0 %3344
      %3346 = vrot.lane.b32.xlu0 %v3265, 127
      %v3347 = vpop.permute.xlu0 %3346
      %3348 = vrot.lane.b32.xlu0 %v3270, 127
      %v3349 = vpop.permute.xlu0 %3348
      %3350 = vrot.lane.b32.xlu0 %v3273, 127
      %v3351 = vpop.permute.xlu0 %3350
      %3352 = vrot.lane.b32.xlu0 %v3278, 127
      %v3353 = vpop.permute.xlu0 %3352
      %3354 = vrot.lane.b32.xlu0 %v3281, 127
      %v3355 = vpop.permute.xlu0 %3354
      %3356 = vrot.lane.b32.xlu0 %v3286, 127
      %v3357 = vpop.permute.xlu0 %3356
      %3358 = vrot.lane.b32.xlu0 %v3289, 127
      %v3359 = vpop.permute.xlu0 %3358
      %3360 = vrot.lane.b32.xlu0 %v3294, 127
      %v3361 = vpop.permute.xlu0 %3360
      %v3383 = vmax.f32 %v3214, %v3321
      %v3384 = vmax.f32 %v3217, %v3323
      %v3385 = vmax.f32 %v3222, %v3325
      %v3386 = vmax.f32 %v3225, %v3327
      %v3387 = vmax.f32 %v3230, %v3329
      %v3388 = vmax.f32 %v3233, %v3331
      %v3389 = vmax.f32 %v3238, %v3333
      %v3390 = vmax.f32 %v3241, %v3335
      %v3391 = vmax.f32 %v3246, %v3337
      %v3392 = vmax.f32 %v3249, %v3339
      %v3393 = vmax.f32 %v3254, %v3341
      %v3394 = vmax.f32 %v3257, %v3343
      %v3395 = vmax.f32 %v3262, %v3345
      %v3396 = vmax.f32 %v3265, %v3347
      %v3397 = vmax.f32 %v3270, %v3349
      %v3398 = vmax.f32 %v3273, %v3351
      %v3399 = vmax.f32 %v3278, %v3353
      %v3400 = vmax.f32 %v3281, %v3355
      %v3401 = vmax.f32 %v3286, %v3357
      %v3402 = vmax.f32 %v3289, %v3359
      %v3403 = vmax.f32 %v3294, %v3361
      %v3404 = vld [vmem:[%s2] sm:$0xff]
      %v3405 = vld [vmem:[%s2 + $0x8] sm:$0xff]
      %v3406 = vld [vmem:[%s2 + $0x10] sm:$0xff]
      %v3407 = vld [vmem:[%s2 + $0x18] sm:$0xff]
      %v3408 = vld [vmem:[%s2 + $0x20] sm:$0xff]
      %v3409 = vld [vmem:[%s2 + $0x28] sm:$0xff]
      %v3410 = vld [vmem:[%s2 + $0x30] sm:$0xff]
      %v3411 = vld [vmem:[%s2 + $0x38] sm:$0xff]
      %v3412 = vld [vmem:[%s2 + $0x40] sm:$0xff]
      %v3413 = vld [vmem:[%s2 + $0x48] sm:$0xff]
      %v3414 = vld [vmem:[%s2 + $0x50] sm:$0xff]
      %v3415 = vld [vmem:[%s2 + $0x58] sm:$0xff]
      %v3416 = vld [vmem:[%s2 + $0x60] sm:$0xff]
      %v3417 = vld [vmem:[%s2 + $0x68] sm:$0xff]
      %v3418 = vld [vmem:[%s2 + $0x70] sm:$0xff]
      %v3419 = vld [vmem:[%s2 + $0x78] sm:$0x7f]
      %v3421 = vsel %vm994, %v3383, 0
      %v3424 = vsel %vm994, %v3384, 0
      %v3427 = vsel %vm994, %v3385, 0
      %v3430 = vsel %vm994, %v3386, 0
      %v3433 = vsel %vm994, %v3387, 0
      %v3436 = vsel %vm994, %v3388, 0
      %v3439 = vsel %vm994, %v3389, 0
      %v3442 = vsel %vm994, %v3390, 0
      %v3445 = vsel %vm994, %v3391, 0
      %v3448 = vsel %vm994, %v3392, 0
      %v3451 = vsel %vm994, %v3393, 0
      %v3454 = vsel %vm994, %v3394, 0
      %v3457 = vsel %vm994, %v3395, 0
      %v3460 = vsel %vm994, %v3396, 0
      %v3463 = vsel %vm994, %v3397, 0
      %v3466 = vsel %vm994, %v3398, 0
      %v3469 = vsel %vm994, %v3399, 0
      %v3472 = vsel %vm994, %v3400, 0
      %v3475 = vsel %vm994, %v3401, 0
      %v3478 = vsel %vm994, %v3402, 0
      %v3481 = vsel %vm994, %v3403, 0
      %v3484 = vsel %vm1058, %v3419, 0
      %3486 = vmatprep.subr.mxu0 0.0
      %3487 = vmatpush1.msra.mxu0 %v3404
      %3488 = vmatprep.subr.mxu0 0.0
      %3489 = vmatpush1.msra.mxu0 %v3405
      %3490 = vmatprep.subr.mxu0 0.0
      %3491 = vmatpush1.msra.mxu0 %v3406
      %3492 = vmatprep.subr.mxu0 0.0
      %3493 = vmatpush1.msra.mxu0 %v3407
      %3494 = vmatprep.subr.mxu0 0.0
      %3495 = vmatpush1.msra.mxu0 %v3408
      %3496 = vmatprep.subr.mxu0 0.0
      %3497 = vmatpush1.msra.mxu0 %v3409
      %3498 = vmatprep.subr.mxu0 0.0
      %3499 = vmatpush1.msra.mxu0 %v3410
      %3500 = vmatprep.subr.mxu0 0.0
      %3501 = vmatpush1.msra.mxu0 %v3411
      %3502 = vmatprep.subr.mxu0 0.0
      %3503 = vmatpush1.msra.mxu0 %v3412
      %3504 = vmatprep.subr.mxu0 0.0
      %3505 = vmatpush1.msra.mxu0 %v3413
      %3506 = vmatprep.subr.mxu0 0.0
      %3507 = vmatpush1.msra.mxu0 %v3414
      %3508 = vmatprep.subr.mxu0 0.0
      %3509 = vmatpush1.msra.mxu0 %v3415
      %3510 = vmatprep.subr.mxu0 0.0
      %3511 = vmatpush1.msra.mxu0 %v3416
      %3512 = vmatprep.subr.mxu0 0.0
      %3513 = vmatpush1.msra.mxu0 %v3417
      %3514 = vmatprep.subr.mxu0 0.0
      %3515 = vmatpush1.msra.mxu0 %v3418
      %3516 = vmatprep.subr.mxu0 0.0
      %3517 = vmatpush1.msra.mxu0 %v3484
      %3518 = vmatprep.subr.mxu0 0.0
      %3519 = vmatpush1.msra.mxu0 0.0
      %3520 = vmatprep.subr.mxu0 0.0
      %3521 = vmatpush1.msra.mxu0 0.0
      %3522 = vmatprep.subr.mxu0 0.0
      %3523 = vmatpush1.msra.mxu0 0.0
      %3524 = vmatprep.subr.mxu0 0.0
      %3525 = vmatpush1.msra.mxu0 0.0
      %3526 = vmatprep.subr.mxu0 0.0
      %3527 = vmatpush1.msra.mxu0 0.0
      %3528 = vmatprep.subr.mxu0 0.0
      %3529 = vmatpush1.msra.mxu0 0.0
      %3530 = vmatprep.subr.mxu0 0.0
      %3531 = vmatpush1.msra.mxu0 0.0
      %3532 = vmatprep.subr.mxu0 0.0
      %3533 = vmatpush1.msra.mxu0 0.0
      %3534 = vmatprep.subr.mxu0 0.0
      %3535 = vmatpush1.msra.mxu0 0.0
      %3536 = vmatprep.subr.mxu0 0.0
      %3537 = vmatpush1.msra.mxu0 0.0
      %3538 = vmatprep.subr.mxu0 0.0
      %3539 = vmatpush1.msra.mxu0 0.0
      %3540 = vmatprep.subr.mxu0 0.0
      %3541 = vmatpush1.msra.mxu0 0.0
      %3542 = vmatprep.subr.mxu0 0.0
      %3543 = vmatpush1.msra.mxu0 0.0
      %3544 = vmatprep.subr.mxu0 0.0
      %3545 = vmatpush1.msra.mxu0 0.0
      %3546 = vmatprep.subr.mxu0 0.0
      %3547 = vmatpush1.msra.mxu0 0.0
      %3548 = vmatprep.subr.mxu0 0.0
      %3549 = vmatpush1.msra.mxu0 0.0
      %3550 = vmatprep.mubr.f32.mxu0 0.0
      %3551 = vmatmul.mubr.f32.gmra.mrb[0].mxu0 %v3421
      %v3552 = vpop.f32.mrb[0].mxu0
      %v3553 = vadd.f32 0.0, %v3552
      %v3554 = vpop.f32.mrb[0].mxu0
      %3555 = vmatprep.mubr.f32.mxu0 0.0
      %3556 = vmatmul.mubr.f32.gmra.mrb[0].mxu0 %v3424
      %v3557 = vpop.f32.mrb[0].mxu0
      %v3558 = vadd.f32 0.0, %v3557
      %v3559 = vpop.f32.mrb[0].mxu0
      %3560 = vmatprep.mubr.f32.mxu0 0.0
      %3561 = vmatmul.mubr.f32.gmra.mrb[0].mxu0 %v3427
      %v3562 = vpop.f32.mrb[0].mxu0
      %v3563 = vadd.f32 0.0, %v3562
      %v3564 = vpop.f32.mrb[0].mxu0
      %3565 = vmatprep.mubr.f32.mxu0 0.0
      %3566 = vmatmul.mubr.f32.gmra.mrb[0].mxu0 %v3430
      %v3567 = vpop.f32.mrb[0].mxu0
      %v3568 = vadd.f32 0.0, %v3567
      %v3569 = vpop.f32.mrb[0].mxu0
      %3570 = vmatprep.mubr.f32.mxu0 0.0
      %3571 = vmatmul.mubr.f32.gmra.mrb[0].mxu0 %v3433
      %v3572 = vpop.f32.mrb[0].mxu0
      %v3573 = vadd.f32 0.0, %v3572
      %v3574 = vpop.f32.mrb[0].mxu0
      %3575 = vmatprep.mubr.f32.mxu0 0.0
      %3576 = vmatmul.mubr.f32.gmra.mrb[0].mxu0 %v3436
      %v3577 = vpop.f32.mrb[0].mxu0
      %v3578 = vadd.f32 0.0, %v3577
      %v3579 = vpop.f32.mrb[0].mxu0
      %3580 = vmatprep.mubr.f32.mxu0 0.0
      %3581 = vmatmul.mubr.f32.gmra.mrb[0].mxu0 %v3439
      %v3582 = vpop.f32.mrb[0].mxu0
      %v3583 = vadd.f32 0.0, %v3582
      %v3584 = vpop.f32.mrb[0].mxu0
      %3585 = vmatprep.mubr.f32.mxu0 0.0
      %3586 = vmatmul.mubr.f32.gmra.mrb[0].mxu0 %v3442
      %v3587 = vpop.f32.mrb[0].mxu0
      %v3588 = vadd.f32 0.0, %v3587
      %v3589 = vpop.f32.mrb[0].mxu0
      %3590 = vmatprep.mubr.f32.mxu0 0.0
      %3591 = vmatmul.mubr.f32.gmra.mrb[0].mxu0 %v3445
      %v3592 = vpop.f32.mrb[0].mxu0
      %v3593 = vadd.f32 0.0, %v3592
      %v3594 = vpop.f32.mrb[0].mxu0
      %3595 = vmatprep.mubr.f32.mxu0 0.0
      %3596 = vmatmul.mubr.f32.gmra.mrb[0].mxu0 %v3448
      %v3597 = vpop.f32.mrb[0].mxu0
      %v3598 = vadd.f32 0.0, %v3597
      %v3599 = vpop.f32.mrb[0].mxu0
      %3600 = vmatprep.mubr.f32.mxu0 0.0
      %3601 = vmatmul.mubr.f32.gmra.mrb[0].mxu0 %v3451
      %v3602 = vpop.f32.mrb[0].mxu0
      %v3603 = vadd.f32 0.0, %v3602
      %v3604 = vpop.f32.mrb[0].mxu0
      %3605 = vmatprep.mubr.f32.mxu0 0.0
      %3606 = vmatmul.mubr.f32.gmra.mrb[0].mxu0 %v3454
      %v3607 = vpop.f32.mrb[0].mxu0
      %v3608 = vadd.f32 0.0, %v3607
      %v3609 = vpop.f32.mrb[0].mxu0
      %3610 = vmatprep.mubr.f32.mxu0 0.0
      %3611 = vmatmul.mubr.f32.gmra.mrb[0].mxu0 %v3457
      %v3612 = vpop.f32.mrb[0].mxu0
      %v3613 = vadd.f32 0.0, %v3612
      %v3614 = vpop.f32.mrb[0].mxu0
      %3615 = vmatprep.mubr.f32.mxu0 0.0
      %3616 = vmatmul.mubr.f32.gmra.mrb[0].mxu0 %v3460
      %v3617 = vpop.f32.mrb[0].mxu0
      %v3618 = vadd.f32 0.0, %v3617
      %v3619 = vpop.f32.mrb[0].mxu0
      %3620 = vmatprep.mubr.f32.mxu0 0.0
      %3621 = vmatmul.mubr.f32.gmra.mrb[0].mxu0 %v3463
      %v3622 = vpop.f32.mrb[0].mxu0
      %v3623 = vadd.f32 0.0, %v3622
      %v3624 = vpop.f32.mrb[0].mxu0
      %3625 = vmatprep.mubr.f32.mxu0 0.0
      %3626 = vmatmul.mubr.f32.gmra.mrb[0].mxu0 %v3466
      %v3627 = vpop.f32.mrb[0].mxu0
      %v3628 = vadd.f32 0.0, %v3627
      %v3629 = vpop.f32.mrb[0].mxu0
      %3630 = vmatprep.mubr.f32.mxu0 0.0
      %3631 = vmatmul.mubr.f32.gmra.mrb[0].mxu0 %v3469
      %v3632 = vpop.f32.mrb[0].mxu0
      %v3633 = vadd.f32 0.0, %v3632
      %v3634 = vpop.f32.mrb[0].mxu0
      %3635 = vmatprep.mubr.f32.mxu0 0.0
      %3636 = vmatmul.mubr.f32.gmra.mrb[0].mxu0 %v3472
      %v3637 = vpop.f32.mrb[0].mxu0
      %v3638 = vadd.f32 0.0, %v3637
      %v3639 = vpop.f32.mrb[0].mxu0
      %3640 = vmatprep.mubr.f32.mxu0 0.0
      %3641 = vmatmul.mubr.f32.gmra.mrb[0].mxu0 %v3475
      %v3642 = vpop.f32.mrb[0].mxu0
      %v3643 = vadd.f32 0.0, %v3642
      %v3644 = vpop.f32.mrb[0].mxu0
      %3645 = vmatprep.mubr.f32.mxu0 0.0
      %3646 = vmatmul.mubr.f32.gmra.mrb[0].mxu0 %v3478
      %v3647 = vpop.f32.mrb[0].mxu0
      %v3648 = vadd.f32 0.0, %v3647
      %v3649 = vpop.f32.mrb[0].mxu0
      %3650 = vmatprep.mubr.f32.mxu0 0.0
      %3651 = vmatmul.mubr.f32.gmra.mrb[0].mxu0 %v3481
      %v3652 = vpop.f32.mrb[0].mxu0
      %v3653 = vadd.f32 0.0, %v3652
      %v3654 = vpop.f32.mrb[0].mxu0
      %3655 = vdwg.mxu0
      %v3677 = vrot.slane %v3553, 1
      %v3678 = vrot.slane %v3558, 1
      %v3679 = vsel %vm1058, %v3677, %v3678
      %v3680 = vrot.slane %v3563, 1
      %v3681 = vsel %vm1058, %v3678, %v3680
      %v3682 = vrot.slane %v3568, 1
      %v3683 = vsel %vm1058, %v3680, %v3682
      %v3684 = vrot.slane %v3573, 1
      %v3685 = vsel %vm1058, %v3682, %v3684
      %v3686 = vrot.slane %v3578, 1
      %v3687 = vsel %vm1058, %v3684, %v3686
      %v3688 = vrot.slane %v3583, 1
      %v3689 = vsel %vm1058, %v3686, %v3688
      %v3690 = vrot.slane %v3588, 1
      %v3691 = vsel %vm1058, %v3688, %v3690
      %v3692 = vrot.slane %v3593, 1
      %v3693 = vsel %vm1058, %v3690, %v3692
      %v3694 = vrot.slane %v3598, 1
      %v3695 = vsel %vm1058, %v3692, %v3694
      %v3696 = vrot.slane %v3603, 1
      %v3697 = vsel %vm1058, %v3694, %v3696
      %v3698 = vrot.slane %v3608, 1
      %v3699 = vsel %vm1058, %v3696, %v3698
      %v3700 = vrot.slane %v3613, 1
      %v3701 = vsel %vm1058, %v3698, %v3700
      %v3702 = vrot.slane %v3618, 1
      %v3703 = vsel %vm1058, %v3700, %v3702
      %v3704 = vrot.slane %v3623, 1
      %v3705 = vsel %vm1058, %v3702, %v3704
      %v3706 = vrot.slane %v3628, 1
      %v3707 = vsel %vm1058, %v3704, %v3706
      %v3708 = vrot.slane %v3633, 1
      %v3709 = vsel %vm1058, %v3706, %v3708
      %v3710 = vrot.slane %v3638, 1
      %v3711 = vsel %vm1058, %v3708, %v3710
      %v3712 = vrot.slane %v3643, 1
      %v3713 = vsel %vm1058, %v3710, %v3712
      %v3714 = vrot.slane %v3648, 1
      %v3715 = vsel %vm1058, %v3712, %v3714
      %v3716 = vrot.slane %v3653, 1
      %v3717 = vsel %vm1058, %v3714, %v3716
      %v3739 = vmax.f32 %v3553, %v3679
      %v3740 = vmax.f32 %v3558, %v3681
      %v3741 = vmax.f32 %v3563, %v3683
      %v3742 = vmax.f32 %v3568, %v3685
      %v3743 = vmax.f32 %v3573, %v3687
      %v3744 = vmax.f32 %v3578, %v3689
      %v3745 = vmax.f32 %v3583, %v3691
      %v3746 = vmax.f32 %v3588, %v3693
      %v3747 = vmax.f32 %v3593, %v3695
      %v3748 = vmax.f32 %v3598, %v3697
      %v3749 = vmax.f32 %v3603, %v3699
      %v3750 = vmax.f32 %v3608, %v3701
      %v3751 = vmax.f32 %v3613, %v3703
      %v3752 = vmax.f32 %v3618, %v3705
      %v3753 = vmax.f32 %v3623, %v3707
      %v3754 = vmax.f32 %v3628, %v3709
      %v3755 = vmax.f32 %v3633, %v3711
      %v3756 = vmax.f32 %v3638, %v3713
      %v3757 = vmax.f32 %v3643, %v3715
      %v3758 = vmax.f32 %v3648, %v3717
      %v3759 = vmax.f32 %v3653, %v3716
      %v3760 = vld [vmem:[%s3] sm:$0xff]
      %v3761 = vld [vmem:[%s3 + $0x8] sm:$0xff]
      %v3762 = vld [vmem:[%s3 + $0x10] sm:$0xff]
      %v3763 = vld [vmem:[%s3 + $0x18] sm:$0xff]
      %v3764 = vld [vmem:[%s3 + $0x20] sm:$0xff]
      %v3765 = vld [vmem:[%s3 + $0x28] sm:$0xff]
      %v3766 = vld [vmem:[%s3 + $0x30] sm:$0xff]
      %v3767 = vld [vmem:[%s3 + $0x38] sm:$0xff]
      %v3768 = vld [vmem:[%s3 + $0x40] sm:$0xff]
      %v3769 = vld [vmem:[%s3 + $0x48] sm:$0xff]
      %v3770 = vld [vmem:[%s3 + $0x50] sm:$0xff]
      %v3771 = vld [vmem:[%s3 + $0x58] sm:$0xff]
      %v3772 = vld [vmem:[%s3 + $0x60] sm:$0xff]
      %v3773 = vld [vmem:[%s3 + $0x68] sm:$0xff]
      %v3774 = vld [vmem:[%s3 + $0x70] sm:$0xff]
      %v3775 = vld [vmem:[%s3 + $0x78] sm:$0xff]
      %v3776 = vld [vmem:[%s3 + $0x80] sm:$0xff]
      %v3777 = vld [vmem:[%s3 + $0x88] sm:$0xff]
      %v3778 = vld [vmem:[%s3 + $0x90] sm:$0xff]
      %v3779 = vld [vmem:[%s3 + $0x98] sm:$0xff]
      %v3780 = vld [vmem:[%s3 + $0xa0] sm:$0xff]
      %v3781 = vld [vmem:[%s3 + $0xa8] sm:$0xff]
      %v3782 = vld [vmem:[%s3 + $0xb0] sm:$0xff]
      %v3783 = vld [vmem:[%s3 + $0xb8] sm:$0xff]
      %v3785 = vsel %vm1360, %v3761, 0
      %v3788 = vsel %vm1360, %v3763, 0
      %v3791 = vsel %vm1360, %v3765, 0
      %v3794 = vsel %vm1360, %v3767, 0
      %v3797 = vsel %vm1360, %v3769, 0
      %v3800 = vsel %vm1360, %v3771, 0
      %v3803 = vsel %vm1360, %v3773, 0
      %v3806 = vsel %vm1360, %v3775, 0
      %v3809 = vsel %vm1360, %v3777, 0
      %v3812 = vsel %vm1360, %v3779, 0
      %v3815 = vsel %vm1360, %v3781, 0
      %v3818 = vsel %vm1360, %v3783, 0
      %v3821 = vsel %vm1058, %v3759, 0
      %3823 = vmatprep.subr.mxu0 0.0
      %3824 = vmatpush1.msra.mxu0 %v3739
      %3825 = vmatprep.subr.mxu0 0.0
      %3826 = vmatpush1.msra.mxu0 %v3740
      %3827 = vmatprep.subr.mxu0 0.0
      %3828 = vmatpush1.msra.mxu0 %v3741
      %3829 = vmatprep.subr.mxu0 0.0
      %3830 = vmatpush1.msra.mxu0 %v3742
      %3831 = vmatprep.subr.mxu0 0.0
      %3832 = vmatpush1.msra.mxu0 %v3743
      %3833 = vmatprep.subr.mxu0 0.0
      %3834 = vmatpush1.msra.mxu0 %v3744
      %3835 = vmatprep.subr.mxu0 0.0
      %3836 = vmatpush1.msra.mxu0 %v3745
      %3837 = vmatprep.subr.mxu0 0.0
      %3838 = vmatpush1.msra.mxu0 %v3746
      %3839 = vmatprep.subr.mxu0 0.0
      %3840 = vmatpush1.msra.mxu0 %v3747
      %3841 = vmatprep.subr.mxu0 0.0
      %3842 = vmatpush1.msra.mxu0 %v3748
      %3843 = vmatprep.subr.mxu0 0.0
      %3844 = vmatpush1.msra.mxu0 %v3749
      %3845 = vmatprep.subr.mxu0 0.0
      %3846 = vmatpush1.msra.mxu0 %v3750
      %3847 = vmatprep.subr.mxu0 0.0
      %3848 = vmatpush1.msra.mxu0 %v3751
      %3849 = vmatprep.subr.mxu0 0.0
      %3850 = vmatpush1.msra.mxu0 %v3752
      %3851 = vmatprep.subr.mxu0 0.0
      %3852 = vmatpush1.msra.mxu0 %v3753
      %3853 = vmatprep.subr.mxu0 0.0
      %3854 = vmatpush1.msra.mxu0 %v3754
      %3855 = vmatprep.subr.mxu0 0.0
      %3856 = vmatpush1.msra.mxu0 %v3755
      %3857 = vmatprep.subr.mxu0 0.0
      %3858 = vmatpush1.msra.mxu0 %v3756
      %3859 = vmatprep.subr.mxu0 0.0
      %3860 = vmatpush1.msra.mxu0 %v3757
      %3861 = vmatprep.subr.mxu0 0.0
      %3862 = vmatpush1.msra.mxu0 %v3758
      %3863 = vmatprep.subr.mxu0 0.0
      %3864 = vmatpush1.msra.mxu0 %v3821
      %3865 = vmatprep.subr.mxu0 0.0
      %3866 = vmatpush1.msra.mxu0 0.0
      %3867 = vmatprep.subr.mxu0 0.0
      %3868 = vmatpush1.msra.mxu0 0.0
      %3869 = vmatprep.subr.mxu0 0.0
      %3870 = vmatpush1.msra.mxu0 0.0
      %3871 = vmatprep.subr.mxu0 0.0
      %3872 = vmatpush1.msra.mxu0 0.0
      %3873 = vmatprep.subr.mxu0 0.0
      %3874 = vmatpush1.msra.mxu0 0.0
      %3875 = vmatprep.subr.mxu0 0.0
      %3876 = vmatpush1.msra.mxu0 0.0
      %3877 = vmatprep.subr.mxu0 0.0
      %3878 = vmatpush1.msra.mxu0 0.0
      %3879 = vmatprep.subr.mxu0 0.0
      %3880 = vmatpush1.msra.mxu0 0.0
      %3881 = vmatprep.subr.mxu0 0.0
      %3882 = vmatpush1.msra.mxu0 0.0
      %3883 = vmatprep.subr.mxu0 0.0
      %3884 = vmatpush1.msra.mxu0 0.0
      %3885 = vmatprep.subr.mxu0 0.0
      %3886 = vmatpush1.msra.mxu0 0.0
      %3887 = vmatprep.mubr.f32.mxu0 %v3785
      %3888 = vmatmul.mubr.f32.gmra.mrb[0].mxu0 %v3760
      %v3889 = vpop.f32.mrb[0].mxu0
      %v3890 = vadd.f32 0.0, %v3889
      %v3891 = vpop.f32.mrb[0].mxu0
      %3892 = vmatprep.mubr.f32.mxu0 %v3788
      %3893 = vmatmul.mubr.f32.gmra.mrb[0].mxu0 %v3762
      %v3894 = vpop.f32.mrb[0].mxu0
      %v3895 = vadd.f32 0.0, %v3894
      %v3896 = vpop.f32.mrb[0].mxu0
      %3897 = vmatprep.mubr.f32.mxu0 %v3791
      %3898 = vmatmul.mubr.f32.gmra.mrb[0].mxu0 %v3764
      %v3899 = vpop.f32.mrb[0].mxu0
      %v3900 = vadd.f32 0.0, %v3899
      %v3901 = vpop.f32.mrb[0].mxu0
      %3902 = vmatprep.mubr.f32.mxu0 %v3794
      %3903 = vmatmul.mubr.f32.gmra.mrb[0].mxu0 %v3766
      %v3904 = vpop.f32.mrb[0].mxu0
      %v3905 = vadd.f32 0.0, %v3904
      %v3906 = vpop.f32.mrb[0].mxu0
      %3907 = vmatprep.mubr.f32.mxu0 %v3797
      %3908 = vmatmul.mubr.f32.gmra.mrb[0].mxu0 %v3768
      %v3909 = vpop.f32.mrb[0].mxu0
      %v3910 = vadd.f32 0.0, %v3909
      %v3911 = vpop.f32.mrb[0].mxu0
      %3912 = vmatprep.mubr.f32.mxu0 %v3800
      %3913 = vmatmul.mubr.f32.gmra.mrb[0].mxu0 %v3770
      %v3914 = vpop.f32.mrb[0].mxu0
      %v3915 = vadd.f32 0.0, %v3914
      %v3916 = vpop.f32.mrb[0].mxu0
      %3917 = vmatprep.mubr.f32.mxu0 %v3803
      %3918 = vmatmul.mubr.f32.gmra.mrb[0].mxu0 %v3772
      %v3919 = vpop.f32.mrb[0].mxu0
      %v3920 = vadd.f32 0.0, %v3919
      %v3921 = vpop.f32.mrb[0].mxu0
      %3922 = vmatprep.mubr.f32.mxu0 %v3806
      %3923 = vmatmul.mubr.f32.gmra.mrb[0].mxu0 %v3774
      %v3924 = vpop.f32.mrb[0].mxu0
      %v3925 = vadd.f32 0.0, %v3924
      %v3926 = vpop.f32.mrb[0].mxu0
      %3927 = vmatprep.mubr.f32.mxu0 %v3809
      %3928 = vmatmul.mubr.f32.gmra.mrb[0].mxu0 %v3776
      %v3929 = vpop.f32.mrb[0].mxu0
      %v3930 = vadd.f32 0.0, %v3929
      %v3931 = vpop.f32.mrb[0].mxu0
      %3932 = vmatprep.mubr.f32.mxu0 %v3812
      %3933 = vmatmul.mubr.f32.gmra.mrb[0].mxu0 %v3778
      %v3934 = vpop.f32.mrb[0].mxu0
      %v3935 = vadd.f32 0.0, %v3934
      %v3936 = vpop.f32.mrb[0].mxu0
      %3937 = vmatprep.mubr.f32.mxu0 %v3815
      %3938 = vmatmul.mubr.f32.gmra.mrb[0].mxu0 %v3780
      %v3939 = vpop.f32.mrb[0].mxu0
      %v3940 = vadd.f32 0.0, %v3939
      %v3941 = vpop.f32.mrb[0].mxu0
      %3942 = vmatprep.mubr.f32.mxu0 %v3818
      %3943 = vmatmul.mubr.f32.gmra.mrb[0].mxu0 %v3782
      %v3944 = vpop.f32.mrb[0].mxu0
      %v3945 = vadd.f32 0.0, %v3944
      %v3946 = vpop.f32.mrb[0].mxu0
      %3947 = vdwg.mxu0
      %v3948 = vpack.c.bf16 %v3895, %v3890
      %v3949 = vpack.c.bf16 %v3905, %v3900
      %v3950 = vpack.c.bf16 %v3915, %v3910
      %v3951 = vpack.c.bf16 %v3925, %v3920
      %v3952 = vpack.c.bf16 %v3935, %v3930
      %v3953 = vpack.c.bf16 %v3945, %v3940
      %3960 = vrot.lane.b32.xlu0 %v3948, 127
      %v3961 = vpop.permute.xlu0 %3960
      %3962 = vrot.lane.b32.xlu0 %v3949, 127
      %v3963 = vpop.permute.xlu0 %3962
      %3964 = vrot.lane.b32.xlu0 %v3950, 127
      %v3965 = vpop.permute.xlu0 %3964
      %3966 = vrot.lane.b32.xlu0 %v3951, 127
      %v3967 = vpop.permute.xlu0 %3966
      %3968 = vrot.lane.b32.xlu0 %v3952, 127
      %v3969 = vpop.permute.xlu0 %3968
      %3970 = vrot.lane.b32.xlu0 %v3953, 127
      %v3971 = vpop.permute.xlu0 %3970
      %3978 = vrot.lane.b32.xlu0 %v3948, 126
      %v3979 = vpop.permute.xlu0 %3978
      %3980 = vrot.lane.b32.xlu0 %v3949, 126
      %v3981 = vpop.permute.xlu0 %3980
      %3982 = vrot.lane.b32.xlu0 %v3950, 126
      %v3983 = vpop.permute.xlu0 %3982
      %3984 = vrot.lane.b32.xlu0 %v3951, 126
      %v3985 = vpop.permute.xlu0 %3984
      %3986 = vrot.lane.b32.xlu0 %v3952, 126
      %v3987 = vpop.permute.xlu0 %3986
      %3988 = vrot.lane.b32.xlu0 %v3953, 126
      %v3989 = vpop.permute.xlu0 %3988
      %3996 = vrot.lane.b32.xlu0 %v3948, 125
      %v3997 = vpop.permute.xlu0 %3996
      %3998 = vrot.lane.b32.xlu0 %v3949, 125
      %v3999 = vpop.permute.xlu0 %3998
      %4000 = vrot.lane.b32.xlu0 %v3950, 125
      %v4001 = vpop.permute.xlu0 %4000
      %4002 = vrot.lane.b32.xlu0 %v3951, 125
      %v4003 = vpop.permute.xlu0 %4002
      %4004 = vrot.lane.b32.xlu0 %v3952, 125
      %v4005 = vpop.permute.xlu0 %4004
      %4006 = vrot.lane.b32.xlu0 %v3953, 125
      %v4007 = vpop.permute.xlu0 %4006
      %4014 = vrot.lane.b32.xlu0 %v3948, 124
      %v4015 = vpop.permute.xlu0 %4014
      %4016 = vrot.lane.b32.xlu0 %v3949, 124
      %v4017 = vpop.permute.xlu0 %4016
      %4018 = vrot.lane.b32.xlu0 %v3950, 124
      %v4019 = vpop.permute.xlu0 %4018
      %4020 = vrot.lane.b32.xlu0 %v3951, 124
      %v4021 = vpop.permute.xlu0 %4020
      %4022 = vrot.lane.b32.xlu0 %v3952, 124
      %v4023 = vpop.permute.xlu0 %4022
      %4024 = vrot.lane.b32.xlu0 %v3953, 124
      %v4025 = vpop.permute.xlu0 %4024
      %v4032 = vld [vmem:[%s4] sm:$0xff]
      %v4033 = vld [vmem:[%s4 + $0x8] sm:$0xff]
      %v4034 = vld [vmem:[%s4 + $0x10] sm:$0xff]
      %v4035 = vld [vmem:[%s4 + $0x18] sm:$0xff]
      %v4036 = vld [vmem:[%s4 + $0x20] sm:$0xff]
      %v4037 = vld [vmem:[%s4 + $0x28] sm:$0xff]
      %v4038 = vld [vmem:[%s4 + $0x30] sm:$0xff]
      %v4039 = vld [vmem:[%s4 + $0x38] sm:$0xff]
      %v4040 = vld [vmem:[%s4 + $0x40] sm:$0xff]
      %v4041 = vld [vmem:[%s4 + $0x48] sm:$0xff]
      %v4042 = vld [vmem:[%s4 + $0x50] sm:$0xff]
      %v4043 = vld [vmem:[%s4 + $0x58] sm:$0xff]
      %v4044 = vld [vmem:[%s4 + $0x60] sm:$0xff]
      %v4045 = vld [vmem:[%s4 + $0x68] sm:$0xff]
      %v4046 = vld [vmem:[%s4 + $0x70] sm:$0xff]
      %v4047 = vld [vmem:[%s4 + $0x78] sm:$0xff]
      %v4048 = vld [vmem:[%s4 + $0x80] sm:$0xff]
      %v4049 = vld [vmem:[%s4 + $0x88] sm:$0xff]
      %v4050 = vld [vmem:[%s4 + $0x90] sm:$0xff]
      %v4051 = vld [vmem:[%s4 + $0x98] sm:$0xff]
      %v4052 = vld [vmem:[%s4 + $0xa0] sm:$0xff]
      %v4053 = vld [vmem:[%s4 + $0xa8] sm:$0xff]
      %v4054 = vld [vmem:[%s4 + $0xb0] sm:$0xff]
      %v4055 = vld [vmem:[%s4 + $0xb8] sm:$0xff]
      %v4056 = vld [vmem:[%s4 + $0xc0] sm:$0xff]
      %v4057 = vld [vmem:[%s4 + $0xc8] sm:$0xff]
      %v4058 = vld [vmem:[%s4 + $0xd0] sm:$0xff]
      %v4059 = vld [vmem:[%s4 + $0xd8] sm:$0xff]
      %v4060 = vld [vmem:[%s4 + $0xe0] sm:$0xff]
      %v4061 = vld [vmem:[%s4 + $0xe8] sm:$0xff]
      %v4062 = vld [vmem:[%s4 + $0xf0] sm:$0xff]
      %v4063 = vld [vmem:[%s4 + $0xf8] sm:$0xff]
      %v4064 = vld [vmem:[%s4 + $0x100] sm:$0xff]
      %v4065 = vld [vmem:[%s4 + $0x108] sm:$0xff]
      %v4066 = vld [vmem:[%s4 + $0x110] sm:$0xff]
      %v4067 = vld [vmem:[%s4 + $0x118] sm:$0xff]
      %v4068 = vld [vmem:[%s4 + $0x120] sm:$0xff]
      %v4069 = vld [vmem:[%s4 + $0x128] sm:$0xff]
      %v4070 = vld [vmem:[%s4 + $0x130] sm:$0xff]
      %v4071 = vld [vmem:[%s4 + $0x138] sm:$0xff]
      %v4112 = vunpack.c.l.b16 %v4032
      %v4113 = vunpack.c.h.b16 %v4032
      %v4114 = vunpack.c.l.b16 %v4033
      %v4115 = vunpack.c.h.b16 %v4033
      %v4116 = vunpack.c.l.b16 %v4034
      %v4117 = vunpack.c.h.b16 %v4034
      %v4118 = vunpack.c.l.b16 %v4035
      %v4119 = vunpack.c.h.b16 %v4035
      %v4120 = vunpack.c.l.b16 %v4036
      %v4121 = vunpack.c.h.b16 %v4036
      %v4122 = vunpack.c.l.b16 %v4037
      %v4123 = vunpack.c.h.b16 %v4037
      %v4124 = vunpack.c.l.b16 %v4038
      %v4125 = vunpack.c.h.b16 %v4038
      %v4126 = vunpack.c.l.b16 %v4039
      %v4127 = vunpack.c.h.b16 %v4039
      %v4128 = vunpack.c.l.b16 %v4040
      %v4129 = vunpack.c.h.b16 %v4040
      %v4130 = vunpack.c.l.b16 %v4041
      %v4131 = vunpack.c.h.b16 %v4041
      %v4132 = vunpack.c.l.b16 %v4042
      %v4133 = vunpack.c.h.b16 %v4042
      %v4134 = vunpack.c.l.b16 %v4043
      %v4135 = vunpack.c.h.b16 %v4043
      %v4136 = vunpack.c.l.b16 %v4044
      %v4137 = vunpack.c.h.b16 %v4044
      %v4138 = vunpack.c.l.b16 %v4045
      %v4139 = vunpack.c.h.b16 %v4045
      %v4140 = vunpack.c.l.b16 %v4046
      %v4141 = vunpack.c.h.b16 %v4046
      %v4142 = vunpack.c.l.b16 %v4047
      %v4143 = vunpack.c.h.b16 %v4047
      %v4144 = vunpack.c.l.b16 %v4048
      %v4145 = vunpack.c.h.b16 %v4048
      %v4146 = vunpack.c.l.b16 %v4049
      %v4147 = vunpack.c.h.b16 %v4049
      %v4148 = vunpack.c.l.b16 %v4050
      %v4149 = vunpack.c.h.b16 %v4050
      %v4150 = vunpack.c.l.b16 %v4051
      %v4151 = vunpack.c.h.b16 %v4051
      %v4152 = vunpack.c.l.b16 %v4052
      %v4153 = vunpack.c.h.b16 %v4052
      %v4154 = vunpack.c.l.b16 %v4053
      %v4155 = vunpack.c.h.b16 %v4053
      %v4156 = vunpack.c.l.b16 %v4054
      %v4157 = vunpack.c.h.b16 %v4054
      %v4158 = vunpack.c.l.b16 %v4055
      %v4159 = vunpack.c.h.b16 %v4055
      %v4160 = vunpack.c.l.b16 %v4056
      %v4161 = vunpack.c.h.b16 %v4056
      %v4162 = vunpack.c.l.b16 %v4057
      %v4163 = vunpack.c.h.b16 %v4057
      %v4164 = vunpack.c.l.b16 %v4058
      %v4165 = vunpack.c.h.b16 %v4058
      %v4166 = vunpack.c.l.b16 %v4059
      %v4167 = vunpack.c.h.b16 %v4059
      %v4168 = vunpack.c.l.b16 %v4060
      %v4169 = vunpack.c.h.b16 %v4060
      %v4170 = vunpack.c.l.b16 %v4061
      %v4171 = vunpack.c.h.b16 %v4061
      %v4172 = vunpack.c.l.b16 %v4062
      %v4173 = vunpack.c.h.b16 %v4062
      %v4174 = vunpack.c.l.b16 %v4063
      %v4175 = vunpack.c.h.b16 %v4063
      %v4176 = vunpack.c.l.b16 %v4064
      %v4177 = vunpack.c.h.b16 %v4064
      %v4178 = vunpack.c.l.b16 %v4065
      %v4179 = vunpack.c.h.b16 %v4065
      %v4180 = vunpack.c.l.b16 %v4066
      %v4181 = vunpack.c.h.b16 %v4066
      %v4182 = vunpack.c.l.b16 %v4067
      %v4183 = vunpack.c.h.b16 %v4067
      %v4184 = vunpack.c.l.b16 %v4068
      %v4185 = vunpack.c.h.b16 %v4068
      %v4186 = vunpack.c.l.b16 %v4069
      %v4187 = vunpack.c.h.b16 %v4069
      %v4188 = vunpack.c.l.b16 %v4070
      %v4189 = vunpack.c.h.b16 %v4070
      %v4190 = vunpack.c.l.b16 %v4071
      %v4191 = vunpack.c.h.b16 %v4071
      %v4192 = vpack.c.b16 %v4116, %v4112
      %v4193 = vpack.c.b16 %v4117, %v4113
      %v4194 = vpack.c.b16 %v4118, %v4114
      %v4195 = vpack.c.b16 %v4119, %v4115
      %v4196 = vpack.c.b16 %v4124, %v4120
      %v4197 = vpack.c.b16 %v4125, %v4121
      %v4198 = vpack.c.b16 %v4126, %v4122
      %v4199 = vpack.c.b16 %v4127, %v4123
      %v4200 = vpack.c.b16 %v4132, %v4128
      %v4201 = vpack.c.b16 %v4133, %v4129
      %v4202 = vpack.c.b16 %v4134, %v4130
      %v4203 = vpack.c.b16 %v4135, %v4131
      %v4204 = vpack.c.b16 %v4140, %v4136
      %v4205 = vpack.c.b16 %v4141, %v4137
      %v4206 = vpack.c.b16 %v4142, %v4138
      %v4207 = vpack.c.b16 %v4143, %v4139
      %v4208 = vpack.c.b16 %v4148, %v4144
      %v4209 = vpack.c.b16 %v4149, %v4145
      %v4210 = vpack.c.b16 %v4150, %v4146
      %v4211 = vpack.c.b16 %v4151, %v4147
      %v4212 = vpack.c.b16 %v4156, %v4152
      %v4213 = vpack.c.b16 %v4157, %v4153
      %v4214 = vpack.c.b16 %v4158, %v4154
      %v4215 = vpack.c.b16 %v4159, %v4155
      %v4216 = vpack.c.b16 %v4164, %v4160
      %v4217 = vpack.c.b16 %v4165, %v4161
      %v4218 = vpack.c.b16 %v4166, %v4162
      %v4219 = vpack.c.b16 %v4167, %v4163
      %v4220 = vpack.c.b16 %v4172, %v4168
      %v4221 = vpack.c.b16 %v4173, %v4169
      %v4222 = vpack.c.b16 %v4174, %v4170
      %v4223 = vpack.c.b16 %v4175, %v4171
      %v4224 = vpack.c.b16 %v4180, %v4176
      %v4225 = vpack.c.b16 %v4181, %v4177
      %v4226 = vpack.c.b16 %v4182, %v4178
      %v4227 = vpack.c.b16 %v4183, %v4179
      %v4228 = vpack.c.b16 %v4188, %v4184
      %v4229 = vpack.c.b16 %v4189, %v4185
      %v4230 = vpack.c.b16 %v4190, %v4186
      %v4231 = vpack.c.b16 %v4191, %v4187
      %v4263 = vsel %vm1939, %v4195, 0
      %v4266 = vsel %vm1939, %v4199, 0
      %v4269 = vsel %vm1939, %v4203, 0
      %v4272 = vsel %vm1939, %v4207, 0
      %v4275 = vsel %vm1939, %v4211, 0
      %v4278 = vsel %vm1939, %v4215, 0
      %v4281 = vsel %vm1939, %v4219, 0
      %v4284 = vsel %vm1939, %v4223, 0
      %v4287 = vsel %vm1939, %v4227, 0
      %v4290 = vsel %vm1939, %v4231, 0
      %4292 = vmatprep.subr.bf16.mxu0 0
      %4293 = vmatpush1.bf16.msra.mxu0 %v3948
      %4294 = vmatprep.subr.bf16.mxu0 0
      %4295 = vmatpush1.bf16.msra.mxu0 %v3949
      %4296 = vmatprep.subr.bf16.mxu0 0
      %4297 = vmatpush1.bf16.msra.mxu0 %v3950
      %4298 = vmatprep.subr.bf16.mxu0 0
      %4299 = vmatpush1.bf16.msra.mxu0 %v3951
      %4300 = vmatprep.subr.bf16.mxu0 0
      %4301 = vmatpush1.bf16.msra.mxu0 %v3952
      %4302 = vmatprep.subr.bf16.mxu0 0
      %4303 = vmatpush1.bf16.msra.mxu0 %v3953
      %4304 = vmatprep.subr.bf16.mxu0 0
      %4305 = vmatpush1.bf16.msra.mxu0 %v3961
      %4306 = vmatprep.subr.bf16.mxu0 0
      %4307 = vmatpush1.bf16.msra.mxu0 %v3963
      %4308 = vmatprep.subr.bf16.mxu0 0
      %4309 = vmatpush1.bf16.msra.mxu0 %v3965
      %4310 = vmatprep.subr.bf16.mxu0 0
      %4311 = vmatpush1.bf16.msra.mxu0 %v3967
      %4312 = vmatprep.subr.bf16.mxu0 0
      %4313 = vmatpush1.bf16.msra.mxu0 %v3969
      %4314 = vmatprep.subr.bf16.mxu0 0
      %4315 = vmatpush1.bf16.msra.mxu0 %v3971
      %4316 = vmatprep.subr.bf16.mxu0 0
      %4317 = vmatpush1.bf16.msra.mxu0 %v3979
      %4318 = vmatprep.subr.bf16.mxu0 0
      %4319 = vmatpush1.bf16.msra.mxu0 %v3981
      %4320 = vmatprep.subr.bf16.mxu0 0
      %4321 = vmatpush1.bf16.msra.mxu0 %v3983
      %4322 = vmatprep.subr.bf16.mxu0 0
      %4323 = vmatpush1.bf16.msra.mxu0 %v3985
      %4324 = vmatprep.mubr.bf16.mxu0 %v4193
      %4325 = vmatmul.mubr.bf16.gmra.mrb[0].mxu0 %v4192
      %v4326 = vpop.f32.mrb[0].mxu0
      %v4327 = vadd.f32 %v1652, %v4326
      %v4328 = vpop.f32.mrb[0].mxu0
      %v4329 = vpop.f32.mrb[0].mxu0
      %v4330 = vadd.f32 %v1657, %v4329
      %v4331 = vpop.f32.mrb[0].mxu0
      %4332 = vmatprep.mubr.bf16.mxu0 %v4197
      %4333 = vmatmul.mubr.bf16.gmra.mrb[0].mxu0 %v4196
      %v4334 = vpop.f32.mrb[0].mxu0
      %v4335 = vadd.f32 %v1662, %v4334
      %v4336 = vpop.f32.mrb[0].mxu0
      %v4337 = vpop.f32.mrb[0].mxu0
      %v4338 = vadd.f32 %v1667, %v4337
      %v4339 = vpop.f32.mrb[0].mxu0
      %4340 = vmatprep.mubr.bf16.mxu0 %v4201
      %4341 = vmatmul.mubr.bf16.gmra.mrb[0].mxu0 %v4200
      %v4342 = vpop.f32.mrb[0].mxu0
      %v4343 = vadd.f32 %v1672, %v4342
      %v4344 = vpop.f32.mrb[0].mxu0
      %v4345 = vpop.f32.mrb[0].mxu0
      %v4346 = vadd.f32 %v1677, %v4345
      %v4347 = vpop.f32.mrb[0].mxu0
      %4348 = vmatprep.mubr.bf16.mxu0 %v4205
      %4349 = vmatmul.mubr.bf16.gmra.mrb[0].mxu0 %v4204
      %v4350 = vpop.f32.mrb[0].mxu0
      %v4351 = vadd.f32 %v1682, %v4350
      %v4352 = vpop.f32.mrb[0].mxu0
      %v4353 = vpop.f32.mrb[0].mxu0
      %v4354 = vadd.f32 %v1687, %v4353
      %v4355 = vpop.f32.mrb[0].mxu0
      %4356 = vmatprep.mubr.bf16.mxu0 %v4209
      %4357 = vmatmul.mubr.bf16.gmra.mrb[0].mxu0 %v4208
      %v4358 = vpop.f32.mrb[0].mxu0
      %v4359 = vadd.f32 %v1692, %v4358
      %v4360 = vpop.f32.mrb[0].mxu0
      %v4361 = vpop.f32.mrb[0].mxu0
      %v4362 = vadd.f32 %v1697, %v4361
      %v4363 = vpop.f32.mrb[0].mxu0
      %4364 = vmatprep.mubr.bf16.mxu0 %v4213
      %4365 = vmatmul.mubr.bf16.gmra.mrb[0].mxu0 %v4212
      %v4366 = vpop.f32.mrb[0].mxu0
      %v4367 = vadd.f32 %v1702, %v4366
      %v4368 = vpop.f32.mrb[0].mxu0
      %v4369 = vpop.f32.mrb[0].mxu0
      %v4370 = vadd.f32 %v1707, %v4369
      %v4371 = vpop.f32.mrb[0].mxu0
      %4372 = vmatprep.mubr.bf16.mxu0 %v4217
      %4373 = vmatmul.mubr.bf16.gmra.mrb[0].mxu0 %v4216
      %v4374 = vpop.f32.mrb[0].mxu0
      %v4375 = vadd.f32 %v1712, %v4374
      %v4376 = vpop.f32.mrb[0].mxu0
      %v4377 = vpop.f32.mrb[0].mxu0
      %v4378 = vadd.f32 %v1717, %v4377
      %v4379 = vpop.f32.mrb[0].mxu0
      %4380 = vmatprep.mubr.bf16.mxu0 %v4221
      %4381 = vmatmul.mubr.bf16.gmra.mrb[0].mxu0 %v4220
      %v4382 = vpop.f32.mrb[0].mxu0
      %v4383 = vadd.f32 %v1722, %v4382
      %v4384 = vpop.f32.mrb[0].mxu0
      %v4385 = vpop.f32.mrb[0].mxu0
      %v4386 = vadd.f32 %v1727, %v4385
      %v4387 = vpop.f32.mrb[0].mxu0
      %4388 = vmatprep.mubr.bf16.mxu0 %v4225
      %4389 = vmatmul.mubr.bf16.gmra.mrb[0].mxu0 %v4224
      %v4390 = vpop.f32.mrb[0].mxu0
      %v4391 = vadd.f32 %v1732, %v4390
      %v4392 = vpop.f32.mrb[0].mxu0
      %v4393 = vpop.f32.mrb[0].mxu0
      %v4394 = vadd.f32 %v1737, %v4393
      %v4395 = vpop.f32.mrb[0].mxu0
      %4396 = vmatprep.mubr.bf16.mxu0 %v4229
      %4397 = vmatmul.mubr.bf16.gmra.mrb[0].mxu0 %v4228
      %v4398 = vpop.f32.mrb[0].mxu0
      %v4399 = vadd.f32 %v1742, %v4398
      %v4400 = vpop.f32.mrb[0].mxu0
      %v4401 = vpop.f32.mrb[0].mxu0
      %v4402 = vadd.f32 %v1747, %v4401
      %v4403 = vpop.f32.mrb[0].mxu0
      %4404 = vdwg.mxu0
      %4405 = vmatprep.subr.bf16.mxu0 0
      %4406 = vmatpush1.bf16.msra.mxu0 %v3987
      %4407 = vmatprep.subr.bf16.mxu0 0
      %4408 = vmatpush1.bf16.msra.mxu0 %v3989
      %4409 = vmatprep.subr.bf16.mxu0 0
      %4410 = vmatpush1.bf16.msra.mxu0 %v3997
      %4411 = vmatprep.subr.bf16.mxu0 0
      %4412 = vmatpush1.bf16.msra.mxu0 %v3999
      %4413 = vmatprep.subr.bf16.mxu0 0
      %4414 = vmatpush1.bf16.msra.mxu0 %v4001
      %4415 = vmatprep.subr.bf16.mxu0 0
      %4416 = vmatpush1.bf16.msra.mxu0 %v4003
      %4417 = vmatprep.subr.bf16.mxu0 0
      %4418 = vmatpush1.bf16.msra.mxu0 %v4005
      %4419 = vmatprep.subr.bf16.mxu0 0
      %4420 = vmatpush1.bf16.msra.mxu0 %v4007
      %4421 = vmatprep.subr.bf16.mxu0 0
      %4422 = vmatpush1.bf16.msra.mxu0 %v4015
      %4423 = vmatprep.subr.bf16.mxu0 0
      %4424 = vmatpush1.bf16.msra.mxu0 %v4017
      %4425 = vmatprep.subr.bf16.mxu0 0
      %4426 = vmatpush1.bf16.msra.mxu0 %v4019
      %4427 = vmatprep.subr.bf16.mxu0 0
      %4428 = vmatpush1.bf16.msra.mxu0 %v4021
      %4429 = vmatprep.subr.bf16.mxu0 0
      %4430 = vmatpush1.bf16.msra.mxu0 %v4023
      %4431 = vmatprep.subr.bf16.mxu0 0
      %4432 = vmatpush1.bf16.msra.mxu0 %v4025
      %4433 = vmatprep.subr.bf16.mxu0 0
      %4434 = vmatpush1.bf16.msra.mxu0 0
      %4435 = vmatprep.subr.bf16.mxu0 0
      %4436 = vmatpush1.bf16.msra.mxu0 0
      %4437 = vmatprep.mubr.bf16.mxu0 %v4263
      %4438 = vmatmul.mubr.bf16.gmra.mrb[0].mxu0 %v4194
      %v4439 = vpop.f32.mrb[0].mxu0
      %v4440 = vadd.f32 %v4327, %v4439
      %v4441 = vpop.f32.mrb[0].mxu0
      %v4442 = vpop.f32.mrb[0].mxu0
      %v4443 = vadd.f32 %v4330, %v4442
      %v4444 = vpop.f32.mrb[0].mxu0
      %4445 = vmatprep.mubr.bf16.mxu0 %v4266
      %4446 = vmatmul.mubr.bf16.gmra.mrb[0].mxu0 %v4198
      %v4447 = vpop.f32.mrb[0].mxu0
      %v4448 = vadd.f32 %v4335, %v4447
      %v4449 = vpop.f32.mrb[0].mxu0
      %v4450 = vpop.f32.mrb[0].mxu0
      %v4451 = vadd.f32 %v4338, %v4450
      %v4452 = vpop.f32.mrb[0].mxu0
      %4453 = vmatprep.mubr.bf16.mxu0 %v4269
      %4454 = vmatmul.mubr.bf16.gmra.mrb[0].mxu0 %v4202
      %v4455 = vpop.f32.mrb[0].mxu0
      %v4456 = vadd.f32 %v4343, %v4455
      %v4457 = vpop.f32.mrb[0].mxu0
      %v4458 = vpop.f32.mrb[0].mxu0
      %v4459 = vadd.f32 %v4346, %v4458
      %v4460 = vpop.f32.mrb[0].mxu0
      %4461 = vmatprep.mubr.bf16.mxu0 %v4272
      %4462 = vmatmul.mubr.bf16.gmra.mrb[0].mxu0 %v4206
      %v4463 = vpop.f32.mrb[0].mxu0
      %v4464 = vadd.f32 %v4351, %v4463
      %v4465 = vpop.f32.mrb[0].mxu0
      %v4466 = vpop.f32.mrb[0].mxu0
      %v4467 = vadd.f32 %v4354, %v4466
      %v4468 = vpop.f32.mrb[0].mxu0
      %4469 = vmatprep.mubr.bf16.mxu0 %v4275
      %4470 = vmatmul.mubr.bf16.gmra.mrb[0].mxu0 %v4210
      %v4471 = vpop.f32.mrb[0].mxu0
      %v4472 = vadd.f32 %v4359, %v4471
      %v4473 = vpop.f32.mrb[0].mxu0
      %v4474 = vpop.f32.mrb[0].mxu0
      %v4475 = vadd.f32 %v4362, %v4474
      %v4476 = vpop.f32.mrb[0].mxu0
      %4477 = vmatprep.mubr.bf16.mxu0 %v4278
      %4478 = vmatmul.mubr.bf16.gmra.mrb[0].mxu0 %v4214
      %v4479 = vpop.f32.mrb[0].mxu0
      %v4480 = vadd.f32 %v4367, %v4479
      %v4481 = vpop.f32.mrb[0].mxu0
      %v4482 = vpop.f32.mrb[0].mxu0
      %v4483 = vadd.f32 %v4370, %v4482
      %v4484 = vpop.f32.mrb[0].mxu0
      %4485 = vmatprep.mubr.bf16.mxu0 %v4281
      %4486 = vmatmul.mubr.bf16.gmra.mrb[0].mxu0 %v4218
      %v4487 = vpop.f32.mrb[0].mxu0
      %v4488 = vadd.f32 %v4375, %v4487
      %v4489 = vpop.f32.mrb[0].mxu0
      %v4490 = vpop.f32.mrb[0].mxu0
      %v4491 = vadd.f32 %v4378, %v4490
      %v4492 = vpop.f32.mrb[0].mxu0
      %4493 = vmatprep.mubr.bf16.mxu0 %v4284
      %4494 = vmatmul.mubr.bf16.gmra.mrb[0].mxu0 %v4222
      %v4495 = vpop.f32.mrb[0].mxu0
      %v4496 = vadd.f32 %v4383, %v4495
      %v4497 = vpop.f32.mrb[0].mxu0
      %v4498 = vpop.f32.mrb[0].mxu0
      %v4499 = vadd.f32 %v4386, %v4498
      %v4500 = vpop.f32.mrb[0].mxu0
      %4501 = vmatprep.mubr.bf16.mxu0 %v4287
      %4502 = vmatmul.mubr.bf16.gmra.mrb[0].mxu0 %v4226
      %v4503 = vpop.f32.mrb[0].mxu0
      %v4504 = vadd.f32 %v4391, %v4503
      %v4505 = vpop.f32.mrb[0].mxu0
      %v4506 = vpop.f32.mrb[0].mxu0
      %v4507 = vadd.f32 %v4394, %v4506
      %v4508 = vpop.f32.mrb[0].mxu0
      %4509 = vmatprep.mubr.bf16.mxu0 %v4290
      %4510 = vmatmul.mubr.bf16.gmra.mrb[0].mxu0 %v4230
      %v4511 = vpop.f32.mrb[0].mxu0
      %v4512 = vadd.f32 %v4399, %v4511
      %v4513 = vpop.f32.mrb[0].mxu0
      %v4514 = vpop.f32.mrb[0].mxu0
      %v4515 = vadd.f32 %v4402, %v4514
      %v4516 = vpop.f32.mrb[0].mxu0
      %4517 = vdwg.mxu0
      %4538 = vrot.lane.b32.xlu0 %v4440, 127
      %v4539 = vpop.permute.xlu0 %4538
      %4540 = vrot.lane.b32.xlu0 %v4443, 127
      %v4541 = vpop.permute.xlu0 %4540
      %4542 = vrot.lane.b32.xlu0 %v4448, 127
      %v4543 = vpop.permute.xlu0 %4542
      %4544 = vrot.lane.b32.xlu0 %v4451, 127
      %v4545 = vpop.permute.xlu0 %4544
      %4546 = vrot.lane.b32.xlu0 %v4456, 127
      %v4547 = vpop.permute.xlu0 %4546
      %4548 = vrot.lane.b32.xlu0 %v4459, 127
      %v4549 = vpop.permute.xlu0 %4548
      %4550 = vrot.lane.b32.xlu0 %v4464, 127
      %v4551 = vpop.permute.xlu0 %4550
      %4552 = vrot.lane.b32.xlu0 %v4467, 127
      %v4553 = vpop.permute.xlu0 %4552
      %4554 = vrot.lane.b32.xlu0 %v4472, 127
      %v4555 = vpop.permute.xlu0 %4554
      %4556 = vrot.lane.b32.xlu0 %v4475, 127
      %v4557 = vpop.permute.xlu0 %4556
      %4558 = vrot.lane.b32.xlu0 %v4480, 127
      %v4559 = vpop.permute.xlu0 %4558
      %4560 = vrot.lane.b32.xlu0 %v4483, 127
      %v4561 = vpop.permute.xlu0 %4560
      %4562 = vrot.lane.b32.xlu0 %v4488, 127
      %v4563 = vpop.permute.xlu0 %4562
      %4564 = vrot.lane.b32.xlu0 %v4491, 127
      %v4565 = vpop.permute.xlu0 %4564
      %4566 = vrot.lane.b32.xlu0 %v4496, 127
      %v4567 = vpop.permute.xlu0 %4566
      %4568 = vrot.lane.b32.xlu0 %v4499, 127
      %v4569 = vpop.permute.xlu0 %4568
      %4570 = vrot.lane.b32.xlu0 %v4504, 127
      %v4571 = vpop.permute.xlu0 %4570
      %4572 = vrot.lane.b32.xlu0 %v4507, 127
      %v4573 = vpop.permute.xlu0 %4572
      %4574 = vrot.lane.b32.xlu0 %v4512, 127
      %v4575 = vpop.permute.xlu0 %4574
      %4576 = vrot.lane.b32.xlu0 %v4515, 127
      %v4577 = vpop.permute.xlu0 %4576
      %v4598 = vmax.f32 %v4440, %v4539
      %v4599 = vmax.f32 %v4443, %v4541
      %v4600 = vmax.f32 %v4448, %v4543
      %v4601 = vmax.f32 %v4451, %v4545
      %v4602 = vmax.f32 %v4456, %v4547
      %v4603 = vmax.f32 %v4459, %v4549
      %v4604 = vmax.f32 %v4464, %v4551
      %v4605 = vmax.f32 %v4467, %v4553
      %v4606 = vmax.f32 %v4472, %v4555
      %v4607 = vmax.f32 %v4475, %v4557
      %v4608 = vmax.f32 %v4480, %v4559
      %v4609 = vmax.f32 %v4483, %v4561
      %v4610 = vmax.f32 %v4488, %v4563
      %v4611 = vmax.f32 %v4491, %v4565
      %v4612 = vmax.f32 %v4496, %v4567
      %v4613 = vmax.f32 %v4499, %v4569
      %v4614 = vmax.f32 %v4504, %v4571
      %v4615 = vmax.f32 %v4507, %v4573
      %v4616 = vmax.f32 %v4512, %v4575
      %v4617 = vmax.f32 %v4515, %v4577
      %v4618 = vld [vmem:[%s5] sm:$0xff]
      %v4619 = vld [vmem:[%s5 + $0x8] sm:$0xff]
      %v4620 = vld [vmem:[%s5 + $0x10] sm:$0xff]
      %v4621 = vld [vmem:[%s5 + $0x18] sm:$0xff]
      %v4622 = vld [vmem:[%s5 + $0x20] sm:$0xff]
      %v4623 = vld [vmem:[%s5 + $0x28] sm:$0xff]
      %v4624 = vld [vmem:[%s5 + $0x30] sm:$0xff]
      %v4625 = vld [vmem:[%s5 + $0x38] sm:$0xff]
      %v4626 = vld [vmem:[%s5 + $0x40] sm:$0xff]
      %v4627 = vld [vmem:[%s5 + $0x48] sm:$0xff]
      %v4628 = vld [vmem:[%s5 + $0x50] sm:$0xff]
      %v4629 = vld [vmem:[%s5 + $0x58] sm:$0xff]
      %v4630 = vld [vmem:[%s5 + $0x60] sm:$0xff]
      %v4631 = vld [vmem:[%s5 + $0x68] sm:$0xff]
      %v4632 = vld [vmem:[%s5 + $0x70] sm:$0xff]
      %v4633 = vld [vmem:[%s5 + $0x78] sm:$0x7f]
      %v4635 = vsel %vm994, %v4598, 0
      %v4638 = vsel %vm994, %v4599, 0
      %v4641 = vsel %vm994, %v4600, 0
      %v4644 = vsel %vm994, %v4601, 0
      %v4647 = vsel %vm994, %v4602, 0
      %v4650 = vsel %vm994, %v4603, 0
      %v4653 = vsel %vm994, %v4604, 0
      %v4656 = vsel %vm994, %v4605, 0
      %v4659 = vsel %vm994, %v4606, 0
      %v4662 = vsel %vm994, %v4607, 0
      %v4665 = vsel %vm994, %v4608, 0
      %v4668 = vsel %vm994, %v4609, 0
      %v4671 = vsel %vm994, %v4610, 0
      %v4674 = vsel %vm994, %v4611, 0
      %v4677 = vsel %vm994, %v4612, 0
      %v4680 = vsel %vm994, %v4613, 0
      %v4683 = vsel %vm994, %v4614, 0
      %v4686 = vsel %vm994, %v4615, 0
      %v4689 = vsel %vm994, %v4616, 0
      %v4692 = vsel %vm994, %v4617, 0
      %v4695 = vsel %vm1058, %v4633, 0
      %4697 = vmatprep.subr.mxu0 0.0
      %4698 = vmatpush1.msra.mxu0 %v4618
      %4699 = vmatprep.subr.mxu0 0.0
      %4700 = vmatpush1.msra.mxu0 %v4619
      %4701 = vmatprep.subr.mxu0 0.0
      %4702 = vmatpush1.msra.mxu0 %v4620
      %4703 = vmatprep.subr.mxu0 0.0
      %4704 = vmatpush1.msra.mxu0 %v4621
      %4705 = vmatprep.subr.mxu0 0.0
      %4706 = vmatpush1.msra.mxu0 %v4622
      %4707 = vmatprep.subr.mxu0 0.0
      %4708 = vmatpush1.msra.mxu0 %v4623
      %4709 = vmatprep.subr.mxu0 0.0
      %4710 = vmatpush1.msra.mxu0 %v4624
      %4711 = vmatprep.subr.mxu0 0.0
      %4712 = vmatpush1.msra.mxu0 %v4625
      %4713 = vmatprep.subr.mxu0 0.0
      %4714 = vmatpush1.msra.mxu0 %v4626
      %4715 = vmatprep.subr.mxu0 0.0
      %4716 = vmatpush1.msra.mxu0 %v4627
      %4717 = vmatprep.subr.mxu0 0.0
      %4718 = vmatpush1.msra.mxu0 %v4628
      %4719 = vmatprep.subr.mxu0 0.0
      %4720 = vmatpush1.msra.mxu0 %v4629
      %4721 = vmatprep.subr.mxu0 0.0
      %4722 = vmatpush1.msra.mxu0 %v4630
      %4723 = vmatprep.subr.mxu0 0.0
      %4724 = vmatpush1.msra.mxu0 %v4631
      %4725 = vmatprep.subr.mxu0 0.0
      %4726 = vmatpush1.msra.mxu0 %v4632
      %4727 = vmatprep.subr.mxu0 0.0
      %4728 = vmatpush1.msra.mxu0 %v4695
      %4729 = vmatprep.subr.mxu0 0.0
      %4730 = vmatpush1.msra.mxu0 0.0
      %4731 = vmatprep.subr.mxu0 0.0
      %4732 = vmatpush1.msra.mxu0 0.0
      %4733 = vmatprep.subr.mxu0 0.0
      %4734 = vmatpush1.msra.mxu0 0.0
      %4735 = vmatprep.subr.mxu0 0.0
      %4736 = vmatpush1.msra.mxu0 0.0
      %4737 = vmatprep.subr.mxu0 0.0
      %4738 = vmatpush1.msra.mxu0 0.0
      %4739 = vmatprep.subr.mxu0 0.0
      %4740 = vmatpush1.msra.mxu0 0.0
      %4741 = vmatprep.subr.mxu0 0.0
      %4742 = vmatpush1.msra.mxu0 0.0
      %4743 = vmatprep.subr.mxu0 0.0
      %4744 = vmatpush1.msra.mxu0 0.0
      %4745 = vmatprep.subr.mxu0 0.0
      %4746 = vmatpush1.msra.mxu0 0.0
      %4747 = vmatprep.subr.mxu0 0.0
      %4748 = vmatpush1.msra.mxu0 0.0
      %4749 = vmatprep.subr.mxu0 0.0
      %4750 = vmatpush1.msra.mxu0 0.0
      %4751 = vmatprep.subr.mxu0 0.0
      %4752 = vmatpush1.msra.mxu0 0.0
      %4753 = vmatprep.subr.mxu0 0.0
      %4754 = vmatpush1.msra.mxu0 0.0
      %4755 = vmatprep.subr.mxu0 0.0
      %4756 = vmatpush1.msra.mxu0 0.0
      %4757 = vmatprep.subr.mxu0 0.0
      %4758 = vmatpush1.msra.mxu0 0.0
      %4759 = vmatprep.subr.mxu0 0.0
      %4760 = vmatpush1.msra.mxu0 0.0
      %4761 = vmatprep.mubr.f32.mxu0 0.0
      %4762 = vmatmul.mubr.f32.gmra.mrb[0].mxu0 %v4635
      %v4763 = vpop.f32.mrb[0].mxu0
      %v4764 = vadd.f32 0.0, %v4763
      %v4765 = vpop.f32.mrb[0].mxu0
      %4766 = vmatprep.mubr.f32.mxu0 0.0
      %4767 = vmatmul.mubr.f32.gmra.mrb[0].mxu0 %v4638
      %v4768 = vpop.f32.mrb[0].mxu0
      %v4769 = vadd.f32 0.0, %v4768
      %v4770 = vpop.f32.mrb[0].mxu0
      %4771 = vmatprep.mubr.f32.mxu0 0.0
      %4772 = vmatmul.mubr.f32.gmra.mrb[0].mxu0 %v4641
      %v4773 = vpop.f32.mrb[0].mxu0
      %v4774 = vadd.f32 0.0, %v4773
      %v4775 = vpop.f32.mrb[0].mxu0
      %4776 = vmatprep.mubr.f32.mxu0 0.0
      %4777 = vmatmul.mubr.f32.gmra.mrb[0].mxu0 %v4644
      %v4778 = vpop.f32.mrb[0].mxu0
      %v4779 = vadd.f32 0.0, %v4778
      %v4780 = vpop.f32.mrb[0].mxu0
      %4781 = vmatprep.mubr.f32.mxu0 0.0
      %4782 = vmatmul.mubr.f32.gmra.mrb[0].mxu0 %v4647
      %v4783 = vpop.f32.mrb[0].mxu0
      %v4784 = vadd.f32 0.0, %v4783
      %v4785 = vpop.f32.mrb[0].mxu0
      %4786 = vmatprep.mubr.f32.mxu0 0.0
      %4787 = vmatmul.mubr.f32.gmra.mrb[0].mxu0 %v4650
      %v4788 = vpop.f32.mrb[0].mxu0
      %v4789 = vadd.f32 0.0, %v4788
      %v4790 = vpop.f32.mrb[0].mxu0
      %4791 = vmatprep.mubr.f32.mxu0 0.0
      %4792 = vmatmul.mubr.f32.gmra.mrb[0].mxu0 %v4653
      %v4793 = vpop.f32.mrb[0].mxu0
      %v4794 = vadd.f32 0.0, %v4793
      %v4795 = vpop.f32.mrb[0].mxu0
      %4796 = vmatprep.mubr.f32.mxu0 0.0
      %4797 = vmatmul.mubr.f32.gmra.mrb[0].mxu0 %v4656
      %v4798 = vpop.f32.mrb[0].mxu0
      %v4799 = vadd.f32 0.0, %v4798
      %v4800 = vpop.f32.mrb[0].mxu0
      %4801 = vmatprep.mubr.f32.mxu0 0.0
      %4802 = vmatmul.mubr.f32.gmra.mrb[0].mxu0 %v4659
      %v4803 = vpop.f32.mrb[0].mxu0
      %v4804 = vadd.f32 0.0, %v4803
      %v4805 = vpop.f32.mrb[0].mxu0
      %4806 = vmatprep.mubr.f32.mxu0 0.0
      %4807 = vmatmul.mubr.f32.gmra.mrb[0].mxu0 %v4662
      %v4808 = vpop.f32.mrb[0].mxu0
      %v4809 = vadd.f32 0.0, %v4808
      %v4810 = vpop.f32.mrb[0].mxu0
      %4811 = vmatprep.mubr.f32.mxu0 0.0
      %4812 = vmatmul.mubr.f32.gmra.mrb[0].mxu0 %v4665
      %v4813 = vpop.f32.mrb[0].mxu0
      %v4814 = vadd.f32 0.0, %v4813
      %v4815 = vpop.f32.mrb[0].mxu0
      %4816 = vmatprep.mubr.f32.mxu0 0.0
      %4817 = vmatmul.mubr.f32.gmra.mrb[0].mxu0 %v4668
      %v4818 = vpop.f32.mrb[0].mxu0
      %v4819 = vadd.f32 0.0, %v4818
      %v4820 = vpop.f32.mrb[0].mxu0
      %4821 = vmatprep.mubr.f32.mxu0 0.0
      %4822 = vmatmul.mubr.f32.gmra.mrb[0].mxu0 %v4671
      %v4823 = vpop.f32.mrb[0].mxu0
      %v4824 = vadd.f32 0.0, %v4823
      %v4825 = vpop.f32.mrb[0].mxu0
      %4826 = vmatprep.mubr.f32.mxu0 0.0
      %4827 = vmatmul.mubr.f32.gmra.mrb[0].mxu0 %v4674
      %v4828 = vpop.f32.mrb[0].mxu0
      %v4829 = vadd.f32 0.0, %v4828
      %v4830 = vpop.f32.mrb[0].mxu0
      %4831 = vmatprep.mubr.f32.mxu0 0.0
      %4832 = vmatmul.mubr.f32.gmra.mrb[0].mxu0 %v4677
      %v4833 = vpop.f32.mrb[0].mxu0
      %v4834 = vadd.f32 0.0, %v4833
      %v4835 = vpop.f32.mrb[0].mxu0
      %4836 = vmatprep.mubr.f32.mxu0 0.0
      %4837 = vmatmul.mubr.f32.gmra.mrb[0].mxu0 %v4680
      %v4838 = vpop.f32.mrb[0].mxu0
      %v4839 = vadd.f32 0.0, %v4838
      %v4840 = vpop.f32.mrb[0].mxu0
      %4841 = vmatprep.mubr.f32.mxu0 0.0
      %4842 = vmatmul.mubr.f32.gmra.mrb[0].mxu0 %v4683
      %v4843 = vpop.f32.mrb[0].mxu0
      %v4844 = vadd.f32 0.0, %v4843
      %v4845 = vpop.f32.mrb[0].mxu0
      %4846 = vmatprep.mubr.f32.mxu0 0.0
      %4847 = vmatmul.mubr.f32.gmra.mrb[0].mxu0 %v4686
      %v4848 = vpop.f32.mrb[0].mxu0
      %v4849 = vadd.f32 0.0, %v4848
      %v4850 = vpop.f32.mrb[0].mxu0
      %4851 = vmatprep.mubr.f32.mxu0 0.0
      %4852 = vmatmul.mubr.f32.gmra.mrb[0].mxu0 %v4689
      %v4853 = vpop.f32.mrb[0].mxu0
      %v4854 = vadd.f32 0.0, %v4853
      %v4855 = vpop.f32.mrb[0].mxu0
      %4856 = vmatprep.mubr.f32.mxu0 0.0
      %4857 = vmatmul.mubr.f32.gmra.mrb[0].mxu0 %v4692
      %v4858 = vpop.f32.mrb[0].mxu0
      %v4859 = vadd.f32 0.0, %v4858
      %v4860 = vpop.f32.mrb[0].mxu0
      %4861 = vdwg.mxu0
      %v4882 = vrot.slane %v4764, 1
      %v4883 = vrot.slane %v4769, 1
      %v4884 = vsel %vm1058, %v4882, %v4883
      %v4885 = vrot.slane %v4774, 1
      %v4886 = vsel %vm1058, %v4883, %v4885
      %v4887 = vrot.slane %v4779, 1
      %v4888 = vsel %vm1058, %v4885, %v4887
      %v4889 = vrot.slane %v4784, 1
      %v4890 = vsel %vm1058, %v4887, %v4889
      %v4891 = vrot.slane %v4789, 1
      %v4892 = vsel %vm1058, %v4889, %v4891
      %v4893 = vrot.slane %v4794, 1
      %v4894 = vsel %vm1058, %v4891, %v4893
      %v4895 = vrot.slane %v4799, 1
      %v4896 = vsel %vm1058, %v4893, %v4895
      %v4897 = vrot.slane %v4804, 1
      %v4898 = vsel %vm1058, %v4895, %v4897
      %v4899 = vrot.slane %v4809, 1
      %v4900 = vsel %vm1058, %v4897, %v4899
      %v4901 = vrot.slane %v4814, 1
      %v4902 = vsel %vm1058, %v4899, %v4901
      %v4903 = vrot.slane %v4819, 1
      %v4904 = vsel %vm1058, %v4901, %v4903
      %v4905 = vrot.slane %v4824, 1
      %v4906 = vsel %vm1058, %v4903, %v4905
      %v4907 = vrot.slane %v4829, 1
      %v4908 = vsel %vm1058, %v4905, %v4907
      %v4909 = vrot.slane %v4834, 1
      %v4910 = vsel %vm1058, %v4907, %v4909
      %v4911 = vrot.slane %v4839, 1
      %v4912 = vsel %vm1058, %v4909, %v4911
      %v4913 = vrot.slane %v4844, 1
      %v4914 = vsel %vm1058, %v4911, %v4913
      %v4915 = vrot.slane %v4849, 1
      %v4916 = vsel %vm1058, %v4913, %v4915
      %v4917 = vrot.slane %v4854, 1
      %v4918 = vsel %vm1058, %v4915, %v4917
      %v4919 = vrot.slane %v4859, 1
      %v4920 = vsel %vm1058, %v4917, %v4919
      %v4941 = vmax.f32 %v4764, %v4884
      %v4942 = vmax.f32 %v4769, %v4886
      %v4943 = vmax.f32 %v4774, %v4888
      %v4944 = vmax.f32 %v4779, %v4890
      %v4945 = vmax.f32 %v4784, %v4892
      %v4946 = vmax.f32 %v4789, %v4894
      %v4947 = vmax.f32 %v4794, %v4896
      %v4948 = vmax.f32 %v4799, %v4898
      %v4949 = vmax.f32 %v4804, %v4900
      %v4950 = vmax.f32 %v4809, %v4902
      %v4951 = vmax.f32 %v4814, %v4904
      %v4952 = vmax.f32 %v4819, %v4906
      %v4953 = vmax.f32 %v4824, %v4908
      %v4954 = vmax.f32 %v4829, %v4910
      %v4955 = vmax.f32 %v4834, %v4912
      %v4956 = vmax.f32 %v4839, %v4914
      %v4957 = vmax.f32 %v4844, %v4916
      %v4958 = vmax.f32 %v4849, %v4918
      %v4959 = vmax.f32 %v4854, %v4920
      %v4960 = vmax.f32 %v4859, %v4919
      %v4961 = vld [vmem:[%s6] sm:$0xff]
      %v4962 = vld [vmem:[%s6 + $0x8] sm:$0xff]
      %v4963 = vld [vmem:[%s6 + $0x10] sm:$0xff]
      %v4964 = vld [vmem:[%s6 + $0x18] sm:$0xff]
      %v4965 = vld [vmem:[%s6 + $0x20] sm:$0xff]
      %v4966 = vld [vmem:[%s6 + $0x28] sm:$0xff]
      %v4967 = vld [vmem:[%s6 + $0x30] sm:$0xff]
      %v4968 = vld [vmem:[%s6 + $0x38] sm:$0xff]
      %v4969 = vld [vmem:[%s6 + $0x40] sm:$0xff]
      %v4970 = vld [vmem:[%s6 + $0x48] sm:$0xff]
      %v4971 = vld [vmem:[%s6 + $0x50] sm:$0xff]
      %v4972 = vld [vmem:[%s6 + $0x58] sm:$0xff]
      %v4973 = vld [vmem:[%s6 + $0x60] sm:$0xff]
      %v4974 = vld [vmem:[%s6 + $0x68] sm:$0xff]
      %v4975 = vld [vmem:[%s6 + $0x70] sm:$0xff]
      %v4976 = vld [vmem:[%s6 + $0x78] sm:$0xff]
      %v4977 = vld [vmem:[%s6 + $0x80] sm:$0xff]
      %v4978 = vld [vmem:[%s6 + $0x88] sm:$0xff]
      %v4979 = vld [vmem:[%s6 + $0x90] sm:$0xff]
      %v4980 = vld [vmem:[%s6 + $0x98] sm:$0xff]
      %v4982 = vsel %vm2659, %v4962, 0
      %v4985 = vsel %vm2659, %v4964, 0
      %v4988 = vsel %vm2659, %v4966, 0
      %v4991 = vsel %vm2659, %v4968, 0
      %v4994 = vsel %vm2659, %v4970, 0
      %v4997 = vsel %vm2659, %v4972, 0
      %v5000 = vsel %vm2659, %v4974, 0
      %v5003 = vsel %vm2659, %v4976, 0
      %v5006 = vsel %vm2659, %v4978, 0
      %v5009 = vsel %vm2659, %v4980, 0
      %v5012 = vsel %vm1058, %v4960, 0
      %5014 = vmatprep.subr.mxu0 0.0
      %5015 = vmatpush1.msra.mxu0 %v4941
      %5016 = vmatprep.subr.mxu0 0.0
      %5017 = vmatpush1.msra.mxu0 %v4942
      %5018 = vmatprep.subr.mxu0 0.0
      %5019 = vmatpush1.msra.mxu0 %v4943
      %5020 = vmatprep.subr.mxu0 0.0
      %5021 = vmatpush1.msra.mxu0 %v4944
      %5022 = vmatprep.subr.mxu0 0.0
      %5023 = vmatpush1.msra.mxu0 %v4945
      %5024 = vmatprep.subr.mxu0 0.0
      %5025 = vmatpush1.msra.mxu0 %v4946
      %5026 = vmatprep.subr.mxu0 0.0
      %5027 = vmatpush1.msra.mxu0 %v4947
      %5028 = vmatprep.subr.mxu0 0.0
      %5029 = vmatpush1.msra.mxu0 %v4948
      %5030 = vmatprep.subr.mxu0 0.0
      %5031 = vmatpush1.msra.mxu0 %v4949
      %5032 = vmatprep.subr.mxu0 0.0
      %5033 = vmatpush1.msra.mxu0 %v4950
      %5034 = vmatprep.subr.mxu0 0.0
      %5035 = vmatpush1.msra.mxu0 %v4951
      %5036 = vmatprep.subr.mxu0 0.0
      %5037 = vmatpush1.msra.mxu0 %v4952
      %5038 = vmatprep.subr.mxu0 0.0
      %5039 = vmatpush1.msra.mxu0 %v4953
      %5040 = vmatprep.subr.mxu0 0.0
      %5041 = vmatpush1.msra.mxu0 %v4954
      %5042 = vmatprep.subr.mxu0 0.0
      %5043 = vmatpush1.msra.mxu0 %v4955
      %5044 = vmatprep.subr.mxu0 0.0
      %5045 = vmatpush1.msra.mxu0 %v4956
      %5046 = vmatprep.subr.mxu0 0.0
      %5047 = vmatpush1.msra.mxu0 %v4957
      %5048 = vmatprep.subr.mxu0 0.0
      %5049 = vmatpush1.msra.mxu0 %v4958
      %5050 = vmatprep.subr.mxu0 0.0
      %5051 = vmatpush1.msra.mxu0 %v4959
      %5052 = vmatprep.subr.mxu0 0.0
      %5053 = vmatpush1.msra.mxu0 %v5012
      %5054 = vmatprep.subr.mxu0 0.0
      %5055 = vmatpush1.msra.mxu0 0.0
      %5056 = vmatprep.subr.mxu0 0.0
      %5057 = vmatpush1.msra.mxu0 0.0
      %5058 = vmatprep.subr.mxu0 0.0
      %5059 = vmatpush1.msra.mxu0 0.0
      %5060 = vmatprep.subr.mxu0 0.0
      %5061 = vmatpush1.msra.mxu0 0.0
      %5062 = vmatprep.subr.mxu0 0.0
      %5063 = vmatpush1.msra.mxu0 0.0
      %5064 = vmatprep.subr.mxu0 0.0
      %5065 = vmatpush1.msra.mxu0 0.0
      %5066 = vmatprep.subr.mxu0 0.0
      %5067 = vmatpush1.msra.mxu0 0.0
      %5068 = vmatprep.subr.mxu0 0.0
      %5069 = vmatpush1.msra.mxu0 0.0
      %5070 = vmatprep.subr.mxu0 0.0
      %5071 = vmatpush1.msra.mxu0 0.0
      %5072 = vmatprep.subr.mxu0 0.0
      %5073 = vmatpush1.msra.mxu0 0.0
      %5074 = vmatprep.subr.mxu0 0.0
      %5075 = vmatpush1.msra.mxu0 0.0
      %5076 = vmatprep.subr.mxu0 0.0
      %5077 = vmatpush1.msra.mxu0 0.0
      %5078 = vmatprep.mubr.f32.mxu0 %v4982
      %5079 = vmatmul.mubr.f32.gmra.mrb[0].mxu0 %v4961
      %v5080 = vpop.f32.mrb[0].mxu0
      %v5081 = vadd.f32 0.0, %v5080
      %v5082 = vpop.f32.mrb[0].mxu0
      %5083 = vmatprep.mubr.f32.mxu0 %v4985
      %5084 = vmatmul.mubr.f32.gmra.mrb[0].mxu0 %v4963
      %v5085 = vpop.f32.mrb[0].mxu0
      %v5086 = vadd.f32 0.0, %v5085
      %v5087 = vpop.f32.mrb[0].mxu0
      %5088 = vmatprep.mubr.f32.mxu0 %v4988
      %5089 = vmatmul.mubr.f32.gmra.mrb[0].mxu0 %v4965
      %v5090 = vpop.f32.mrb[0].mxu0
      %v5091 = vadd.f32 0.0, %v5090
      %v5092 = vpop.f32.mrb[0].mxu0
      %5093 = vmatprep.mubr.f32.mxu0 %v4991
      %5094 = vmatmul.mubr.f32.gmra.mrb[0].mxu0 %v4967
      %v5095 = vpop.f32.mrb[0].mxu0
      %v5096 = vadd.f32 0.0, %v5095
      %v5097 = vpop.f32.mrb[0].mxu0
      %5098 = vmatprep.mubr.f32.mxu0 %v4994
      %5099 = vmatmul.mubr.f32.gmra.mrb[0].mxu0 %v4969
      %v5100 = vpop.f32.mrb[0].mxu0
      %v5101 = vadd.f32 0.0, %v5100
      %v5102 = vpop.f32.mrb[0].mxu0
      %5103 = vmatprep.mubr.f32.mxu0 %v4997
      %5104 = vmatmul.mubr.f32.gmra.mrb[0].mxu0 %v4971
      %v5105 = vpop.f32.mrb[0].mxu0
      %v5106 = vadd.f32 0.0, %v5105
      %v5107 = vpop.f32.mrb[0].mxu0
      %5108 = vmatprep.mubr.f32.mxu0 %v5000
      %5109 = vmatmul.mubr.f32.gmra.mrb[0].mxu0 %v4973
      %v5110 = vpop.f32.mrb[0].mxu0
      %v5111 = vadd.f32 0.0, %v5110
      %v5112 = vpop.f32.mrb[0].mxu0
      %5113 = vmatprep.mubr.f32.mxu0 %v5003
      %5114 = vmatmul.mubr.f32.gmra.mrb[0].mxu0 %v4975
      %v5115 = vpop.f32.mrb[0].mxu0
      %v5116 = vadd.f32 0.0, %v5115
      %v5117 = vpop.f32.mrb[0].mxu0
      %5118 = vmatprep.mubr.f32.mxu0 %v5006
      %5119 = vmatmul.mubr.f32.gmra.mrb[0].mxu0 %v4977
      %v5120 = vpop.f32.mrb[0].mxu0
      %v5121 = vadd.f32 0.0, %v5120
      %v5122 = vpop.f32.mrb[0].mxu0
      %5123 = vmatprep.mubr.f32.mxu0 %v5009
      %5124 = vmatmul.mubr.f32.gmra.mrb[0].mxu0 %v4979
      %v5125 = vpop.f32.mrb[0].mxu0
      %v5126 = vadd.f32 0.0, %v5125
      %v5127 = vpop.f32.mrb[0].mxu0
      %5128 = vdwg.mxu0
      %5139 = vrot.lane.b32.xlu0 %v5081, 4
      %v5140 = vpop.permute.xlu0 %5139
      %5141 = vrot.lane.b32.xlu0 %v5086, 4
      %v5142 = vpop.permute.xlu0 %5141
      %5143 = vrot.lane.b32.xlu0 %v5091, 4
      %v5144 = vpop.permute.xlu0 %5143
      %5145 = vrot.lane.b32.xlu0 %v5096, 4
      %v5146 = vpop.permute.xlu0 %5145
      %5147 = vrot.lane.b32.xlu0 %v5101, 4
      %v5148 = vpop.permute.xlu0 %5147
      %5149 = vrot.lane.b32.xlu0 %v5106, 4
      %v5150 = vpop.permute.xlu0 %5149
      %5151 = vrot.lane.b32.xlu0 %v5111, 4
      %v5152 = vpop.permute.xlu0 %5151
      %5153 = vrot.lane.b32.xlu0 %v5116, 4
      %v5154 = vpop.permute.xlu0 %5153
      %5155 = vrot.lane.b32.xlu0 %v5121, 4
      %v5156 = vpop.permute.xlu0 %5155
      %5157 = vrot.lane.b32.xlu0 %v5126, 4
      %v5158 = vpop.permute.xlu0 %5157
      %vm5169 = vcmask 64544
      %5170 = vst.msk [vmem:[#allocation2] sm:$0xff] %vm5169, %v5140
      %5171 = vst.msk [vmem:[#allocation2 + $0x8] sm:$0xff] %vm5169, %v5142
      %5172 = vst.msk [vmem:[#allocation2 + $0x10] sm:$0xff] %vm5169, %v5144
      %5173 = vst.msk [vmem:[#allocation2 + $0x18] sm:$0xff] %vm5169, %v5146
      %5174 = vst.msk [vmem:[#allocation2 + $0x20] sm:$0xff] %vm5169, %v5148
      %5175 = vst.msk [vmem:[#allocation2 + $0x28] sm:$0xff] %vm5169, %v5150
      %5176 = vst.msk [vmem:[#allocation2 + $0x30] sm:$0xff] %vm5169, %v5152
      %5177 = vst.msk [vmem:[#allocation2 + $0x38] sm:$0xff] %vm5169, %v5154
      %5178 = vst.msk [vmem:[#allocation2 + $0x40] sm:$0xff] %vm5169, %v5156
      %5179 = vst.msk [vmem:[#allocation2 + $0x48] sm:$0xff] %vm5169, %v5158
      %5180 = vst.msk [vmem:[#allocation2 + $0x50] sm:$0xff] %vm5169, %v5081
      %5181 = vst.msk [vmem:[#allocation2 + $0x58] sm:$0xff] %vm5169, %v5086
      %5182 = vst.msk [vmem:[#allocation2 + $0x60] sm:$0xff] %vm5169, %v5091
      %5183 = vst.msk [vmem:[#allocation2 + $0x68] sm:$0xff] %vm5169, %v5096
      %5184 = vst.msk [vmem:[#allocation2 + $0x70] sm:$0xff] %vm5169, %v5101
      %5185 = vst.msk [vmem:[#allocation2 + $0x78] sm:$0xff] %vm5169, %v5106
      %5186 = vst.msk [vmem:[#allocation2 + $0x80] sm:$0xff] %vm5169, %v5111
      %5187 = vst.msk [vmem:[#allocation2 + $0x88] sm:$0xff] %vm5169, %v5116
      %5188 = vst.msk [vmem:[#allocation2 + $0x90] sm:$0xff] %vm5169, %v5121
      %5189 = vst.msk [vmem:[#allocation2 + $0x98] sm:$0xff] %vm5169, %v5126
      %5190 = vrot.lane.b32.xlu0 %v5081, 124
      %v5191 = vpop.permute.xlu0 %5190
      %5192 = vrot.lane.b32.xlu0 %v5086, 124
      %v5193 = vpop.permute.xlu0 %5192
      %5194 = vrot.lane.b32.xlu0 %v5091, 124
      %v5195 = vpop.permute.xlu0 %5194
      %5196 = vrot.lane.b32.xlu0 %v5096, 124
      %v5197 = vpop.permute.xlu0 %5196
      %5198 = vrot.lane.b32.xlu0 %v5101, 124
      %v5199 = vpop.permute.xlu0 %5198
      %5200 = vrot.lane.b32.xlu0 %v5106, 124
      %v5201 = vpop.permute.xlu0 %5200
      %5202 = vrot.lane.b32.xlu0 %v5111, 124
      %v5203 = vpop.permute.xlu0 %5202
      %5204 = vrot.lane.b32.xlu0 %v5116, 124
      %v5205 = vpop.permute.xlu0 %5204
      %5206 = vrot.lane.b32.xlu0 %v5121, 124
      %v5207 = vpop.permute.xlu0 %5206
      %5208 = vrot.lane.b32.xlu0 %v5126, 124
      %v5209 = vpop.permute.xlu0 %5208
      %5220 = vst.msk [vmem:[#allocation2 + $0xa0] sm:$0xff] %vm5169, %v5191
      %5221 = vst.msk [vmem:[#allocation2 + $0xa8] sm:$0xff] %vm5169, %v5193
      %5222 = vst.msk [vmem:[#allocation2 + $0xb0] sm:$0xff] %vm5169, %v5195
      %5223 = vst.msk [vmem:[#allocation2 + $0xb8] sm:$0xff] %vm5169, %v5197
      %5224 = vst.msk [vmem:[#allocation2 + $0xc0] sm:$0xff] %vm5169, %v5199
      %5225 = vst.msk [vmem:[#allocation2 + $0xc8] sm:$0xff] %vm5169, %v5201
      %5226 = vst.msk [vmem:[#allocation2 + $0xd0] sm:$0xff] %vm5169, %v5203
      %5227 = vst.msk [vmem:[#allocation2 + $0xd8] sm:$0xff] %vm5169, %v5205
      %5228 = vst.msk [vmem:[#allocation2 + $0xe0] sm:$0xff] %vm5169, %v5207
      %5229 = vst.msk [vmem:[#allocation2 + $0xe8] sm:$0xff] %vm5169, %v5209
      %5230 = vrot.lane.b32.xlu0 %v5081, 120
      %v5231 = vpop.permute.xlu0 %5230
      %5232 = vrot.lane.b32.xlu0 %v5086, 120
      %v5233 = vpop.permute.xlu0 %5232
      %5234 = vrot.lane.b32.xlu0 %v5091, 120
      %v5235 = vpop.permute.xlu0 %5234
      %5236 = vrot.lane.b32.xlu0 %v5096, 120
      %v5237 = vpop.permute.xlu0 %5236
      %5238 = vrot.lane.b32.xlu0 %v5101, 120
      %v5239 = vpop.permute.xlu0 %5238
      %5240 = vrot.lane.b32.xlu0 %v5106, 120
      %v5241 = vpop.permute.xlu0 %5240
      %5242 = vrot.lane.b32.xlu0 %v5111, 120
      %v5243 = vpop.permute.xlu0 %5242
      %5244 = vrot.lane.b32.xlu0 %v5116, 120
      %v5245 = vpop.permute.xlu0 %5244
      %5246 = vrot.lane.b32.xlu0 %v5121, 120
      %v5247 = vpop.permute.xlu0 %5246
      %5248 = vrot.lane.b32.xlu0 %v5126, 120
      %v5249 = vpop.permute.xlu0 %5248
      %5260 = vst.msk [vmem:[#allocation2 + $0xf0] sm:$0xff] %vm5169, %v5231
      %5261 = vst.msk [vmem:[#allocation2 + $0xf8] sm:$0xff] %vm5169, %v5233
      %5262 = vst.msk [vmem:[#allocation2 + $0x100] sm:$0xff] %vm5169, %v5235
      %5263 = vst.msk [vmem:[#allocation2 + $0x108] sm:$0xff] %vm5169, %v5237
      %5264 = vst.msk [vmem:[#allocation2 + $0x110] sm:$0xff] %vm5169, %v5239
      %5265 = vst.msk [vmem:[#allocation2 + $0x118] sm:$0xff] %vm5169, %v5241
      %5266 = vst.msk [vmem:[#allocation2 + $0x120] sm:$0xff] %vm5169, %v5243
      %5267 = vst.msk [vmem:[#allocation2 + $0x128] sm:$0xff] %vm5169, %v5245
      %5268 = vst.msk [vmem:[#allocation2 + $0x130] sm:$0xff] %vm5169, %v5247
      %5269 = vst.msk [vmem:[#allocation2 + $0x138] sm:$0xff] %vm5169, %v5249
      %5270 = vrot.lane.b32.xlu0 %v5081, 116
      %v5271 = vpop.permute.xlu0 %5270
      %5272 = vrot.lane.b32.xlu0 %v5086, 116
      %v5273 = vpop.permute.xlu0 %5272
      %5274 = vrot.lane.b32.xlu0 %v5091, 116
      %v5275 = vpop.permute.xlu0 %5274
      %5276 = vrot.lane.b32.xlu0 %v5096, 116
      %v5277 = vpop.permute.xlu0 %5276
      %5278 = vrot.lane.b32.xlu0 %v5101, 116
      %v5279 = vpop.permute.xlu0 %5278
      %5280 = vrot.lane.b32.xlu0 %v5106, 116
      %v5281 = vpop.permute.xlu0 %5280
      %5282 = vrot.lane.b32.xlu0 %v5111, 116
      %v5283 = vpop.permute.xlu0 %5282
      %5284 = vrot.lane.b32.xlu0 %v5116, 116
      %v5285 = vpop.permute.xlu0 %5284
      %5286 = vrot.lane.b32.xlu0 %v5121, 116
      %v5287 = vpop.permute.xlu0 %5286
      %5288 = vrot.lane.b32.xlu0 %v5126, 116
      %v5289 = vpop.permute.xlu0 %5288
      %5300 = vst.msk [vmem:[#allocation2 + $0x140] sm:$0xff] %vm5169, %v5271
      %5301 = vst.msk [vmem:[#allocation2 + $0x148] sm:$0xff] %vm5169, %v5273
      %5302 = vst.msk [vmem:[#allocation2 + $0x150] sm:$0xff] %vm5169, %v5275
      %5303 = vst.msk [vmem:[#allocation2 + $0x158] sm:$0xff] %vm5169, %v5277
      %5304 = vst.msk [vmem:[#allocation2 + $0x160] sm:$0xff] %vm5169, %v5279
      %5305 = vst.msk [vmem:[#allocation2 + $0x168] sm:$0xff] %vm5169, %v5281
      %5306 = vst.msk [vmem:[#allocation2 + $0x170] sm:$0xff] %vm5169, %v5283
      %5307 = vst.msk [vmem:[#allocation2 + $0x178] sm:$0xff] %vm5169, %v5285
      %5308 = vst.msk [vmem:[#allocation2 + $0x180] sm:$0xff] %vm5169, %v5287
      %5309 = vst.msk [vmem:[#allocation2 + $0x188] sm:$0xff] %vm5169, %v5289
      %v5310 = vld [vmem:[#allocation2] sm:$0xff]
      %v5311 = vld [vmem:[#allocation2 + $0x8] sm:$0xff]
      %v5312 = vld [vmem:[#allocation2 + $0x10] sm:$0xff]
      %v5313 = vld [vmem:[#allocation2 + $0x18] sm:$0xff]
      %v5314 = vld [vmem:[#allocation2 + $0x20] sm:$0xff]
      %v5315 = vld [vmem:[#allocation2 + $0x28] sm:$0xff]
      %v5316 = vld [vmem:[#allocation2 + $0x30] sm:$0xff]
      %v5317 = vld [vmem:[#allocation2 + $0x38] sm:$0xff]
      %v5318 = vld [vmem:[#allocation2 + $0x40] sm:$0xff]
      %v5319 = vld [vmem:[#allocation2 + $0x48] sm:$0xff]
      %v5320 = vld [vmem:[#allocation2 + $0x50] sm:$0xff]
      %v5321 = vld [vmem:[#allocation2 + $0x58] sm:$0xff]
      %v5322 = vld [vmem:[#allocation2 + $0x60] sm:$0xff]
      %v5323 = vld [vmem:[#allocation2 + $0x68] sm:$0xff]
      %v5324 = vld [vmem:[#allocation2 + $0x70] sm:$0xff]
      %v5325 = vld [vmem:[#allocation2 + $0x78] sm:$0xff]
      %v5326 = vld [vmem:[#allocation2 + $0x80] sm:$0xff]
      %v5327 = vld [vmem:[#allocation2 + $0x88] sm:$0xff]
      %v5328 = vld [vmem:[#allocation2 + $0x90] sm:$0xff]
      %v5329 = vld [vmem:[#allocation2 + $0x98] sm:$0xff]
      %v5330 = vld [vmem:[#allocation2 + $0xa0] sm:$0xff]
      %v5331 = vld [vmem:[#allocation2 + $0xa8] sm:$0xff]
      %v5332 = vld [vmem:[#allocation2 + $0xb0] sm:$0xff]
      %v5333 = vld [vmem:[#allocation2 + $0xb8] sm:$0xff]
      %v5334 = vld [vmem:[#allocation2 + $0xc0] sm:$0xff]
      %v5335 = vld [vmem:[#allocation2 + $0xc8] sm:$0xff]
      %v5336 = vld [vmem:[#allocation2 + $0xd0] sm:$0xff]
      %v5337 = vld [vmem:[#allocation2 + $0xd8] sm:$0xff]
      %v5338 = vld [vmem:[#allocation2 + $0xe0] sm:$0xff]
      %v5339 = vld [vmem:[#allocation2 + $0xe8] sm:$0xff]
      %v5340 = vld [vmem:[#allocation2 + $0xf0] sm:$0xff]
      %v5341 = vld [vmem:[#allocation2 + $0xf8] sm:$0xff]
      %v5342 = vld [vmem:[#allocation2 + $0x100] sm:$0xff]
      %v5343 = vld [vmem:[#allocation2 + $0x108] sm:$0xff]
      %v5344 = vld [vmem:[#allocation2 + $0x110] sm:$0xff]
      %v5345 = vld [vmem:[#allocation2 + $0x118] sm:$0xff]
      %v5346 = vld [vmem:[#allocation2 + $0x120] sm:$0xff]
      %v5347 = vld [vmem:[#allocation2 + $0x128] sm:$0xff]
      %v5348 = vld [vmem:[#allocation2 + $0x130] sm:$0xff]
      %v5349 = vld [vmem:[#allocation2 + $0x138] sm:$0xff]
      %v5350 = vld [vmem:[#allocation2 + $0x140] sm:$0xff]
      %v5351 = vld [vmem:[#allocation2 + $0x148] sm:$0xff]
      %v5352 = vld [vmem:[#allocation2 + $0x150] sm:$0xff]
      %v5353 = vld [vmem:[#allocation2 + $0x158] sm:$0xff]
      %v5354 = vld [vmem:[#allocation2 + $0x160] sm:$0xff]
      %v5355 = vld [vmem:[#allocation2 + $0x168] sm:$0xff]
      %v5356 = vld [vmem:[#allocation2 + $0x170] sm:$0xff]
      %v5357 = vld [vmem:[#allocation2 + $0x178] sm:$0xff]
      %v5358 = vld [vmem:[#allocation2 + $0x180] sm:$0xff]
      %v5359 = vld [vmem:[#allocation2 + $0x188] sm:$0xff]
      %v5360 = vpack.c.bf16 %v5311, %v5310
      %v5361 = vpack.c.bf16 %v5313, %v5312
      %v5362 = vpack.c.bf16 %v5315, %v5314
      %v5363 = vpack.c.bf16 %v5317, %v5316
      %v5364 = vpack.c.bf16 %v5319, %v5318
      %v5365 = vpack.c.bf16 %v5321, %v5320
      %v5366 = vpack.c.bf16 %v5323, %v5322
      %v5367 = vpack.c.bf16 %v5325, %v5324
      %v5368 = vpack.c.bf16 %v5327, %v5326
      %v5369 = vpack.c.bf16 %v5329, %v5328
      %v5370 = vpack.c.bf16 %v5331, %v5330
      %v5371 = vpack.c.bf16 %v5333, %v5332
      %v5372 = vpack.c.bf16 %v5335, %v5334
      %v5373 = vpack.c.bf16 %v5337, %v5336
      %v5374 = vpack.c.bf16 %v5339, %v5338
      %v5375 = vpack.c.bf16 %v5341, %v5340
      %v5376 = vpack.c.bf16 %v5343, %v5342
      %v5377 = vpack.c.bf16 %v5345, %v5344
      %v5378 = vpack.c.bf16 %v5347, %v5346
      %v5379 = vpack.c.bf16 %v5349, %v5348
      %v5380 = vpack.c.bf16 %v5351, %v5350
      %v5381 = vpack.c.bf16 %v5353, %v5352
      %v5382 = vpack.c.bf16 %v5355, %v5354
      %v5383 = vpack.c.bf16 %v5357, %v5356
      %v5384 = vpack.c.bf16 %v5359, %v5358
      %v5385 = vld [vmem:[%s7] sm:$0xff]
      %v5386 = vld [vmem:[%s7 + $0x8] sm:$0xff]
      %v5387 = vld [vmem:[%s7 + $0x10] sm:$0xff]
      %v5388 = vld [vmem:[%s7 + $0x18] sm:$0xff]
      %v5389 = vld [vmem:[%s7 + $0x20] sm:$0xff]
      %v5390 = vld [vmem:[%s7 + $0x28] sm:$0xff]
      %v5391 = vld [vmem:[%s7 + $0x30] sm:$0xff]
      %v5392 = vld [vmem:[%s7 + $0x38] sm:$0xff]
      %v5393 = vld [vmem:[%s7 + $0x40] sm:$0xff]
      %v5394 = vld [vmem:[%s7 + $0x48] sm:$0xff]
      %v5395 = vld [vmem:[%s7 + $0x50] sm:$0xff]
      %v5396 = vld [vmem:[%s7 + $0x58] sm:$0xff]
      %v5397 = vld [vmem:[%s7 + $0x60] sm:$0xff]
      %v5398 = vld [vmem:[%s7 + $0x68] sm:$0xff]
      %v5399 = vld [vmem:[%s7 + $0x70] sm:$0xff]
      %v5400 = vld [vmem:[%s7 + $0x78] sm:$0xff]
      %v5401 = vld [vmem:[%s7 + $0x80] sm:$0xff]
      %v5402 = vld [vmem:[%s7 + $0x88] sm:$0xff]
      %v5403 = vld [vmem:[%s7 + $0x90] sm:$0xff]
      %v5404 = vld [vmem:[%s7 + $0x98] sm:$0xff]
      %v5405 = vld [vmem:[%s7 + $0xa0] sm:$0xff]
      %v5406 = vld [vmem:[%s7 + $0xa8] sm:$0xff]
      %v5407 = vld [vmem:[%s7 + $0xb0] sm:$0xff]
      %v5408 = vld [vmem:[%s7 + $0xb8] sm:$0xff]
      %v5409 = vld [vmem:[%s7 + $0xc0] sm:$0xff]
      %v5410 = vld [vmem:[%s7 + $0xc8] sm:$0xff]
      %v5411 = vld [vmem:[%s7 + $0xd0] sm:$0xff]
      %v5412 = vld [vmem:[%s7 + $0xd8] sm:$0xff]
      %v5413 = vld [vmem:[%s7 + $0xe0] sm:$0xff]
      %v5414 = vld [vmem:[%s7 + $0xe8] sm:$0xff]
      %5416 = vset.pattern.permute.xlu0 0
      %5417 = vperm.xlu0 %5416, %v429
      %v5418 = vpop.permute.xlu0 %5417
      %5421 = vset.pattern.permute.xlu0 0
      %5422 = vperm.xlu0 %5421, %v430
      %v5423 = vpop.permute.xlu0 %5422
      %5426 = vset.pattern.permute.xlu0 0
      %5427 = vperm.xlu0 %5426, %v431
      %v5428 = vpop.permute.xlu0 %5427
      %5431 = vset.pattern.permute.xlu0 0
      %5432 = vperm.xlu0 %5431, %v432
      %v5433 = vpop.permute.xlu0 %5432
      %5436 = vset.pattern.permute.xlu0 0
      %5437 = vperm.xlu0 %5436, %v433
      %v5438 = vpop.permute.xlu0 %5437
      %5441 = vset.pattern.permute.xlu0 0
      %5442 = vperm.xlu0 %5441, %v434
      %v5443 = vpop.permute.xlu0 %5442
      %5446 = vset.pattern.permute.xlu0 0
      %5447 = vperm.xlu0 %5446, %v435
      %v5448 = vpop.permute.xlu0 %5447
      %5451 = vset.pattern.permute.xlu0 0
      %5452 = vperm.xlu0 %5451, %v436
      %v5453 = vpop.permute.xlu0 %5452
      %5456 = vset.pattern.permute.xlu0 0
      %5457 = vperm.xlu0 %5456, %v437
      %v5458 = vpop.permute.xlu0 %5457
      %5461 = vset.pattern.permute.xlu0 0
      %5462 = vperm.xlu0 %5461, %v438
      %v5463 = vpop.permute.xlu0 %5462
      %5466 = vset.pattern.permute.xlu0 0
      %5467 = vperm.xlu0 %5466, %v439
      %v5468 = vpop.permute.xlu0 %5467
      %5471 = vset.pattern.permute.xlu0 0
      %5472 = vperm.xlu0 %5471, %v440
      %v5473 = vpop.permute.xlu0 %5472
      %5476 = vset.pattern.permute.xlu0 0
      %5477 = vperm.xlu0 %5476, %v441
      %v5478 = vpop.permute.xlu0 %5477
      %5481 = vset.pattern.permute.xlu0 0
      %5482 = vperm.xlu0 %5481, %v442
      %v5483 = vpop.permute.xlu0 %5482
      %5486 = vset.pattern.permute.xlu0 0
      %5487 = vperm.xlu0 %5486, %v443
      %v5488 = vpop.permute.xlu0 %5487
      %v5520 = vunpack.c.l.b16 %v5385
      %v5521 = vunpack.c.h.b16 %v5385
      %v5522 = vunpack.c.l.b16 %v5386
      %v5523 = vunpack.c.h.b16 %v5386
      %v5524 = vunpack.c.l.b16 %v5387
      %v5525 = vunpack.c.h.b16 %v5387
      %v5526 = vunpack.c.l.b16 %v5388
      %v5527 = vunpack.c.h.b16 %v5388
      %v5528 = vunpack.c.l.b16 %v5389
      %v5529 = vunpack.c.h.b16 %v5389
      %v5530 = vunpack.c.l.b16 %v5390
      %v5531 = vunpack.c.h.b16 %v5390
      %v5532 = vunpack.c.l.b16 %v5391
      %v5533 = vunpack.c.h.b16 %v5391
      %v5534 = vunpack.c.l.b16 %v5392
      %v5535 = vunpack.c.h.b16 %v5392
      %v5536 = vunpack.c.l.b16 %v5393
      %v5537 = vunpack.c.h.b16 %v5393
      %v5538 = vunpack.c.l.b16 %v5394
      %v5539 = vunpack.c.h.b16 %v5394
      %v5540 = vunpack.c.l.b16 %v5395
      %v5541 = vunpack.c.h.b16 %v5395
      %v5542 = vunpack.c.l.b16 %v5396
      %v5543 = vunpack.c.h.b16 %v5396
      %v5544 = vunpack.c.l.b16 %v5397
      %v5545 = vunpack.c.h.b16 %v5397
      %v5546 = vunpack.c.l.b16 %v5398
      %v5547 = vunpack.c.h.b16 %v5398
      %v5548 = vunpack.c.l.b16 %v5399
      %v5549 = vunpack.c.h.b16 %v5399
      %v5550 = vunpack.c.l.b16 %v5400
      %v5551 = vunpack.c.h.b16 %v5400
      %v5552 = vunpack.c.l.b16 %v5401
      %v5553 = vunpack.c.h.b16 %v5401
      %v5554 = vunpack.c.l.b16 %v5402
      %v5555 = vunpack.c.h.b16 %v5402
      %v5556 = vunpack.c.l.b16 %v5403
      %v5557 = vunpack.c.h.b16 %v5403
      %v5558 = vunpack.c.l.b16 %v5404
      %v5559 = vunpack.c.h.b16 %v5404
      %v5560 = vunpack.c.l.b16 %v5405
      %v5561 = vunpack.c.h.b16 %v5405
      %v5562 = vunpack.c.l.b16 %v5406
      %v5563 = vunpack.c.h.b16 %v5406
      %v5564 = vunpack.c.l.b16 %v5407
      %v5565 = vunpack.c.h.b16 %v5407
      %v5566 = vunpack.c.l.b16 %v5408
      %v5567 = vunpack.c.h.b16 %v5408
      %v5568 = vunpack.c.l.b16 %v5409
      %v5569 = vunpack.c.h.b16 %v5409
      %v5570 = vunpack.c.l.b16 %v5410
      %v5571 = vunpack.c.h.b16 %v5410
      %v5572 = vunpack.c.l.b16 %v5411
      %v5573 = vunpack.c.h.b16 %v5411
      %v5574 = vunpack.c.l.b16 %v5412
      %v5575 = vunpack.c.h.b16 %v5412
      %v5576 = vunpack.c.l.b16 %v5413
      %v5577 = vunpack.c.h.b16 %v5413
      %v5578 = vunpack.c.l.b16 %v5414
      %v5579 = vunpack.c.h.b16 %v5414
      %v5580 = vpack.c.b16 %v5524, %v5520
      %v5581 = vpack.c.b16 %v5525, %v5521
      %v5582 = vpack.c.b16 %v5526, %v5522
      %v5583 = vpack.c.b16 %v5527, %v5523
      %v5584 = vpack.c.b16 %v5532, %v5528
      %v5585 = vpack.c.b16 %v5533, %v5529
      %v5586 = vpack.c.b16 %v5534, %v5530
      %v5587 = vpack.c.b16 %v5535, %v5531
      %v5588 = vpack.c.b16 %v5540, %v5536
      %v5589 = vpack.c.b16 %v5541, %v5537
      %v5590 = vpack.c.b16 %v5542, %v5538
      %v5591 = vpack.c.b16 %v5543, %v5539
      %v5592 = vpack.c.b16 %v5548, %v5544
      %v5593 = vpack.c.b16 %v5549, %v5545
      %v5594 = vpack.c.b16 %v5550, %v5546
      %v5595 = vpack.c.b16 %v5551, %v5547
      %v5596 = vpack.c.b16 %v5556, %v5552
      %v5597 = vpack.c.b16 %v5557, %v5553
      %v5598 = vpack.c.b16 %v5558, %v5554
      %v5599 = vpack.c.b16 %v5559, %v5555
      %v5600 = vpack.c.b16 %v5564, %v5560
      %v5601 = vpack.c.b16 %v5565, %v5561
      %v5602 = vpack.c.b16 %v5566, %v5562
      %v5603 = vpack.c.b16 %v5567, %v5563
      %v5604 = vpack.c.b16 %v5572, %v5568
      %v5605 = vpack.c.b16 %v5573, %v5569
      %v5606 = vpack.c.b16 %v5574, %v5570
      %v5607 = vpack.c.b16 %v5575, %v5571
      %v5608 = vpack.c.b16 %v5576, %v5576
      %v5609 = vpack.c.b16 %v5577, %v5577
      %v5610 = vpack.c.b16 %v5578, %v5578
      %v5611 = vpack.c.b16 %v5579, %v5579
      %vm5636 = vcmask 130048
      %v5638 = vsel %vm5636, %v5583, 0
      %v5641 = vsel %vm5636, %v5587, 0
      %v5644 = vsel %vm5636, %v5591, 0
      %v5647 = vsel %vm5636, %v5595, 0
      %v5650 = vsel %vm5636, %v5599, 0
      %v5653 = vsel %vm5636, %v5603, 0
      %v5656 = vsel %vm5636, %v5607, 0
      %v5659 = vsel %vm5636, %v5611, 0
      %5661 = vmatprep.subr.bf16.mxu0 0
      %5662 = vmatpush1.bf16.msra.mxu0 %v5360
      %5663 = vmatprep.subr.bf16.mxu0 0
      %5664 = vmatpush1.bf16.msra.mxu0 %v5361
      %5665 = vmatprep.subr.bf16.mxu0 0
      %5666 = vmatpush1.bf16.msra.mxu0 %v5362
      %5667 = vmatprep.subr.bf16.mxu0 0
      %5668 = vmatpush1.bf16.msra.mxu0 %v5363
      %5669 = vmatprep.subr.bf16.mxu0 0
      %5670 = vmatpush1.bf16.msra.mxu0 %v5364
      %5671 = vmatprep.subr.bf16.mxu0 0
      %5672 = vmatpush1.bf16.msra.mxu0 %v5365
      %5673 = vmatprep.subr.bf16.mxu0 0
      %5674 = vmatpush1.bf16.msra.mxu0 %v5366
      %5675 = vmatprep.subr.bf16.mxu0 0
      %5676 = vmatpush1.bf16.msra.mxu0 %v5367
      %5677 = vmatprep.subr.bf16.mxu0 0
      %5678 = vmatpush1.bf16.msra.mxu0 %v5368
      %5679 = vmatprep.subr.bf16.mxu0 0
      %5680 = vmatpush1.bf16.msra.mxu0 %v5369
      %5681 = vmatprep.subr.bf16.mxu0 0
      %5682 = vmatpush1.bf16.msra.mxu0 %v5370
      %5683 = vmatprep.subr.bf16.mxu0 0
      %5684 = vmatpush1.bf16.msra.mxu0 %v5371
      %5685 = vmatprep.subr.bf16.mxu0 0
      %5686 = vmatpush1.bf16.msra.mxu0 %v5372
      %5687 = vmatprep.subr.bf16.mxu0 0
      %5688 = vmatpush1.bf16.msra.mxu0 %v5373
      %5689 = vmatprep.subr.bf16.mxu0 0
      %5690 = vmatpush1.bf16.msra.mxu0 %v5374
      %5691 = vmatprep.subr.bf16.mxu0 0
      %5692 = vmatpush1.bf16.msra.mxu0 %v5375
      %5693 = vmatprep.mubr.bf16.mxu0 %v5581
      %5694 = vmatmul.mubr.bf16.gmra.mrb[0].mxu0 %v5580
      %v5695 = vpop.f32.mrb[0].mxu0
      %v5696 = vadd.f32 %v5418, %v5695
      %v5697 = vpop.f32.mrb[0].mxu0
      %v5698 = vpop.f32.mrb[0].mxu0
      %v5699 = vadd.f32 %v5423, %v5698
      %v5700 = vpop.f32.mrb[0].mxu0
      %5701 = vmatprep.mubr.bf16.mxu0 %v5585
      %5702 = vmatmul.mubr.bf16.gmra.mrb[0].mxu0 %v5584
      %v5703 = vpop.f32.mrb[0].mxu0
      %v5704 = vadd.f32 %v5428, %v5703
      %v5705 = vpop.f32.mrb[0].mxu0
      %v5706 = vpop.f32.mrb[0].mxu0
      %v5707 = vadd.f32 %v5433, %v5706
      %v5708 = vpop.f32.mrb[0].mxu0
      %5709 = vmatprep.mubr.bf16.mxu0 %v5589
      %5710 = vmatmul.mubr.bf16.gmra.mrb[0].mxu0 %v5588
      %v5711 = vpop.f32.mrb[0].mxu0
      %v5712 = vadd.f32 %v5438, %v5711
      %v5713 = vpop.f32.mrb[0].mxu0
      %v5714 = vpop.f32.mrb[0].mxu0
      %v5715 = vadd.f32 %v5443, %v5714
      %v5716 = vpop.f32.mrb[0].mxu0
      %5717 = vmatprep.mubr.bf16.mxu0 %v5593
      %5718 = vmatmul.mubr.bf16.gmra.mrb[0].mxu0 %v5592
      %v5719 = vpop.f32.mrb[0].mxu0
      %v5720 = vadd.f32 %v5448, %v5719
      %v5721 = vpop.f32.mrb[0].mxu0
      %v5722 = vpop.f32.mrb[0].mxu0
      %v5723 = vadd.f32 %v5453, %v5722
      %v5724 = vpop.f32.mrb[0].mxu0
      %5725 = vmatprep.mubr.bf16.mxu0 %v5597
      %5726 = vmatmul.mubr.bf16.gmra.mrb[0].mxu0 %v5596
      %v5727 = vpop.f32.mrb[0].mxu0
      %v5728 = vadd.f32 %v5458, %v5727
      %v5729 = vpop.f32.mrb[0].mxu0
      %v5730 = vpop.f32.mrb[0].mxu0
      %v5731 = vadd.f32 %v5463, %v5730
      %v5732 = vpop.f32.mrb[0].mxu0
      %5733 = vmatprep.mubr.bf16.mxu0 %v5601
      %5734 = vmatmul.mubr.bf16.gmra.mrb[0].mxu0 %v5600
      %v5735 = vpop.f32.mrb[0].mxu0
      %v5736 = vadd.f32 %v5468, %v5735
      %v5737 = vpop.f32.mrb[0].mxu0
      %v5738 = vpop.f32.mrb[0].mxu0
      %v5739 = vadd.f32 %v5473, %v5738
      %v5740 = vpop.f32.mrb[0].mxu0
      %5741 = vmatprep.mubr.bf16.mxu0 %v5605
      %5742 = vmatmul.mubr.bf16.gmra.mrb[0].mxu0 %v5604
      %v5743 = vpop.f32.mrb[0].mxu0
      %v5744 = vadd.f32 %v5478, %v5743
      %v5745 = vpop.f32.mrb[0].mxu0
      %v5746 = vpop.f32.mrb[0].mxu0
      %v5747 = vadd.f32 %v5483, %v5746
      %v5748 = vpop.f32.mrb[0].mxu0
      %5749 = vmatprep.mubr.bf16.mxu0 %v5609
      %5750 = vmatmul.mubr.bf16.gmra.mrb[0].mxu0 %v5608
      %v5751 = vpop.f32.mrb[0].mxu0
      %v5752 = vadd.f32 %v5488, %v5751
      %v5753 = vpop.f32.mrb[0].mxu0
      %v5754 = vpop.f32.mrb[0].mxu0
      %v5755 = vpop.f32.mrb[0].mxu0
      %5756 = vdwg.mxu0
      %5757 = vmatprep.subr.bf16.mxu0 0
      %5758 = vmatpush1.bf16.msra.mxu0 %v5376
      %5759 = vmatprep.subr.bf16.mxu0 0
      %5760 = vmatpush1.bf16.msra.mxu0 %v5377
      %5761 = vmatprep.subr.bf16.mxu0 0
      %5762 = vmatpush1.bf16.msra.mxu0 %v5378
      %5763 = vmatprep.subr.bf16.mxu0 0
      %5764 = vmatpush1.bf16.msra.mxu0 %v5379
      %5765 = vmatprep.subr.bf16.mxu0 0
      %5766 = vmatpush1.bf16.msra.mxu0 %v5380
      %5767 = vmatprep.subr.bf16.mxu0 0
      %5768 = vmatpush1.bf16.msra.mxu0 %v5381
      %5769 = vmatprep.subr.bf16.mxu0 0
      %5770 = vmatpush1.bf16.msra.mxu0 %v5382
      %5771 = vmatprep.subr.bf16.mxu0 0
      %5772 = vmatpush1.bf16.msra.mxu0 %v5383
      %5773 = vmatprep.subr.bf16.mxu0 0
      %5774 = vmatpush1.bf16.msra.mxu0 %v5384
      %5775 = vmatprep.subr.bf16.mxu0 0
      %5776 = vmatpush1.bf16.msra.mxu0 0
      %5777 = vmatprep.subr.bf16.mxu0 0
      %5778 = vmatpush1.bf16.msra.mxu0 0
      %5779 = vmatprep.subr.bf16.mxu0 0
      %5780 = vmatpush1.bf16.msra.mxu0 0
      %5781 = vmatprep.subr.bf16.mxu0 0
      %5782 = vmatpush1.bf16.msra.mxu0 0
      %5783 = vmatprep.subr.bf16.mxu0 0
      %5784 = vmatpush1.bf16.msra.mxu0 0
      %5785 = vmatprep.subr.bf16.mxu0 0
      %5786 = vmatpush1.bf16.msra.mxu0 0
      %5787 = vmatprep.subr.bf16.mxu0 0
      %5788 = vmatpush1.bf16.msra.mxu0 0
      %5789 = vmatprep.mubr.bf16.mxu0 %v5638
      %5790 = vmatmul.mubr.bf16.gmra.mrb[0].mxu0 %v5582
      %v5791 = vpop.f32.mrb[0].mxu0
      %v5792 = vadd.f32 %v5696, %v5791
      %v5793 = vpop.f32.mrb[0].mxu0
      %v5794 = vpop.f32.mrb[0].mxu0
      %v5795 = vadd.f32 %v5699, %v5794
      %v5796 = vpop.f32.mrb[0].mxu0
      %5797 = vmatprep.mubr.bf16.mxu0 %v5641
      %5798 = vmatmul.mubr.bf16.gmra.mrb[0].mxu0 %v5586
      %v5799 = vpop.f32.mrb[0].mxu0
      %v5800 = vadd.f32 %v5704, %v5799
      %v5801 = vpop.f32.mrb[0].mxu0
      %v5802 = vpop.f32.mrb[0].mxu0
      %v5803 = vadd.f32 %v5707, %v5802
      %v5804 = vpop.f32.mrb[0].mxu0
      %5805 = vmatprep.mubr.bf16.mxu0 %v5644
      %5806 = vmatmul.mubr.bf16.gmra.mrb[0].mxu0 %v5590
      %v5807 = vpop.f32.mrb[0].mxu0
      %v5808 = vadd.f32 %v5712, %v5807
      %v5809 = vpop.f32.mrb[0].mxu0
      %v5810 = vpop.f32.mrb[0].mxu0
      %v5811 = vadd.f32 %v5715, %v5810
      %v5812 = vpop.f32.mrb[0].mxu0
      %5813 = vmatprep.mubr.bf16.mxu0 %v5647
      %5814 = vmatmul.mubr.bf16.gmra.mrb[0].mxu0 %v5594
      %v5815 = vpop.f32.mrb[0].mxu0
      %v5816 = vadd.f32 %v5720, %v5815
      %v5817 = vpop.f32.mrb[0].mxu0
      %v5818 = vpop.f32.mrb[0].mxu0
      %v5819 = vadd.f32 %v5723, %v5818
      %v5820 = vpop.f32.mrb[0].mxu0
      %5821 = vmatprep.mubr.bf16.mxu0 %v5650
      %5822 = vmatmul.mubr.bf16.gmra.mrb[0].mxu0 %v5598
      %v5823 = vpop.f32.mrb[0].mxu0
      %v5824 = vadd.f32 %v5728, %v5823
      %v5825 = vpop.f32.mrb[0].mxu0
      %v5826 = vpop.f32.mrb[0].mxu0
      %v5827 = vadd.f32 %v5731, %v5826
      %v5828 = vpop.f32.mrb[0].mxu0
      %5829 = vmatprep.mubr.bf16.mxu0 %v5653
      %5830 = vmatmul.mubr.bf16.gmra.mrb[0].mxu0 %v5602
      %v5831 = vpop.f32.mrb[0].mxu0
      %v5832 = vadd.f32 %v5736, %v5831
      %v5833 = vpop.f32.mrb[0].mxu0
      %v5834 = vpop.f32.mrb[0].mxu0
      %v5835 = vadd.f32 %v5739, %v5834
      %v5836 = vpop.f32.mrb[0].mxu0
      %5837 = vmatprep.mubr.bf16.mxu0 %v5656
      %5838 = vmatmul.mubr.bf16.gmra.mrb[0].mxu0 %v5606
      %v5839 = vpop.f32.mrb[0].mxu0
      %v5840 = vadd.f32 %v5744, %v5839
      %v5841 = vpop.f32.mrb[0].mxu0
      %v5842 = vpop.f32.mrb[0].mxu0
      %v5843 = vadd.f32 %v5747, %v5842
      %v5844 = vpop.f32.mrb[0].mxu0
      %5845 = vmatprep.mubr.bf16.mxu0 %v5659
      %5846 = vmatmul.mubr.bf16.gmra.mrb[0].mxu0 %v5610
      %v5847 = vpop.f32.mrb[0].mxu0
      %v5848 = vadd.f32 %v5752, %v5847
      %v5849 = vpop.f32.mrb[0].mxu0
      %v5850 = vpop.f32.mrb[0].mxu0
      %v5851 = vpop.f32.mrb[0].mxu0
      %5852 = vdwg.mxu0
      %v5853 = vld [vmem:[%s8] sm:$0xf]
      %v5854 = vld [vmem:[%s8 + $0x4] sm:$0xf]
      %v5855 = vld [vmem:[%s8 + $0x8] sm:$0xf]
      %v5856 = vld [vmem:[%s8 + $0xc] sm:$0xf]
      %v5857 = vld [vmem:[%s8 + $0x10] sm:$0xf]
      %v5858 = vld [vmem:[%s8 + $0x14] sm:$0xf]
      %v5859 = vld [vmem:[%s8 + $0x18] sm:$0xf]
      %v5860 = vld [vmem:[%s8 + $0x1c] sm:$0xf]
      %v5861 = vld [vmem:[%s8 + $0x20] sm:$0xf]
      %v5862 = vld [vmem:[%s8 + $0x24] sm:$0xf]
      %v5863 = vld [vmem:[%s8 + $0x28] sm:$0x3]
      %v5864 = vpack.c.bf16 %v5795, %v5792
      %v5865 = vpack.c.bf16 %v5803, %v5800
      %v5866 = vpack.c.bf16 %v5811, %v5808
      %v5867 = vpack.c.bf16 %v5819, %v5816
      %v5868 = vpack.c.bf16 %v5827, %v5824
      %v5869 = vpack.c.bf16 %v5835, %v5832
      %v5870 = vpack.c.bf16 %v5843, %v5840
      %v5871 = vpack.c.bf16 %v5848, %v5848
      %5873 = vset.pattern.permute.xlu0 0
      %5874 = vperm.xlu0 %5873, %v444
      %v5875 = vpop.permute.xlu0 %5874
      %5878 = vset.pattern.permute.xlu0 0
      %5879 = vperm.xlu0 %5878, %v445
      %v5880 = vpop.permute.xlu0 %5879
      %5883 = vset.pattern.permute.xlu0 0
      %5884 = vperm.xlu0 %5883, %v446
      %v5885 = vpop.permute.xlu0 %5884
      %5888 = vset.pattern.permute.xlu0 0
      %5889 = vperm.xlu0 %5888, %v447
      %v5890 = vpop.permute.xlu0 %5889
      %5893 = vset.pattern.permute.xlu0 0
      %5894 = vperm.xlu0 %5893, %v448
      %v5895 = vpop.permute.xlu0 %5894
      %5898 = vset.pattern.permute.xlu0 0
      %5899 = vperm.xlu0 %5898, %v449
      %v5900 = vpop.permute.xlu0 %5899
      %5903 = vset.pattern.permute.xlu0 0
      %5904 = vperm.xlu0 %5903, %v450
      %v5905 = vpop.permute.xlu0 %5904
      %5908 = vset.pattern.permute.xlu0 0
      %5909 = vperm.xlu0 %5908, %v451
      %v5910 = vpop.permute.xlu0 %5909
      %5913 = vset.pattern.permute.xlu0 0
      %5914 = vperm.xlu0 %5913, %v452
      %v5915 = vpop.permute.xlu0 %5914
      %5918 = vset.pattern.permute.xlu0 0
      %5919 = vperm.xlu0 %5918, %v453
      %v5920 = vpop.permute.xlu0 %5919
      %5923 = vset.pattern.permute.xlu0 0
      %5924 = vperm.xlu0 %5923, %v454
      %v5925 = vpop.permute.xlu0 %5924
      %v5938 = vunpack.c.l.b16 %v5853
      %v5939 = vunpack.c.l.b16 %v5854
      %v5940 = vunpack.c.l.b16 %v5855
      %v5941 = vunpack.c.l.b16 %v5856
      %v5942 = vunpack.c.l.b16 %v5857
      %v5943 = vunpack.c.l.b16 %v5858
      %v5944 = vunpack.c.l.b16 %v5859
      %v5945 = vunpack.c.l.b16 %v5860
      %v5946 = vunpack.c.l.b16 %v5861
      %v5947 = vunpack.c.l.b16 %v5862
      %v5948 = vunpack.c.l.b16 %v5863
      %v5949 = vpack.c.b16 %v5939, %v5938
      %v5950 = vpack.c.b16 %v5941, %v5940
      %v5951 = vpack.c.b16 %v5943, %v5942
      %v5952 = vpack.c.b16 %v5945, %v5944
      %v5953 = vpack.c.b16 %v5947, %v5946
      %v5954 = vpack.c.b16 %v5948, %v5948
      %vm5955 = vcmask 982016
      %v5957 = vsel %vm5955, %v5949, 0
      %v5960 = vsel %vm5955, %v5950, 0
      %v5963 = vsel %vm5955, %v5951, 0
      %v5966 = vsel %vm5955, %v5952, 0
      %v5969 = vsel %vm5955, %v5953, 0
      %v5972 = vsel %vm5955, %v5954, 0
      %vm5974 = vcmask 1043456
      %v5976 = vsel %vm5974, %v5871, 0
      %5978 = vmatprep.subr.bf16.mxu0 0
      %5979 = vmatpush1.bf16.msra.mxu0 %v5864
      %5980 = vmatprep.subr.bf16.mxu0 0
      %5981 = vmatpush1.bf16.msra.mxu0 %v5865
      %5982 = vmatprep.subr.bf16.mxu0 0
      %5983 = vmatpush1.bf16.msra.mxu0 %v5866
      %5984 = vmatprep.subr.bf16.mxu0 0
      %5985 = vmatpush1.bf16.msra.mxu0 %v5867
      %5986 = vmatprep.subr.bf16.mxu0 0
      %5987 = vmatpush1.bf16.msra.mxu0 %v5868
      %5988 = vmatprep.subr.bf16.mxu0 0
      %5989 = vmatpush1.bf16.msra.mxu0 %v5869
      %5990 = vmatprep.subr.bf16.mxu0 0
      %5991 = vmatpush1.bf16.msra.mxu0 %v5870
      %5992 = vmatprep.subr.bf16.mxu0 0
      %5993 = vmatpush1.bf16.msra.mxu0 %v5976
      %5994 = vmatprep.subr.bf16.mxu0 0
      %5995 = vmatpush1.bf16.msra.mxu0 0
      %5996 = vmatprep.subr.bf16.mxu0 0
      %5997 = vmatpush1.bf16.msra.mxu0 0
      %5998 = vmatprep.subr.bf16.mxu0 0
      %5999 = vmatpush1.bf16.msra.mxu0 0
      %6000 = vmatprep.subr.bf16.mxu0 0
      %6001 = vmatpush1.bf16.msra.mxu0 0
      %6002 = vmatprep.subr.bf16.mxu0 0
      %6003 = vmatpush1.bf16.msra.mxu0 0
      %6004 = vmatprep.subr.bf16.mxu0 0
      %6005 = vmatpush1.bf16.msra.mxu0 0
      %6006 = vmatprep.subr.bf16.mxu0 0
      %6007 = vmatpush1.bf16.msra.mxu0 0
      %6008 = vmatprep.subr.bf16.mxu0 0
      %6009 = vmatpush1.bf16.msra.mxu0 0
      %6010 = vmatprep.mubr.bf16.mxu0 0
      %6011 = vmatmul.mubr.bf16.gmra.mrb[0].mxu0 %v5957
      %v6012 = vpop.f32.mrb[0].mxu0
      %v6013 = vadd.f32 %v5875, %v6012
      %v6014 = vpop.f32.mrb[0].mxu0
      %v6015 = vpop.f32.mrb[0].mxu0
      %v6016 = vadd.f32 %v5880, %v6015
      %v6017 = vpop.f32.mrb[0].mxu0
      %6018 = vmatprep.mubr.bf16.mxu0 0
      %6019 = vmatmul.mubr.bf16.gmra.mrb[0].mxu0 %v5960
      %v6020 = vpop.f32.mrb[0].mxu0
      %v6021 = vadd.f32 %v5885, %v6020
      %v6022 = vpop.f32.mrb[0].mxu0
      %v6023 = vpop.f32.mrb[0].mxu0
      %v6024 = vadd.f32 %v5890, %v6023
      %v6025 = vpop.f32.mrb[0].mxu0
      %6026 = vmatprep.mubr.bf16.mxu0 0
      %6027 = vmatmul.mubr.bf16.gmra.mrb[0].mxu0 %v5963
      %v6028 = vpop.f32.mrb[0].mxu0
      %v6029 = vadd.f32 %v5895, %v6028
      %v6030 = vpop.f32.mrb[0].mxu0
      %v6031 = vpop.f32.mrb[0].mxu0
      %v6032 = vadd.f32 %v5900, %v6031
      %v6033 = vpop.f32.mrb[0].mxu0
      %6034 = vmatprep.mubr.bf16.mxu0 0
      %6035 = vmatmul.mubr.bf16.gmra.mrb[0].mxu0 %v5966
      %v6036 = vpop.f32.mrb[0].mxu0
      %v6037 = vadd.f32 %v5905, %v6036
      %v6038 = vpop.f32.mrb[0].mxu0
      %v6039 = vpop.f32.mrb[0].mxu0
      %v6040 = vadd.f32 %v5910, %v6039
      %v6041 = vpop.f32.mrb[0].mxu0
      %6042 = vmatprep.mubr.bf16.mxu0 0
      %6043 = vmatmul.mubr.bf16.gmra.mrb[0].mxu0 %v5969
      %v6044 = vpop.f32.mrb[0].mxu0
      %v6045 = vadd.f32 %v5915, %v6044
      %v6046 = vpop.f32.mrb[0].mxu0
      %v6047 = vpop.f32.mrb[0].mxu0
      %v6048 = vadd.f32 %v5920, %v6047
      %v6049 = vpop.f32.mrb[0].mxu0
      %6050 = vmatprep.mubr.bf16.mxu0 0
      %6051 = vmatmul.mubr.bf16.gmra.mrb[0].mxu0 %v5972
      %v6052 = vpop.f32.mrb[0].mxu0
      %v6053 = vadd.f32 %v5925, %v6052
      %v6054 = vpop.f32.mrb[0].mxu0
      %v6055 = vpop.f32.mrb[0].mxu0
      %v6056 = vpop.f32.mrb[0].mxu0
      %6057 = vdwg.mxu0
      %v6058 = vld [vmem:[%s9] sm:$0xf]
      %v6059 = vld [vmem:[%s9 + $0x4] sm:$0x1]
      %v6060 = vpack.c.bf16 %v6016, %v6013
      %v6061 = vpack.c.bf16 %v6024, %v6021
      %v6062 = vpack.c.bf16 %v6032, %v6029
      %v6063 = vpack.c.bf16 %v6040, %v6037
      %v6064 = vpack.c.bf16 %v6048, %v6045
      %v6065 = vpack.c.bf16 %v6053, %v6053
      %6067 = vset.pattern.permute.xlu0 0
      %6068 = vperm.xlu0 %6067, %v455
      %v6069 = vpop.permute.xlu0 %6068
      %6072 = vset.pattern.permute.xlu0 0
      %6073 = vperm.xlu0 %6072, %v456
      %v6074 = vpop.permute.xlu0 %6073
      %v6078 = vunpack.c.l.b16 %v6058
      %v6079 = vunpack.c.l.b16 %v6059
      %v6080 = vpack.c.b16 %v6079, %v6078
      %vm6081 = vcmask 687104
      %v6083 = vsel %vm6081, %v6080, 0
      %vm6085 = vcmask 1041408
      %v6087 = vsel %vm6085, %v6065, 0
      %6089 = vmatprep.subr.bf16.mxu0 0
      %6090 = vmatpush1.bf16.msra.mxu0 %v6060
      %6091 = vmatprep.subr.bf16.mxu0 0
      %6092 = vmatpush1.bf16.msra.mxu0 %v6061
      %6093 = vmatprep.subr.bf16.mxu0 0
      %6094 = vmatpush1.bf16.msra.mxu0 %v6062
      %6095 = vmatprep.subr.bf16.mxu0 0
      %6096 = vmatpush1.bf16.msra.mxu0 %v6063
      %6097 = vmatprep.subr.bf16.mxu0 0
      %6098 = vmatpush1.bf16.msra.mxu0 %v6064
      %6099 = vmatprep.subr.bf16.mxu0 0
      %6100 = vmatpush1.bf16.msra.mxu0 %v6087
      %6101 = vmatprep.subr.bf16.mxu0 0
      %6102 = vmatpush1.bf16.msra.mxu0 0
      %6103 = vmatprep.subr.bf16.mxu0 0
      %6104 = vmatpush1.bf16.msra.mxu0 0
      %6105 = vmatprep.subr.bf16.mxu0 0
      %6106 = vmatpush1.bf16.msra.mxu0 0
      %6107 = vmatprep.subr.bf16.mxu0 0
      %6108 = vmatpush1.bf16.msra.mxu0 0
      %6109 = vmatprep.subr.bf16.mxu0 0
      %6110 = vmatpush1.bf16.msra.mxu0 0
      %6111 = vmatprep.subr.bf16.mxu0 0
      %6112 = vmatpush1.bf16.msra.mxu0 0
      %6113 = vmatprep.subr.bf16.mxu0 0
      %6114 = vmatpush1.bf16.msra.mxu0 0
      %6115 = vmatprep.subr.bf16.mxu0 0
      %6116 = vmatpush1.bf16.msra.mxu0 0
      %6117 = vmatprep.subr.bf16.mxu0 0
      %6118 = vmatpush1.bf16.msra.mxu0 0
      %6119 = vmatprep.subr.bf16.mxu0 0
      %6120 = vmatpush1.bf16.msra.mxu0 0
      %6121 = vmatprep.mubr.bf16.mxu0 0
      %6122 = vmatmul.mubr.bf16.gmra.mrb[0].mxu0 %v6083
      %v6123 = vpop.f32.mrb[0].mxu0
      %v6124 = vadd.f32 %v6069, %v6123
      %v6125 = vpop.f32.mrb[0].mxu0
      %v6126 = vpop.f32.mrb[0].mxu0
      %v6127 = vadd.f32 %v6074, %v6126
      %v6128 = vpop.f32.mrb[0].mxu0
      %6129 = vdwg.mxu0
      %vm6130 = vcmask 64512
      %6131 = vst.msk [vmem:[%s386] sm:$0xff] %vm6130, %v6124
      %vm6132 = vcmask 58368
      %6133 = vst.msk [vmem:[%s386 + $0x8] sm:$0x3] %vm6132, %v6127
      %p6134 = scmp.lt.s32.totalorder %s22, 1
      %s6135 = scalar_select %p6134, %s22, 1
      %s6136 = smul.addr %s6135, 2
      %s6137 = smul.addr %s6136, 8
      %s6138 = scalar_lea.vmem %s11, %s6137
      // Predicated region
      $region65: #{lenet_forward.1} parent=63 // pred_check
        %p6139 = pneg %p276
      $region66: #{lenet_forward.1} parent=63 // pred_check_branch
        %6141 = sbr.rel (%p6139) target = $region68
      $region67: #{lenet_forward.1} parent=63 // pred_region
        _
      $region68: #{lenet_forward.1} parent=63 // pred_fallthru
        _
    $region64: #{lenet_forward.1} parent=5 // pred_fallthru
      _
    %p6142 = scmp.le.s32.totalorder 2, %s17
    // Predicated region
    $region69: #{lenet_forward.1} parent=5 // pred_check
      %p6143 = pneg %p6142
    $region70: #{lenet_forward.1} parent=5 // pred_check_branch
      %6145 = sbr.rel (%p6143) target = $region72
    $region71: #{lenet_forward.1} parent=5 // pred_region
      %s6146 = ssub.s32 %s17, 2
      // Predicated region
      $region73: #{lenet_forward.1} parent=71 // pred_check
        %p6147 = pneg %p282
      $region74: #{lenet_forward.1} parent=71 // pred_check_branch
        %6149 = sbr.rel (%p6147) target = $region76
      $region75: #{lenet_forward.1} parent=71 // pred_region
        %p6150 = scmp.lt.s32.totalorder %s23, 1
        %s6151 = scalar_select %p6150, %s23, 1
        %s6152 = smul.addr %s6151, 2
        %s6153 = smul.addr %s6152, 8
        %s6154 = scalar_lea.vmem %s11, %s6153
      $region76: #{lenet_forward.1} parent=71 // pred_fallthru
        _
    $region72: #{lenet_forward.1} parent=5 // pred_fallthru
      _
  $region6: #{lenet_forward.1} parent=0 // loop_footer
    %s21 = sadd.s32 1, %s17
  $region7: #{lenet_forward.1} parent=0 // loop_footer_branch
    %16 = sbr.rel target = $region3
  $region8: #{lenet_forward.1} parent=0 // loop_exit
    _

</llo_original>
